<compile_context>
chip_gen: v7x
topology: tpu7x:2x2x1
jax: 0.10.0
libtpu: 0.0.40
codegen_flags: <defaults>
</compile_context>

<pallas_src>
import functools

import jax
import jax.numpy as jnp
from jax.experimental import pallas as pl
from jax.experimental.pallas import tpu as pltpu

COORD_PAD = 8            # pad xyz (3) + bias channel up to 8 lane-friendly channels
_TILE_FROM = 256         # rows of the "from" cloud per tile (keeps min-acc in vregs)
_TILE_TO = 2048          # cols of the "to" cloud per tile when M is large
_MAX_SINGLE_TO = 8192    # below this, use a single "to" tile (one reduction step)


def _round_up(x, m):
    return ((x + m - 1) // m) * m


def _pick_to_tile(m):
    m128 = _round_up(m, 128)
    return m128 if m128 <= _MAX_SINGLE_TO else _TILE_TO


# ---------------------------------------------------------------------------
# One-directional chamfer partial sums:  sum_i min_j ||from_i - to_j||^2
# ---------------------------------------------------------------------------
def _chamfer_dir_kernel(p_ref, tt_ref, out_ref, minacc_ref, *, n_valid):
    """p_ref:  (1, TA, 8)  "from" points packed as [-x,-y,-z, 1, 0,0,0,0].
    tt_ref: (1, 8, TB)  "to" points lane-dense; row 3 holds 0.5*||t||^2.

    out_ref:    (1, 1, 8, 128) per-(batch, from-tile) partial sum (broadcast).
    minacc_ref: VMEM (TA, 128) running elementwise min of (0.5||t||^2 - p.t).
    """
    at = pl.program_id(1)
    bt = pl.program_id(2)
    nbt = pl.num_programs(2)

    p = p_ref[0]                                   # (TA, 8) f32, resident
    ta = minacc_ref.shape[0]
    tb = tt_ref.shape[2]

    @pl.when(bt == 0)
    def _():
        minacc_ref[...] = jnp.full(minacc_ref.shape, jnp.inf, minacc_ref.dtype)

    # Chunked MXU consumption: each (TA,8)x(8,128) dot result is folded into
    # the running min straight away -- the full (TA,TB) tile never exists.
    cur = minacc_ref[...]                          # (TA, 128)
    for k in range(tb // 128):                     # static unrolled loop
        chunk = tt_ref[0, :, k * 128:(k + 1) * 128]            # (8, 128)
        c = jnp.dot(p, chunk, preferred_element_type=jnp.float32,
                    precision=jax.lax.Precision.HIGHEST)        # (TA, 128)
        # c == 0.5||t||^2 - p.t  (||t||^2 term folded into the matmul).
        # NOTE: Precision.HIGH is a candidate speedup; kept HIGHEST since the
        # kernel is not MXU-bound at K=8 and the expansion is cancellation-prone.
        cur = jnp.minimum(cur, c)
    minacc_ref[...] = cur

    @pl.when(bt == nbt - 1)
    def _():
        rowmin = jnp.min(minacc_ref[...], axis=1, keepdims=True)   # (TA, 1) XLU, once
        # channel 3 of p is exactly 1, channels 4..7 are 0 -> ||p||^2 = sum(p^2) - 1
        hpn = 0.5 * (jnp.sum(p * p, axis=1, keepdims=True) - 1.0)  # (TA, 1)
        # min_j d2 = ||p||^2 + 2*min_j(0.5||t||^2 - p.t); clamp after the min.
        d = jnp.maximum(2.0 * (hpn + rowmin), 0.0)
        rows = jax.lax.broadcasted_iota(jnp.int32, (ta, 1), 0) + at * ta
        d = jnp.where(rows < n_valid, d, 0.0)                      # mask padded rows
        out_ref[...] = jnp.full(out_ref.shape, jnp.sum(d), out_ref.dtype)


def _chamfer_dir(from_fmt, to_fmt, *, n_from_valid, ta, tb):
    """from_fmt: (B, A_pad, 8); to_fmt: (B, 8, M_pad) -> (B,) partial sums."""
    B, a_pad, _ = from_fmt.shape
    _, _, m_pad = to_fmt.shape
    at_tiles = a_pad // ta
    bt_tiles = m_pad // tb

    cost = pl.CostEstimate(
        flops=2 * B * a_pad * m_pad * COORD_PAD + B * a_pad * m_pad,
        transcendentals=0,
        bytes_accessed=4 * (from_fmt.size + at_tiles * to_fmt.size
                            + B * at_tiles * 8 * 128),
    )

    out = pl.pallas_call(
        functools.partial(_chamfer_dir_kernel, n_valid=n_from_valid),
        out_shape=jax.ShapeDtypeStruct((B, at_tiles, 8, 128), jnp.float32),
        grid=(B, at_tiles, bt_tiles),
        in_specs=[
            pl.BlockSpec((1, ta, COORD_PAD), lambda b, i, j: (b, i, 0)),
            pl.BlockSpec((1, COORD_PAD, tb), lambda b, i, j: (b, 0, j)),
        ],
        out_specs=pl.BlockSpec((1, 1, 8, 128), lambda b, i, j: (b, i, 0, 0)),
        scratch_shapes=[
            pltpu.VMEM((ta, 128), jnp.float32),    # running 128-lane min
        ],
        compiler_params=pltpu.CompilerParams(
            dimension_semantics=("parallel", "parallel", "arbitrary")),
        cost_estimate=cost,
    )(from_fmt, to_fmt)

    return jnp.sum(out[:, :, 0, 0], axis=1)        # (B,)


def _prep_from(pts, ta):
    """(B, N, 3) -> (B, A_pad, 8) rows packed as [-x,-y,-z, 1, 0,0,0,0]."""
    B, N, C = pts.shape
    a_pad = _round_up(N, ta)
    f = pts.astype(jnp.float32)
    if a_pad > N:                                   # replicate last point (min-safe)
        f = jnp.pad(f, ((0, 0), (0, a_pad - N), (0, 0)), mode="edge")
    ones = jnp.ones((B, a_pad, 1), jnp.float32)
    zeros = jnp.zeros((B, a_pad, COORD_PAD - C - 1), jnp.float32)
    return jnp.concatenate([-f, ones, zeros], axis=-1)


def _prep_to(pts, tb):
    """(B, M, 3) -> (B, 8, M_pad) lane-dense; row 3 carries 0.5*||t||^2."""
    B, M, C = pts.shape
    m_pad = _round_up(M, tb)
    t = pts.astype(jnp.float32)
    if m_pad > M:                                   # replicate last point (min-safe)
        t = jnp.pad(t, ((0, 0), (0, m_pad - M), (0, 0)), mode="edge")
    htn = 0.5 * jnp.sum(t * t, axis=-1, keepdims=True)           # (B, M_pad, 1)
    zeros = jnp.zeros((B, m_pad, COORD_PAD - C - 1), jnp.float32)
    packed = jnp.concatenate([t, htn, zeros], axis=-1)            # (B, M_pad, 8)
    return jnp.transpose(packed, (0, 2, 1))                       # (B, 8, M_pad)


def chamfer_distance(pred_points, target_points):
    """pred: (B, N, 3), target: (B, M, 3) -> scalar (batch-mean chamfer)."""
    B, N, _ = pred_points.shape
    _, M, _ = target_points.shape

    ta_pred = min(_TILE_FROM, _round_up(N, 8))
    ta_tgt = min(_TILE_FROM, _round_up(M, 8))
    tb_pred = _pick_to_tile(N)
    tb_tgt = _pick_to_tile(M)

    # Pack/pad each cloud once per required format, shared across directions.
    pred_from = _prep_from(pred_points, ta_pred)
    tgt_to = _prep_to(target_points, tb_tgt)
    tgt_from = _prep_from(target_points, ta_tgt)
    pred_to = _prep_to(pred_points, tb_pred)

    sx = _chamfer_dir(pred_from, tgt_to, n_from_valid=N, ta=ta_pred, tb=tb_tgt)
    sy = _chamfer_dir(tgt_from, pred_to, n_from_valid=M, ta=ta_tgt, tb=tb_pred)
    return jnp.mean(sx / N + sy / M)


# ---------------------------------------------------------------------------
# Fused mesh regularization reductions (edge + laplacian) in one pallas_call
# ---------------------------------------------------------------------------
def _mesh_reg_kernel(edge_ref, lap_ref, edge_out_ref, lap_out_ref, *, n_valid):
    e = edge_ref[...]                                  # (8, L) lane-dense
    l = lap_ref[...]
    e2 = jnp.sum(e * e, axis=0, keepdims=True)         # (1, L) sublane reduce
    l2 = jnp.sum(l * l, axis=0, keepdims=True)
    # zero-padded columns contribute 0 to both sums (sqrt(0) == 0)
    edge_mean = jnp.sum(e2) / n_valid                  # mean squared edge len
    lap_mean = jnp.sum(jnp.sqrt(l2)) / n_valid         # mean laplacian norm
    edge_out_ref[...] = jnp.full(edge_out_ref.shape, edge_mean, jnp.float32)
    lap_out_ref[...] = jnp.full(lap_out_ref.shape, lap_mean, jnp.float32)


def mesh_reg_losses(edge_vecs, lap_vecs):
    """edge_vecs, lap_vecs: (B, V, 3) -> (edge_loss, laplacian_loss) scalars."""
    B, V, C = edge_vecs.shape
    bv = B * V
    L = _round_up(bv, 128)

    def prep(x):
        x = x.astype(jnp.float32).reshape(bv, C)
        x = jnp.pad(x, ((0, L - bv), (0, COORD_PAD - C)))
        return jnp.transpose(x)                        # (8, L) lane-dense

    e = prep(edge_vecs)
    l = prep(lap_vecs)
    # TODO(synk): for realistic marching-cubes vertex counts, tile over L with
    # a reduction grid instead of a single (8, L) block.
    edge_o, lap_o = pl.pallas_call(
        functools.partial(_mesh_reg_kernel, n_valid=bv),
        out_shape=(jax.ShapeDtypeStruct((8, 128), jnp.float32),
                   jax.ShapeDtypeStruct((8, 128), jnp.float32)),
        grid=(1,),
        in_specs=[pl.BlockSpec((COORD_PAD, L), lambda i: (0, 0)),
                  pl.BlockSpec((COORD_PAD, L), lambda i: (0, 0))],
        out_specs=(pl.BlockSpec((8, 128), lambda i: (0, 0)),
                   pl.BlockSpec((8, 128), lambda i: (0, 0))),
    )(e, l)
    return edge_o[0, 0], lap_o[0, 0]


# ---------------------------------------------------------------------------
# Otuken3DLoss forward (JAX glue + Pallas kernels)
# ---------------------------------------------------------------------------
def otuken3d_loss(pred_points, target_points, pred_mesh_verts,
                  chamfer_weight=1.0, edge_weight=0.1,
                  normal_weight=0.01, laplacian_weight=0.1,
                  return_components=False):
    """pred_points/target_points: (B, N, 3); pred_mesh_verts: (B, V, 3).

    Mesh connectivity is a fixed deterministic ring (vertex i connected to
    i-1, i+1) standing in for marching-cubes faces, which cannot be produced
    on-device.
    """
    cham = chamfer_distance(pred_points, target_points)

    nxt = jnp.roll(pred_mesh_verts, -1, axis=1)
    prv = jnp.roll(pred_mesh_verts, 1, axis=1)
    edge_vecs = pred_mesh_verts - nxt                   # mesh_edge_loss (target_length=0)
    lap_vecs = pred_mesh_verts - 0.5 * (nxt + prv)      # uniform laplacian
    edge_loss, laplacian_loss = mesh_reg_losses(edge_vecs, lap_vecs)

    # TODO(synk): mesh_normal_consistency needs face/edge adjacency from
    # marching cubes; no on-device equivalent, contributes 0 here.
    normal_loss = jnp.float32(0.0)

    total = (chamfer_weight * cham
             + edge_weight * edge_loss
             + normal_weight * normal_loss
             + laplacian_weight * laplacian_loss)

    if return_components:
        return {"total_loss": total, "chamfer_loss": cham,
                "edge_loss": edge_loss, "normal_loss": normal_loss,
                "laplacian_loss": laplacian_loss}
    return total


if __name__ == "__main__":
    key = jax.random.PRNGKey(0)
    k1, k2, k3, k4 = jax.random.split(key, 4)

    B = 2
    N = 150   # stands in for num_samples=5000 at small scale (exercises padding/masking)
    M = 200
    V = 64    # padded mesh vertex count

    # pred_voxels exists in the original interface; marching cubes has no
    # on-device equivalent, so point clouds / vertices are synthesized.
    pred_voxels = jax.nn.sigmoid(
        jax.random.normal(k1, (B, 1, 16, 16, 16), dtype=jnp.float32))
    _ = pred_voxels  # interface placeholder

    pred_points = jax.random.normal(k2, (B, N, 3), dtype=jnp.float32)
    target_points = jax.random.normal(k3, (B, M, 3), dtype=jnp.float32)
    pred_mesh_verts = jax.random.normal(k4, (B, V, 3), dtype=jnp.float32)

    out = otuken3d_loss(pred_points, target_points, pred_mesh_verts,
                        return_components=True)
    out = jax.block_until_ready(out)

    # Pure-JAX references (forward semantics check).
    d2 = jnp.sum((pred_points[:, :, None, :] - target_points[:, None, :, :]) ** 2,
                 axis=-1)
    cham_ref = jnp.mean(jnp.mean(jnp.min(d2, axis=2), axis=1)
                        + jnp.mean(jnp.min(d2, axis=1), axis=1))
    nxt = jnp.roll(pred_mesh_verts, -1, axis=1)
    prv = jnp.roll(pred_mesh_verts, 1, axis=1)
    edge_ref = jnp.mean(jnp.sum((pred_mesh_verts - nxt) ** 2, axis=-1))
    lap_ref = jnp.mean(jnp.sqrt(
        jnp.sum((pred_mesh_verts - 0.5 * (nxt + prv)) ** 2, axis=-1)))

    assert jnp.isfinite(out["total_loss"])
    assert jnp.allclose(out["chamfer_loss"], cham_ref, rtol=1e-2, atol=1e-3), \
        (out["chamfer_loss"], cham_ref)
    assert jnp.allclose(out["edge_loss"], edge_ref, rtol=1e-4, atol=1e-5)
    assert jnp.allclose(out["laplacian_loss"], lap_ref, rtol=1e-4, atol=1e-5)
    print("KERNEL_OK")
</pallas_src>

<mosaic_0001>
module attributes {stable_mosaic.version = 11 : i64} {
  func.func @_chamfer_dir_kernel(%arg0: i32, %arg1: i32, %arg2: i32, %arg3: memref<1x152x8xf32, #tpu.memory_space<vmem>>, %arg4: memref<1x8x256xf32, #tpu.memory_space<vmem>>, %arg5: memref<1x1x8x128xf32, #tpu.memory_space<vmem>>, %arg6: memref<152x128xf32, #tpu.memory_space<vmem>>) attributes {dimension_semantics = [#tpu.dimension_semantics<parallel>, #tpu.dimension_semantics<parallel>, #tpu.dimension_semantics<arbitrary>], iteration_bounds = array<i64: 2, 1, 1>, scalar_prefetch = 0 : i64, scratch_operands = 1 : i64, tpu.core_type = #tpu.core_type<tc>, window_params = [{transform_indices = @transform_0, window_bounds = array<i64: 1, 152, 8>}, {transform_indices = @transform_1, window_bounds = array<i64: 1, 8, 256>}, {transform_indices = @transform_2, window_bounds = array<i64: 1, 1, 8, 128>}]} {
    %c0 = arith.constant 0 : index
    %c0_0 = arith.constant 0 : index
    %c0_1 = arith.constant 0 : index
    %0 = vector.load %arg3[%c0, %c0_0, %c0_1] : memref<1x152x8xf32, #tpu.memory_space<vmem>>, vector<1x152x8xf32>
    %1 = vector.shape_cast %0 : vector<1x152x8xf32> to vector<152x8xf32>
    %c0_i32 = arith.constant 0 : i32
    %2 = arith.cmpi eq, %arg2, %c0_i32 : i32
    %3 = arith.extui %2 : i1 to i32
    %c0_i32_2 = arith.constant 0 : i32
    %4 = arith.cmpi ne, %3, %c0_i32_2 : i32
    scf.if %4 {
      %cst_15 = arith.constant 0x7F800000 : f32
      %18 = vector.broadcast %cst_15 : f32 to vector<152x128xf32>
      %c0_16 = arith.constant 0 : index
      %c0_17 = arith.constant 0 : index
      %19 = vector.load %arg6[%c0_16, %c0_17] : memref<152x128xf32, #tpu.memory_space<vmem>>, vector<152x128xf32>
      tpu.vector_store %arg6[%c0_16, %c0_17], %18 {strides = array<i32>} : memref<152x128xf32, #tpu.memory_space<vmem>>, vector<152x128xf32>,
    } else {
    }
    %c0_3 = arith.constant 0 : index
    %c0_4 = arith.constant 0 : index
    %5 = vector.load %arg6[%c0_3, %c0_4] : memref<152x128xf32, #tpu.memory_space<vmem>>, vector<152x128xf32>
    %c0_5 = arith.constant 0 : index
    %c0_6 = arith.constant 0 : index
    %c0_7 = arith.constant 0 : index
    %6 = vector.load %arg4[%c0_5, %c0_6, %c0_7] : memref<1x8x256xf32, #tpu.memory_space<vmem>>, vector<1x8x128xf32>
    %7 = vector.shape_cast %6 : vector<1x8x128xf32> to vector<8x128xf32>
    %cst = arith.constant dense<0.000000e+00> : vector<152x128xf32>
    %8 = tpu.matmul %1, %7, %cst {dimension_numbers = #tpu.dot_dimension_numbers<[1], [0], [0], [1], [0, 0, 1, 1], [], []>, precision = #tpu.contract_precision<fp32>} : vector<152x8xf32>, vector<8x128xf32>, vector<152x128xf32> -> vector<152x128xf32>
    %9 = arith.minimumf %5, %8 : vector<152x128xf32>
    %c0_8 = arith.constant 0 : index
    %c0_9 = arith.constant 0 : index
    %c128 = arith.constant 128 : index
    %10 = vector.load %arg4[%c0_8, %c0_9, %c128] : memref<1x8x256xf32, #tpu.memory_space<vmem>>, vector<1x8x128xf32>
    %11 = vector.shape_cast %10 : vector<1x8x128xf32> to vector<8x128xf32>
    %cst_10 = arith.constant dense<0.000000e+00> : vector<152x128xf32>
    %12 = tpu.matmul %1, %11, %cst_10 {dimension_numbers = #tpu.dot_dimension_numbers<[1], [0], [0], [1], [0, 0, 1, 1], [], []>, precision = #tpu.contract_precision<fp32>} : vector<152x8xf32>, vector<8x128xf32>, vector<152x128xf32> -> vector<152x128xf32>
    %13 = arith.minimumf %9, %12 : vector<152x128xf32>
    %c0_11 = arith.constant 0 : index
    %c0_12 = arith.constant 0 : index
    %14 = vector.load %arg6[%c0_11, %c0_12] : memref<152x128xf32, #tpu.memory_space<vmem>>, vector<152x128xf32>
    tpu.vector_store %arg6[%c0_11, %c0_12], %13 {strides = array<i32>} : memref<152x128xf32, #tpu.memory_space<vmem>>, vector<152x128xf32>,
    %c0_i32_13 = arith.constant 0 : i32
    %15 = arith.cmpi eq, %arg2, %c0_i32_13 : i32
    %16 = arith.extui %15 : i1 to i32
    %c0_i32_14 = arith.constant 0 : i32
    %17 = arith.cmpi ne, %16, %c0_i32_14 : i32
    scf.if %17 {
      %c0_15 = arith.constant 0 : index
      %c0_16 = arith.constant 0 : index
      %18 = vector.load %arg6[%c0_15, %c0_16] : memref<152x128xf32, #tpu.memory_space<vmem>>, vector<152x128xf32>
      %cst_17 = arith.constant dense<0x7F800000> : vector<152xf32>
      %19 = vector.multi_reduction <minimumf>, %18, %cst_17 [1] : vector<152x128xf32> to vector<152xf32>
      %20 = vector.shape_cast %19 : vector<152xf32> to vector<152x1xf32>
      %21 = arith.mulf %1, %1 : vector<152x8xf32>
      %cst_18 = arith.constant dense<0.000000e+00> : vector<152xf32>
      %22 = vector.multi_reduction <add>, %21, %cst_18 [1] : vector<152x8xf32> to vector<152xf32>
      %23 = vector.shape_cast %22 : vector<152xf32> to vector<152x1xf32>
      %cst_19 = arith.constant 1.000000e+00 : f32
      %24 = vector.broadcast %cst_19 : f32 to vector<152x1xf32>
      %25 = arith.subf %23, %24 : vector<152x1xf32>
      %cst_20 = arith.constant 5.000000e-01 : f32
      %26 = vector.broadcast %cst_20 : f32 to vector<152x1xf32>
      %27 = arith.mulf %26, %25 : vector<152x1xf32>
      %28 = arith.addf %27, %20 : vector<152x1xf32>
      %cst_21 = arith.constant 2.000000e+00 : f32
      %29 = vector.broadcast %cst_21 : f32 to vector<152x1xf32>
      %30 = arith.mulf %29, %28 : vector<152x1xf32>
      %cst_22 = arith.constant 0.000000e+00 : f32
      %31 = vector.broadcast %cst_22 : f32 to vector<152x1xf32>
      %32 = arith.maximumf %30, %31 : vector<152x1xf32>
      %33 = tpu.iota {dimensions = array<i32: 0>} : vector<152x1xi32>
      %c152_i32 = arith.constant 152 : i32
      %34 = arith.muli %arg1, %c152_i32 : i32
      %35 = vector.broadcast %34 : i32 to vector<152x1xi32>
      %36 = arith.addi %33, %35 : vector<152x1xi32>
      %c150_i32 = arith.constant 150 : i32
      %37 = vector.broadcast %c150_i32 : i32 to vector<152x1xi32>
      %38 = arith.cmpi slt, %36, %37 : vector<152x1xi32>
      %cst_23 = arith.constant 0.000000e+00 : f32
      %39 = vector.broadcast %cst_23 : f32 to vector<152x1xf32>
      %40 = arith.select %38, %32, %39 : vector<152x1xi1>, vector<152x1xf32>
      %41 = vector.shape_cast %40 : vector<152x1xf32> to vector<1x152x1xf32>
      %cst_24 = arith.constant dense<0.000000e+00> : vector<1xf32>
      %42 = vector.multi_reduction <add>, %41, %cst_24 [1, 2] : vector<1x152x1xf32> to vector<1xf32>
      %43 = vector.shape_cast %42 : vector<1xf32> to vector<1x1x1xf32>
      %44 = vector.extract %43[0, 0, 0] : f32 from vector<1x1x1xf32>
      %45 = vector.broadcast %44 : f32 to vector<1x1x8x128xf32>
      %c0_25 = arith.constant 0 : index
      %c0_26 = arith.constant 0 : index
      %c0_27 = arith.constant 0 : index
      %c0_28 = arith.constant 0 : index
      %46 = vector.load %arg5[%c0_25, %c0_26, %c0_27, %c0_28] : memref<1x1x8x128xf32, #tpu.memory_space<vmem>>, vector<1x1x8x128xf32>
      tpu.vector_store %arg5[%c0_25, %c0_26, %c0_27, %c0_28], %45 {strides = array<i32>} : memref<1x1x8x128xf32, #tpu.memory_space<vmem>>, vector<1x1x8x128xf32>,
    } else {
    }
    return
  }
  func.func @transform_0(%arg0: i32, %arg1: i32, %arg2: i32) -> (i32, i32, i32) {
    %c0_i32 = arith.constant 0 : i32
    %c0_i32_0 = arith.constant 0 : i32
    return %arg0, %arg1, %c0_i32 : i32, i32, i32
  }
  func.func @transform_1(%arg0: i32, %arg1: i32, %arg2: i32) -> (i32, i32, i32) {
    %c0_i32 = arith.constant 0 : i32
    %c0_i32_0 = arith.constant 0 : i32
    return %arg0, %c0_i32, %arg2 : i32, i32, i32
  }
  func.func @transform_2(%arg0: i32, %arg1: i32, %arg2: i32) -> (i32, i32, i32, i32) {
    %c0_i32 = arith.constant 0 : i32
    %c0_i32_0 = arith.constant 0 : i32
    %c0_i32_1 = arith.constant 0 : i32
    return %arg0, %arg1, %c0_i32, %c0_i32_0 : i32, i32, i32, i32
  }
}

</mosaic_0001>

<llo_original>
// kernel: tpu_custom_call.1
$region0: #{tpu_custom_call.1}
  #allocation0 [shape = 'u32[]', space=smem, size = 0x4, offset = 0x4, fixed_abs, tag = 'smem constant byte address 0x4 - core index']
  #allocation1 [shape = 'u32[144,128]{1,0:T(1,128)}', space=vmem, size = 0x12000, scoped, tag = 'internal scratch']
  #allocation2 [shape = 'f32[152,128]{1,0:T(8,128)}', space=vmem, size = 0x13000, scoped, tag = 'scratch operand']
  %s0 = inlined_call_operand.vmem [shape: f32[2,152,8], index: 0, kind: input, shape index: {}]
  %s1 = inlined_call_operand.vmem [shape: f32[2,8,256], index: 1, kind: input, shape index: {}]
  %s2 = inlined_call_operand.hbm [shape: f32[2,1,8,128], index: 2, kind: output, shape index: {}]
  %s3 = sld [smem:[#allocation0]]
  $region49: #{tpu_custom_call.1} parent=0
    _
  %s5 = ssub.s32 1, %s3
  %s6 = scalar_select 0, %s5, %s3
  $region1: #{tpu_custom_call.1} parent=0
    #allocation3 [shape = 'u8[8192]{0}', space=vmem, size = 0x2000, scoped, tag = 'output window, operand 0']
    #allocation4 [shape = 's32[2]{0}', space=sflag, size = 0x8, scoped, tag = 'scoped memory for tpu_custom_call.1']
    %7 = vsyncpa [#allocation4], 0
    %s8 = scalar_lea.sflag [#allocation4], 1
    %9 = vsyncpa %s8, 0
    loop: start=0, step=1, limit=4
    $region2: #{tpu_custom_call.1} parent=1 // loop_pre_header
      _
    $region3: #{tpu_custom_call.1} parent=1 // loop_header
      %s11 = sphi 0, %s15
      %p12 = scmp.ge.s32.totalorder %s11, 4
      %s18 = sphi 0, %s37
      %s19 = sphi 0, %s33
      %s20 = sphi 0, %s29
      %s21 = sphi 0, %s18
      %s22 = sphi 0, %s19
      %s23 = sphi 0, %s20
      %s24 = sphi 0, %s21
      %s25 = sphi 0, %s22
      %s26 = sphi 0, %s23
      %s42 = sphi 0, %s44
      %s45 = sphi 0, %s42
      %s46 = sphi 0, %s45
      %s62 = sphi 0, %s46
      %s70 = sphi 0, %s72
      %s73 = sphi 0, %s70
      %s74 = sphi 0, %s73
      %s90 = sphi 0, %s74
      %s98 = sphi 0, %s100
      %s101 = sphi 0, %s98
      %s102 = sphi 0, %s101
      %s118 = sphi 0, %s102
    $region4: #{tpu_custom_call.1} parent=1 // loop_header_branch
      %14 = sbr.rel (%p12) target = $region8
    $region5: #{tpu_custom_call.1} parent=1 // loop_body
      %s16 = ssub.s32 %s11, 1
      %s17 = ssub.s32 %s11, 2
      %s27 = sadd.s32 1, %s20
      %p28 = scmp.ge.s32.totalorder %s27, 1
      %s29 = scalar_select %p28, 0, %s27
      %s30 = sadd.s32 1, %s19
      %s31 = scalar_select %p28, %s30, %s19
      %p32 = scmp.ge.s32.totalorder %s31, 1
      %s33 = scalar_select %p32, 0, %s31
      %s34 = sadd.s32 1, %s18
      %s35 = scalar_select %p32, %s34, %s18
      %p36 = scmp.ge.s32.totalorder %s35, 2
      %s37 = scalar_select %p36, 0, %s35
      %s38 = ssub.s32 %s18, %s37
      %s39 = ssub.s32 %s19, %s33
      %s40 = sor.u32 %s38, %s39
      %p41 = scmp.eq.s32.totalorder %s40, 0
      %s43 = sadd.s32 %s42, 1
      %s44 = scalar_select %p41, %s42, %s43
      %p47 = pneg %p41
      %p48 = scmp.eq.s32.totalorder %s11, 1
      %p49 = por %p47, %p48
      %p50 = scmp.ne.s32.totalorder %s42, %s45
      %p51 = scmp.eq.s32.totalorder %s11, 0
      %p52 = por %p50, %p51
      %p53 = scmp.ne.s32.totalorder %s42, %s45
      %p54 = scmp.eq.s32.totalorder %s16, 1
      %p55 = por %p53, %p54
      %p56 = scmp.ne.s32.totalorder %s45, %s46
      %p57 = scmp.eq.s32.totalorder %s16, 0
      %p58 = por %p56, %p57
      %p59 = scmp.ne.s32.totalorder %s45, %s46
      %p60 = scmp.eq.s32.totalorder %s17, 1
      %p61 = por %p59, %p60
      %p63 = scmp.ne.s32.totalorder %s46, %s62
      %p64 = scmp.eq.s32.totalorder %s17, 0
      %p65 = por %p63, %p64
      %s66 = ssub.s32 %s18, %s37
      %s67 = ssub.s32 %s20, %s29
      %s68 = sor.u32 %s66, %s67
      %p69 = scmp.eq.s32.totalorder %s68, 0
      %s71 = sadd.s32 %s70, 1
      %s72 = scalar_select %p69, %s70, %s71
      %p75 = pneg %p69
      %p76 = scmp.eq.s32.totalorder %s11, 1
      %p77 = por %p75, %p76
      %p78 = scmp.ne.s32.totalorder %s70, %s73
      %p79 = scmp.eq.s32.totalorder %s11, 0
      %p80 = por %p78, %p79
      %p81 = scmp.ne.s32.totalorder %s70, %s73
      %p82 = scmp.eq.s32.totalorder %s16, 1
      %p83 = por %p81, %p82
      %p84 = scmp.ne.s32.totalorder %s73, %s74
      %p85 = scmp.eq.s32.totalorder %s16, 0
      %p86 = por %p84, %p85
      %p87 = scmp.ne.s32.totalorder %s73, %s74
      %p88 = scmp.eq.s32.totalorder %s17, 1
      %p89 = por %p87, %p88
      %p91 = scmp.ne.s32.totalorder %s74, %s90
      %p92 = scmp.eq.s32.totalorder %s17, 0
      %p93 = por %p91, %p92
      %s94 = ssub.s32 %s18, %s37
      %s95 = ssub.s32 %s19, %s33
      %s96 = sor.u32 %s94, %s95
      %p97 = scmp.eq.s32.totalorder %s96, 0
      %s99 = sadd.s32 %s98, 1
      %s100 = scalar_select %p97, %s98, %s99
      %p103 = pneg %p97
      %p104 = scmp.eq.s32.totalorder %s11, 1
      %p105 = por %p103, %p104
      %p106 = scmp.ne.s32.totalorder %s98, %s101
      %p107 = scmp.eq.s32.totalorder %s11, 0
      %p108 = por %p106, %p107
      %p109 = scmp.ne.s32.totalorder %s98, %s101
      %p110 = scmp.eq.s32.totalorder %s16, 1
      %p111 = por %p109, %p110
      %p112 = scmp.ne.s32.totalorder %s101, %s102
      %p113 = scmp.eq.s32.totalorder %s16, 0
      %p114 = por %p112, %p113
      %p115 = scmp.ne.s32.totalorder %s101, %s102
      %p116 = scmp.eq.s32.totalorder %s17, 1
      %p117 = por %p115, %p116
      %p119 = scmp.ne.s32.totalorder %s102, %s118
      %p120 = scmp.eq.s32.totalorder %s17, 0
      %p121 = por %p119, %p120
      %p122 = scmp.le.s32.totalorder 1, %s11
      %p123 = scmp.lt.s32.totalorder %s11, 3
      %p124 = pnand %p122, %p123
      %p125 = pneg %p124
      // Predicated region
      $region9: #{tpu_custom_call.1} parent=5 // pred_check
        _
      $region10: #{tpu_custom_call.1} parent=5 // pred_check_branch
        %127 = sbr.rel (%p124) target = $region12
      $region11: #{tpu_custom_call.1} parent=5 // pred_region
        %s128 = ssub.s32 %s11, 1
      $region12: #{tpu_custom_call.1} parent=5 // pred_fallthru
        _
      %p129 = scmp.lt.s32.totalorder %s11, 2
      // Predicated region
      $region13: #{tpu_custom_call.1} parent=5 // pred_check
        %p130 = pneg %p129
      $region14: #{tpu_custom_call.1} parent=5 // pred_check_branch
        %132 = sbr.rel (%p130) target = $region16
      $region15: #{tpu_custom_call.1} parent=5 // pred_region
        // Predicated region
        $region17: #{tpu_custom_call.1} parent=15 // pred_check
          %p133 = pneg %p52
        $region18: #{tpu_custom_call.1} parent=15 // pred_check_branch
          %135 = sbr.rel (%p133) target = $region20
        $region19: #{tpu_custom_call.1} parent=15 // pred_region
          %s136 = smul.u32 19, %s19
          %p137 = scmp.lt.s32.totalorder %s18, 1
          %s138 = scalar_select %p137, %s18, 1
          %p139 = scmp.lt.s32.totalorder %s136, 18
          %s140 = scalar_select %p139, %s136, 18
          %s141 = smul.addr %s138, 19
          %s142 = sadd.s32 %s140, %s141
          %s143 = smul.addr %s142, 8
          %s144 = scalar_lea.vmem %s0, %s143
          %s145 = smul.u32 19, %s19
        $region20: #{tpu_custom_call.1} parent=15 // pred_fallthru
          _
        // Predicated region
        $region21: #{tpu_custom_call.1} parent=15 // pred_check
          %p146 = pneg %p80
        $region22: #{tpu_custom_call.1} parent=15 // pred_check_branch
          %148 = sbr.rel (%p146) target = $region24
        $region23: #{tpu_custom_call.1} parent=15 // pred_region
          %s149 = smul.u32 2, %s20
          %p150 = scmp.lt.s32.totalorder %s18, 1
          %s151 = scalar_select %p150, %s18, 1
          %p152 = scmp.lt.s32.totalorder %s149, 1
          %s153 = scalar_select %p152, %s149, 1
          %s154 = smul.addr %s151, 2
          %s155 = sadd.s32 %s153, %s154
          %s156 = smul.addr %s155, 8
          %s157 = scalar_lea.vmem %s1, %s156
          %s158 = smul.u32 2, %s20
        $region24: #{tpu_custom_call.1} parent=15 // pred_fallthru
          _
      $region16: #{tpu_custom_call.1} parent=5 // pred_fallthru
        _
      %p159 = scmp.le.s32.totalorder 1, %s11
      %p160 = scmp.lt.s32.totalorder %s11, 3
      %p161 = pnand %p159, %p160
      %p162 = pneg %p161
      // Predicated region
      $region25: #{tpu_custom_call.1} parent=5 // pred_check
        _
      $region26: #{tpu_custom_call.1} parent=5 // pred_check_branch
        %164 = sbr.rel (%p161) target = $region28
      $region27: #{tpu_custom_call.1} parent=5 // pred_region
        %s165 = ssub.s32 %s11, 1
        %s166 = smul.u32 19, %s22
        %p167 = scmp.lt.s32.totalorder %s21, 1
        %s168 = scalar_select %p167, %s21, 1
        %p169 = scmp.lt.s32.totalorder %s166, 18
        %s170 = scalar_select %p169, %s166, 18
        %s171 = smul.addr %s168, 19
        %s172 = sadd.s32 %s170, %s171
        %s173 = smul.addr %s172, 8
        %s174 = scalar_lea.vmem %s0, %s173
        %p175 = pneg %p58
        %p176 = pneg %p55
        %s177 = smul.u32 2, %s23
        %p178 = scmp.lt.s32.totalorder %s21, 1
        %s179 = scalar_select %p178, %s21, 1
        %p180 = scmp.lt.s32.totalorder %s177, 1
        %s181 = scalar_select %p180, %s177, 1
        %s182 = smul.addr %s179, 2
        %s183 = sadd.s32 %s181, %s182
        %s184 = smul.addr %s183, 8
        %s185 = scalar_lea.vmem %s1, %s184
        %p186 = pneg %p86
        %p187 = pneg %p83
        %p188 = pneg %p114
        %p189 = pneg %p111
        %s190 = sand.u32 %s101, 1
        %s191 = scalar_lea.sflag [#allocation4], %s190
        %s192 = sand.u32 %s101, 1
        %s193 = smul.addr %s192, 8
        %s194 = scalar_lea.vmem [#allocation3], %s193
        %s195 = smul.u32 19, %s22
        %p196 = scmp.lt.s32.totalorder %s21, 1
        %s197 = scalar_select %p196, %s21, 1
        %p198 = scmp.lt.s32.totalorder %s195, 18
        %s199 = scalar_select %p198, %s195, 18
        %s200 = smul.addr %s197, 19
        %s201 = sadd.s32 %s199, %s200
        %s202 = smul.addr %s201, 8
        %s203 = scalar_lea.vmem %s0, %s202
        %s204 = smul.u32 19, %s22
        %s205 = smul.u32 2, %s23
        %p206 = scmp.lt.s32.totalorder %s21, 1
        %s207 = scalar_select %p206, %s21, 1
        %p208 = scmp.lt.s32.totalorder %s205, 1
        %s209 = scalar_select %p208, %s205, 1
        %s210 = smul.addr %s207, 2
        %s211 = sadd.s32 %s209, %s210
        %s212 = smul.addr %s211, 8
        %s213 = scalar_lea.vmem %s1, %s212
        %s214 = smul.u32 2, %s23
        %v215 = vld [vmem:[%s203] sm:$0xff]
        %v216 = vld [vmem:[%s203 + $0x8] sm:$0xff]
        %v217 = vld [vmem:[%s203 + $0x10] sm:$0xff]
        %v218 = vld [vmem:[%s203 + $0x18] sm:$0xff]
        %v219 = vld [vmem:[%s203 + $0x20] sm:$0xff]
        %v220 = vld [vmem:[%s203 + $0x28] sm:$0xff]
        %v221 = vld [vmem:[%s203 + $0x30] sm:$0xff]
        %v222 = vld [vmem:[%s203 + $0x38] sm:$0xff]
        %v223 = vld [vmem:[%s203 + $0x40] sm:$0xff]
        %v224 = vld [vmem:[%s203 + $0x48] sm:$0xff]
        %v225 = vld [vmem:[%s203 + $0x50] sm:$0xff]
        %v226 = vld [vmem:[%s203 + $0x58] sm:$0xff]
        %v227 = vld [vmem:[%s203 + $0x60] sm:$0xff]
        %v228 = vld [vmem:[%s203 + $0x68] sm:$0xff]
        %v229 = vld [vmem:[%s203 + $0x70] sm:$0xff]
        %v230 = vld [vmem:[%s203 + $0x78] sm:$0xff]
        %v231 = vld [vmem:[%s203 + $0x80] sm:$0xff]
        %v232 = vld [vmem:[%s203 + $0x88] sm:$0xff]
        %v233 = vld [vmem:[%s203 + $0x90] sm:$0xff]
        %p234 = scmp.eq.s32.totalorder %s23, 0
        // Predicated region
        $region29: #{tpu_custom_call.1} parent=27 // pred_check
          %p235 = pneg %p234
        $region30: #{tpu_custom_call.1} parent=27 // pred_check_branch
          %237 = sbr.rel (%p235) target = $region32
        $region31: #{tpu_custom_call.1} parent=27 // pred_region
          %238 = vst [vmem:[#allocation2] sm:$0xff] inf
          %239 = vst [vmem:[#allocation2 + $0x8] sm:$0xff] inf
          %240 = vst [vmem:[#allocation2 + $0x10] sm:$0xff] inf
          %241 = vst [vmem:[#allocation2 + $0x18] sm:$0xff] inf
          %242 = vst [vmem:[#allocation2 + $0x20] sm:$0xff] inf
          %243 = vst [vmem:[#allocation2 + $0x28] sm:$0xff] inf
          %244 = vst [vmem:[#allocation2 + $0x30] sm:$0xff] inf
          %245 = vst [vmem:[#allocation2 + $0x38] sm:$0xff] inf
          %246 = vst [vmem:[#allocation2 + $0x40] sm:$0xff] inf
          %247 = vst [vmem:[#allocation2 + $0x48] sm:$0xff] inf
          %248 = vst [vmem:[#allocation2 + $0x50] sm:$0xff] inf
          %249 = vst [vmem:[#allocation2 + $0x58] sm:$0xff] inf
          %250 = vst [vmem:[#allocation2 + $0x60] sm:$0xff] inf
          %251 = vst [vmem:[#allocation2 + $0x68] sm:$0xff] inf
          %252 = vst [vmem:[#allocation2 + $0x70] sm:$0xff] inf
          %253 = vst [vmem:[#allocation2 + $0x78] sm:$0xff] inf
          %254 = vst [vmem:[#allocation2 + $0x80] sm:$0xff] inf
          %255 = vst [vmem:[#allocation2 + $0x88] sm:$0xff] inf
          %256 = vst [vmem:[#allocation2 + $0x90] sm:$0xff] inf
        $region32: #{tpu_custom_call.1} parent=27 // pred_fallthru
          _
        %v257 = vld [vmem:[#allocation2] sm:$0xff]
        %v258 = vld [vmem:[#allocation2 + $0x8] sm:$0xff]
        %v259 = vld [vmem:[#allocation2 + $0x10] sm:$0xff]
        %v260 = vld [vmem:[#allocation2 + $0x18] sm:$0xff]
        %v261 = vld [vmem:[#allocation2 + $0x20] sm:$0xff]
        %v262 = vld [vmem:[#allocation2 + $0x28] sm:$0xff]
        %v263 = vld [vmem:[#allocation2 + $0x30] sm:$0xff]
        %v264 = vld [vmem:[#allocation2 + $0x38] sm:$0xff]
        %v265 = vld [vmem:[#allocation2 + $0x40] sm:$0xff]
        %v266 = vld [vmem:[#allocation2 + $0x48] sm:$0xff]
        %v267 = vld [vmem:[#allocation2 + $0x50] sm:$0xff]
        %v268 = vld [vmem:[#allocation2 + $0x58] sm:$0xff]
        %v269 = vld [vmem:[#allocation2 + $0x60] sm:$0xff]
        %v270 = vld [vmem:[#allocation2 + $0x68] sm:$0xff]
        %v271 = vld [vmem:[#allocation2 + $0x70] sm:$0xff]
        %v272 = vld [vmem:[#allocation2 + $0x78] sm:$0xff]
        %v273 = vld [vmem:[#allocation2 + $0x80] sm:$0xff]
        %v274 = vld [vmem:[#allocation2 + $0x88] sm:$0xff]
        %v275 = vld [vmem:[#allocation2 + $0x90] sm:$0xff]
        %v276 = vld [vmem:[%s213] sm:$0xff]
        %vm277 = vcmask 64512
        %v279 = vsel %vm277, %v215, 0
        %v282 = vsel %vm277, %v216, 0
        %v285 = vsel %vm277, %v217, 0
        %v288 = vsel %vm277, %v218, 0
        %v291 = vsel %vm277, %v219, 0
        %v294 = vsel %vm277, %v220, 0
        %v297 = vsel %vm277, %v221, 0
        %v300 = vsel %vm277, %v222, 0
        %v303 = vsel %vm277, %v223, 0
        %v306 = vsel %vm277, %v224, 0
        %v309 = vsel %vm277, %v225, 0
        %v312 = vsel %vm277, %v226, 0
        %v315 = vsel %vm277, %v227, 0
        %v318 = vsel %vm277, %v228, 0
        %v321 = vsel %vm277, %v229, 0
        %v324 = vsel %vm277, %v230, 0
        %v327 = vsel %vm277, %v231, 0
        %v330 = vsel %vm277, %v232, 0
        %v333 = vsel %vm277, %v233, 0
        %335 = vmatprep.subr.mxu0 0.0
        %v336 = vand.u32 %v276, 4294901760
        %337 = vmatpush1.msra.mxu0 %v336
        %338 = vmatprep.subr.mxu0 0.0
        %339 = vmatpush1.msra.mxu0 0.0
        %340 = vmatprep.subr.mxu0 0.0
        %341 = vmatpush1.msra.mxu0 0.0
        %342 = vmatprep.subr.mxu0 0.0
        %343 = vmatpush1.msra.mxu0 0.0
        %344 = vmatprep.subr.mxu0 0.0
        %345 = vmatpush1.msra.mxu0 0.0
        %346 = vmatprep.subr.mxu0 0.0
        %347 = vmatpush1.msra.mxu0 0.0
        %348 = vmatprep.subr.mxu0 0.0
        %349 = vmatpush1.msra.mxu0 0.0
        %350 = vmatprep.subr.mxu0 0.0
        %351 = vmatpush1.msra.mxu0 0.0
        %352 = vmatprep.subr.mxu0 0.0
        %353 = vmatpush1.msra.mxu0 0.0
        %354 = vmatprep.subr.mxu0 0.0
        %355 = vmatpush1.msra.mxu0 0.0
        %356 = vmatprep.subr.mxu0 0.0
        %357 = vmatpush1.msra.mxu0 0.0
        %358 = vmatprep.subr.mxu0 0.0
        %359 = vmatpush1.msra.mxu0 0.0
        %360 = vmatprep.subr.mxu0 0.0
        %361 = vmatpush1.msra.mxu0 0.0
        %362 = vmatprep.subr.mxu0 0.0
        %363 = vmatpush1.msra.mxu0 0.0
        %364 = vmatprep.subr.mxu0 0.0
        %365 = vmatpush1.msra.mxu0 0.0
        %366 = vmatprep.subr.mxu0 0.0
        %367 = vmatpush1.msra.mxu0 0.0
        %368 = vmatprep.subr.mxu0 0.0
        %369 = vmatpush1.msra.mxu0 0.0
        %370 = vmatprep.subr.mxu0 0.0
        %371 = vmatpush1.msra.mxu0 0.0
        %372 = vmatprep.subr.mxu0 0.0
        %373 = vmatpush1.msra.mxu0 0.0
        %374 = vmatprep.subr.mxu0 0.0
        %375 = vmatpush1.msra.mxu0 0.0
        %376 = vmatprep.subr.mxu0 0.0
        %377 = vmatpush1.msra.mxu0 0.0
        %378 = vmatprep.subr.mxu0 0.0
        %379 = vmatpush1.msra.mxu0 0.0
        %380 = vmatprep.subr.mxu0 0.0
        %381 = vmatpush1.msra.mxu0 0.0
        %382 = vmatprep.subr.mxu0 0.0
        %383 = vmatpush1.msra.mxu0 0.0
        %384 = vmatprep.subr.mxu0 0.0
        %385 = vmatpush1.msra.mxu0 0.0
        %386 = vmatprep.subr.mxu0 0.0
        %387 = vmatpush1.msra.mxu0 0.0
        %388 = vmatprep.subr.mxu0 0.0
        %389 = vmatpush1.msra.mxu0 0.0
        %390 = vmatprep.subr.mxu0 0.0
        %391 = vmatpush1.msra.mxu0 0.0
        %392 = vmatprep.subr.mxu0 0.0
        %393 = vmatpush1.msra.mxu0 0.0
        %394 = vmatprep.subr.mxu0 0.0
        %395 = vmatpush1.msra.mxu0 0.0
        %396 = vmatprep.subr.mxu0 0.0
        %397 = vmatpush1.msra.mxu0 0.0
        %398 = vmatprep.subr.mxu0 0.0
        %399 = vmatpush1.msra.mxu0 0.0
        %400 = vmatprep.mubr.f32.mxu0 0.0
        %v401 = vand.u32 %v279, 4294901760
        %v402 = vsub.f32 %v279, %v401
        %v403 = vand.u32 %v402, 4294901760
        %v404 = vsub.f32 %v402, %v403
        %v405 = vand.u32 %v404, 4294901760
        %406 = vmatmul.mubr.f32.gmra.mrb[0].mxu0 %v405
        %v407 = vpop.f32.mrb[0].mxu0
        %v408 = vadd.f32 0.0, %v407
        %v409 = vpop.f32.mrb[0].mxu0
        %410 = vmatprep.mubr.f32.mxu0 0.0
        %v411 = vand.u32 %v282, 4294901760
        %v412 = vsub.f32 %v282, %v411
        %v413 = vand.u32 %v412, 4294901760
        %v414 = vsub.f32 %v412, %v413
        %v415 = vand.u32 %v414, 4294901760
        %416 = vmatmul.mubr.f32.gmra.mrb[0].mxu0 %v415
        %v417 = vpop.f32.mrb[0].mxu0
        %v418 = vadd.f32 0.0, %v417
        %v419 = vpop.f32.mrb[0].mxu0
        %420 = vmatprep.mubr.f32.mxu0 0.0
        %v421 = vand.u32 %v285, 4294901760
        %v422 = vsub.f32 %v285, %v421
        %v423 = vand.u32 %v422, 4294901760
        %v424 = vsub.f32 %v422, %v423
        %v425 = vand.u32 %v424, 4294901760
        %426 = vmatmul.mubr.f32.gmra.mrb[0].mxu0 %v425
        %v427 = vpop.f32.mrb[0].mxu0
        %v428 = vadd.f32 0.0, %v427
        %v429 = vpop.f32.mrb[0].mxu0
        %430 = vmatprep.mubr.f32.mxu0 0.0
        %v431 = vand.u32 %v288, 4294901760
        %v432 = vsub.f32 %v288, %v431
        %v433 = vand.u32 %v432, 4294901760
        %v434 = vsub.f32 %v432, %v433
        %v435 = vand.u32 %v434, 4294901760
        %436 = vmatmul.mubr.f32.gmra.mrb[0].mxu0 %v435
        %v437 = vpop.f32.mrb[0].mxu0
        %v438 = vadd.f32 0.0, %v437
        %v439 = vpop.f32.mrb[0].mxu0
        %440 = vmatprep.mubr.f32.mxu0 0.0
        %v441 = vand.u32 %v291, 4294901760
        %v442 = vsub.f32 %v291, %v441
        %v443 = vand.u32 %v442, 4294901760
        %v444 = vsub.f32 %v442, %v443
        %v445 = vand.u32 %v444, 4294901760
        %446 = vmatmul.mubr.f32.gmra.mrb[0].mxu0 %v445
        %v447 = vpop.f32.mrb[0].mxu0
        %v448 = vadd.f32 0.0, %v447
        %v449 = vpop.f32.mrb[0].mxu0
        %450 = vmatprep.mubr.f32.mxu0 0.0
        %v451 = vand.u32 %v294, 4294901760
        %v452 = vsub.f32 %v294, %v451
        %v453 = vand.u32 %v452, 4294901760
        %v454 = vsub.f32 %v452, %v453
        %v455 = vand.u32 %v454, 4294901760
        %456 = vmatmul.mubr.f32.gmra.mrb[0].mxu0 %v455
        %v457 = vpop.f32.mrb[0].mxu0
        %v458 = vadd.f32 0.0, %v457
        %v459 = vpop.f32.mrb[0].mxu0
        %460 = vmatprep.mubr.f32.mxu0 0.0
        %v461 = vand.u32 %v297, 4294901760
        %v462 = vsub.f32 %v297, %v461
        %v463 = vand.u32 %v462, 4294901760
        %v464 = vsub.f32 %v462, %v463
        %v465 = vand.u32 %v464, 4294901760
        %466 = vmatmul.mubr.f32.gmra.mrb[0].mxu0 %v465
        %v467 = vpop.f32.mrb[0].mxu0
        %v468 = vadd.f32 0.0, %v467
        %v469 = vpop.f32.mrb[0].mxu0
        %470 = vmatprep.mubr.f32.mxu0 0.0
        %v471 = vand.u32 %v300, 4294901760
        %v472 = vsub.f32 %v300, %v471
        %v473 = vand.u32 %v472, 4294901760
        %v474 = vsub.f32 %v472, %v473
        %v475 = vand.u32 %v474, 4294901760
        %476 = vmatmul.mubr.f32.gmra.mrb[0].mxu0 %v475
        %v477 = vpop.f32.mrb[0].mxu0
        %v478 = vadd.f32 0.0, %v477
        %v479 = vpop.f32.mrb[0].mxu0
        %480 = vmatprep.mubr.f32.mxu0 0.0
        %v481 = vand.u32 %v303, 4294901760
        %v482 = vsub.f32 %v303, %v481
        %v483 = vand.u32 %v482, 4294901760
        %v484 = vsub.f32 %v482, %v483
        %v485 = vand.u32 %v484, 4294901760
        %486 = vmatmul.mubr.f32.gmra.mrb[0].mxu0 %v485
        %v487 = vpop.f32.mrb[0].mxu0
        %v488 = vadd.f32 0.0, %v487
        %v489 = vpop.f32.mrb[0].mxu0
        %490 = vmatprep.mubr.f32.mxu0 0.0
        %v491 = vand.u32 %v306, 4294901760
        %v492 = vsub.f32 %v306, %v491
        %v493 = vand.u32 %v492, 4294901760
        %v494 = vsub.f32 %v492, %v493
        %v495 = vand.u32 %v494, 4294901760
        %496 = vmatmul.mubr.f32.gmra.mrb[0].mxu0 %v495
        %v497 = vpop.f32.mrb[0].mxu0
        %v498 = vadd.f32 0.0, %v497
        %v499 = vpop.f32.mrb[0].mxu0
        %500 = vmatprep.mubr.f32.mxu0 0.0
        %v501 = vand.u32 %v309, 4294901760
        %v502 = vsub.f32 %v309, %v501
        %v503 = vand.u32 %v502, 4294901760
        %v504 = vsub.f32 %v502, %v503
        %v505 = vand.u32 %v504, 4294901760
        %506 = vmatmul.mubr.f32.gmra.mrb[0].mxu0 %v505
        %v507 = vpop.f32.mrb[0].mxu0
        %v508 = vadd.f32 0.0, %v507
        %v509 = vpop.f32.mrb[0].mxu0
        %510 = vmatprep.mubr.f32.mxu0 0.0
        %v511 = vand.u32 %v312, 4294901760
        %v512 = vsub.f32 %v312, %v511
        %v513 = vand.u32 %v512, 4294901760
        %v514 = vsub.f32 %v512, %v513
        %v515 = vand.u32 %v514, 4294901760
        %516 = vmatmul.mubr.f32.gmra.mrb[0].mxu0 %v515
        %v517 = vpop.f32.mrb[0].mxu0
        %v518 = vadd.f32 0.0, %v517
        %v519 = vpop.f32.mrb[0].mxu0
        %520 = vmatprep.mubr.f32.mxu0 0.0
        %v521 = vand.u32 %v315, 4294901760
        %v522 = vsub.f32 %v315, %v521
        %v523 = vand.u32 %v522, 4294901760
        %v524 = vsub.f32 %v522, %v523
        %v525 = vand.u32 %v524, 4294901760
        %526 = vmatmul.mubr.f32.gmra.mrb[0].mxu0 %v525
        %v527 = vpop.f32.mrb[0].mxu0
        %v528 = vadd.f32 0.0, %v527
        %v529 = vpop.f32.mrb[0].mxu0
        %530 = vmatprep.mubr.f32.mxu0 0.0
        %v531 = vand.u32 %v318, 4294901760
        %v532 = vsub.f32 %v318, %v531
        %v533 = vand.u32 %v532, 4294901760
        %v534 = vsub.f32 %v532, %v533
        %v535 = vand.u32 %v534, 4294901760
        %536 = vmatmul.mubr.f32.gmra.mrb[0].mxu0 %v535
        %v537 = vpop.f32.mrb[0].mxu0
        %v538 = vadd.f32 0.0, %v537
        %v539 = vpop.f32.mrb[0].mxu0
        %540 = vmatprep.mubr.f32.mxu0 0.0
        %v541 = vand.u32 %v321, 4294901760
        %v542 = vsub.f32 %v321, %v541
        %v543 = vand.u32 %v542, 4294901760
        %v544 = vsub.f32 %v542, %v543
        %v545 = vand.u32 %v544, 4294901760
        %546 = vmatmul.mubr.f32.gmra.mrb[0].mxu0 %v545
        %v547 = vpop.f32.mrb[0].mxu0
        %v548 = vadd.f32 0.0, %v547
        %v549 = vpop.f32.mrb[0].mxu0
        %550 = vmatprep.mubr.f32.mxu0 0.0
        %v551 = vand.u32 %v324, 4294901760
        %v552 = vsub.f32 %v324, %v551
        %v553 = vand.u32 %v552, 4294901760
        %v554 = vsub.f32 %v552, %v553
        %v555 = vand.u32 %v554, 4294901760
        %556 = vmatmul.mubr.f32.gmra.mrb[0].mxu0 %v555
        %v557 = vpop.f32.mrb[0].mxu0
        %v558 = vadd.f32 0.0, %v557
        %v559 = vpop.f32.mrb[0].mxu0
        %560 = vmatprep.mubr.f32.mxu0 0.0
        %v561 = vand.u32 %v327, 4294901760
        %v562 = vsub.f32 %v327, %v561
        %v563 = vand.u32 %v562, 4294901760
        %v564 = vsub.f32 %v562, %v563
        %v565 = vand.u32 %v564, 4294901760
        %566 = vmatmul.mubr.f32.gmra.mrb[0].mxu0 %v565
        %v567 = vpop.f32.mrb[0].mxu0
        %v568 = vadd.f32 0.0, %v567
        %v569 = vpop.f32.mrb[0].mxu0
        %570 = vmatprep.mubr.f32.mxu0 0.0
        %v571 = vand.u32 %v330, 4294901760
        %v572 = vsub.f32 %v330, %v571
        %v573 = vand.u32 %v572, 4294901760
        %v574 = vsub.f32 %v572, %v573
        %v575 = vand.u32 %v574, 4294901760
        %576 = vmatmul.mubr.f32.gmra.mrb[0].mxu0 %v575
        %v577 = vpop.f32.mrb[0].mxu0
        %v578 = vadd.f32 0.0, %v577
        %v579 = vpop.f32.mrb[0].mxu0
        %580 = vmatprep.mubr.f32.mxu0 0.0
        %v581 = vand.u32 %v333, 4294901760
        %v582 = vsub.f32 %v333, %v581
        %v583 = vand.u32 %v582, 4294901760
        %v584 = vsub.f32 %v582, %v583
        %v585 = vand.u32 %v584, 4294901760
        %586 = vmatmul.mubr.f32.gmra.mrb[0].mxu0 %v585
        %v587 = vpop.f32.mrb[0].mxu0
        %v588 = vadd.f32 0.0, %v587
        %v589 = vpop.f32.mrb[0].mxu0
        %590 = vdwg.mxu0
        %591 = vmatprep.subr.mxu0 0.0
        %v592 = vand.u32 %v276, 4294901760
        %v593 = vsub.f32 %v276, %v592
        %v594 = vand.u32 %v593, 4294901760
        %v595 = vsub.f32 %v593, %v594
        %v596 = vand.u32 %v595, 4294901760
        %597 = vmatpush1.msra.mxu0 %v596
        %598 = vmatprep.subr.mxu0 0.0
        %599 = vmatpush1.msra.mxu0 0.0
        %600 = vmatprep.subr.mxu0 0.0
        %601 = vmatpush1.msra.mxu0 0.0
        %602 = vmatprep.subr.mxu0 0.0
        %603 = vmatpush1.msra.mxu0 0.0
        %604 = vmatprep.subr.mxu0 0.0
        %605 = vmatpush1.msra.mxu0 0.0
        %606 = vmatprep.subr.mxu0 0.0
        %607 = vmatpush1.msra.mxu0 0.0
        %608 = vmatprep.subr.mxu0 0.0
        %609 = vmatpush1.msra.mxu0 0.0
        %610 = vmatprep.subr.mxu0 0.0
        %611 = vmatpush1.msra.mxu0 0.0
        %612 = vmatprep.subr.mxu0 0.0
        %613 = vmatpush1.msra.mxu0 0.0
        %614 = vmatprep.subr.mxu0 0.0
        %615 = vmatpush1.msra.mxu0 0.0
        %616 = vmatprep.subr.mxu0 0.0
        %617 = vmatpush1.msra.mxu0 0.0
        %618 = vmatprep.subr.mxu0 0.0
        %619 = vmatpush1.msra.mxu0 0.0
        %620 = vmatprep.subr.mxu0 0.0
        %621 = vmatpush1.msra.mxu0 0.0
        %622 = vmatprep.subr.mxu0 0.0
        %623 = vmatpush1.msra.mxu0 0.0
        %624 = vmatprep.subr.mxu0 0.0
        %625 = vmatpush1.msra.mxu0 0.0
        %626 = vmatprep.subr.mxu0 0.0
        %627 = vmatpush1.msra.mxu0 0.0
        %628 = vmatprep.subr.mxu0 0.0
        %629 = vmatpush1.msra.mxu0 0.0
        %630 = vmatprep.subr.mxu0 0.0
        %631 = vmatpush1.msra.mxu0 0.0
        %632 = vmatprep.subr.mxu0 0.0
        %633 = vmatpush1.msra.mxu0 0.0
        %634 = vmatprep.subr.mxu0 0.0
        %635 = vmatpush1.msra.mxu0 0.0
        %636 = vmatprep.subr.mxu0 0.0
        %637 = vmatpush1.msra.mxu0 0.0
        %638 = vmatprep.subr.mxu0 0.0
        %639 = vmatpush1.msra.mxu0 0.0
        %640 = vmatprep.subr.mxu0 0.0
        %641 = vmatpush1.msra.mxu0 0.0
        %642 = vmatprep.subr.mxu0 0.0
        %643 = vmatpush1.msra.mxu0 0.0
        %644 = vmatprep.subr.mxu0 0.0
        %645 = vmatpush1.msra.mxu0 0.0
        %646 = vmatprep.subr.mxu0 0.0
        %647 = vmatpush1.msra.mxu0 0.0
        %648 = vmatprep.subr.mxu0 0.0
        %649 = vmatpush1.msra.mxu0 0.0
        %650 = vmatprep.subr.mxu0 0.0
        %651 = vmatpush1.msra.mxu0 0.0
        %652 = vmatprep.subr.mxu0 0.0
        %653 = vmatpush1.msra.mxu0 0.0
        %654 = vmatprep.subr.mxu0 0.0
        %655 = vmatpush1.msra.mxu0 0.0
        %656 = vmatprep.subr.mxu0 0.0
        %657 = vmatpush1.msra.mxu0 0.0
        %658 = vmatprep.subr.mxu0 0.0
        %659 = vmatpush1.msra.mxu0 0.0
        %660 = vmatprep.mubr.f32.mxu0 0.0
        %v661 = vand.u32 %v279, 4294901760
        %662 = vmatmul.mubr.f32.gmra.mrb[0].mxu0 %v661
        %v663 = vpop.f32.mrb[0].mxu0
        %v664 = vadd.f32 %v408, %v663
        %v665 = vpop.f32.mrb[0].mxu0
        %666 = vmatprep.mubr.f32.mxu0 0.0
        %v667 = vand.u32 %v282, 4294901760
        %668 = vmatmul.mubr.f32.gmra.mrb[0].mxu0 %v667
        %v669 = vpop.f32.mrb[0].mxu0
        %v670 = vadd.f32 %v418, %v669
        %v671 = vpop.f32.mrb[0].mxu0
        %672 = vmatprep.mubr.f32.mxu0 0.0
        %v673 = vand.u32 %v285, 4294901760
        %674 = vmatmul.mubr.f32.gmra.mrb[0].mxu0 %v673
        %v675 = vpop.f32.mrb[0].mxu0
        %v676 = vadd.f32 %v428, %v675
        %v677 = vpop.f32.mrb[0].mxu0
        %678 = vmatprep.mubr.f32.mxu0 0.0
        %v679 = vand.u32 %v288, 4294901760
        %680 = vmatmul.mubr.f32.gmra.mrb[0].mxu0 %v679
        %v681 = vpop.f32.mrb[0].mxu0
        %v682 = vadd.f32 %v438, %v681
        %v683 = vpop.f32.mrb[0].mxu0
        %684 = vmatprep.mubr.f32.mxu0 0.0
        %v685 = vand.u32 %v291, 4294901760
        %686 = vmatmul.mubr.f32.gmra.mrb[0].mxu0 %v685
        %v687 = vpop.f32.mrb[0].mxu0
        %v688 = vadd.f32 %v448, %v687
        %v689 = vpop.f32.mrb[0].mxu0
        %690 = vmatprep.mubr.f32.mxu0 0.0
        %v691 = vand.u32 %v294, 4294901760
        %692 = vmatmul.mubr.f32.gmra.mrb[0].mxu0 %v691
        %v693 = vpop.f32.mrb[0].mxu0
        %v694 = vadd.f32 %v458, %v693
        %v695 = vpop.f32.mrb[0].mxu0
        %696 = vmatprep.mubr.f32.mxu0 0.0
        %v697 = vand.u32 %v297, 4294901760
        %698 = vmatmul.mubr.f32.gmra.mrb[0].mxu0 %v697
        %v699 = vpop.f32.mrb[0].mxu0
        %v700 = vadd.f32 %v468, %v699
        %v701 = vpop.f32.mrb[0].mxu0
        %702 = vmatprep.mubr.f32.mxu0 0.0
        %v703 = vand.u32 %v300, 4294901760
        %704 = vmatmul.mubr.f32.gmra.mrb[0].mxu0 %v703
        %v705 = vpop.f32.mrb[0].mxu0
        %v706 = vadd.f32 %v478, %v705
        %v707 = vpop.f32.mrb[0].mxu0
        %708 = vmatprep.mubr.f32.mxu0 0.0
        %v709 = vand.u32 %v303, 4294901760
        %710 = vmatmul.mubr.f32.gmra.mrb[0].mxu0 %v709
        %v711 = vpop.f32.mrb[0].mxu0
        %v712 = vadd.f32 %v488, %v711
        %v713 = vpop.f32.mrb[0].mxu0
        %714 = vmatprep.mubr.f32.mxu0 0.0
        %v715 = vand.u32 %v306, 4294901760
        %716 = vmatmul.mubr.f32.gmra.mrb[0].mxu0 %v715
        %v717 = vpop.f32.mrb[0].mxu0
        %v718 = vadd.f32 %v498, %v717
        %v719 = vpop.f32.mrb[0].mxu0
        %720 = vmatprep.mubr.f32.mxu0 0.0
        %v721 = vand.u32 %v309, 4294901760
        %722 = vmatmul.mubr.f32.gmra.mrb[0].mxu0 %v721
        %v723 = vpop.f32.mrb[0].mxu0
        %v724 = vadd.f32 %v508, %v723
        %v725 = vpop.f32.mrb[0].mxu0
        %726 = vmatprep.mubr.f32.mxu0 0.0
        %v727 = vand.u32 %v312, 4294901760
        %728 = vmatmul.mubr.f32.gmra.mrb[0].mxu0 %v727
        %v729 = vpop.f32.mrb[0].mxu0
        %v730 = vadd.f32 %v518, %v729
        %v731 = vpop.f32.mrb[0].mxu0
        %732 = vmatprep.mubr.f32.mxu0 0.0
        %v733 = vand.u32 %v315, 4294901760
        %734 = vmatmul.mubr.f32.gmra.mrb[0].mxu0 %v733
        %v735 = vpop.f32.mrb[0].mxu0
        %v736 = vadd.f32 %v528, %v735
        %v737 = vpop.f32.mrb[0].mxu0
        %738 = vmatprep.mubr.f32.mxu0 0.0
        %v739 = vand.u32 %v318, 4294901760
        %740 = vmatmul.mubr.f32.gmra.mrb[0].mxu0 %v739
        %v741 = vpop.f32.mrb[0].mxu0
        %v742 = vadd.f32 %v538, %v741
        %v743 = vpop.f32.mrb[0].mxu0
        %744 = vmatprep.mubr.f32.mxu0 0.0
        %v745 = vand.u32 %v321, 4294901760
        %746 = vmatmul.mubr.f32.gmra.mrb[0].mxu0 %v745
        %v747 = vpop.f32.mrb[0].mxu0
        %v748 = vadd.f32 %v548, %v747
        %v749 = vpop.f32.mrb[0].mxu0
        %750 = vmatprep.mubr.f32.mxu0 0.0
        %v751 = vand.u32 %v324, 4294901760
        %752 = vmatmul.mubr.f32.gmra.mrb[0].mxu0 %v751
        %v753 = vpop.f32.mrb[0].mxu0
        %v754 = vadd.f32 %v558, %v753
        %v755 = vpop.f32.mrb[0].mxu0
        %756 = vmatprep.mubr.f32.mxu0 0.0
        %v757 = vand.u32 %v327, 4294901760
        %758 = vmatmul.mubr.f32.gmra.mrb[0].mxu0 %v757
        %v759 = vpop.f32.mrb[0].mxu0
        %v760 = vadd.f32 %v568, %v759
        %v761 = vpop.f32.mrb[0].mxu0
        %762 = vmatprep.mubr.f32.mxu0 0.0
        %v763 = vand.u32 %v330, 4294901760
        %764 = vmatmul.mubr.f32.gmra.mrb[0].mxu0 %v763
        %v765 = vpop.f32.mrb[0].mxu0
        %v766 = vadd.f32 %v578, %v765
        %v767 = vpop.f32.mrb[0].mxu0
        %768 = vmatprep.mubr.f32.mxu0 0.0
        %v769 = vand.u32 %v333, 4294901760
        %770 = vmatmul.mubr.f32.gmra.mrb[0].mxu0 %v769
        %v771 = vpop.f32.mrb[0].mxu0
        %v772 = vadd.f32 %v588, %v771
        %v773 = vpop.f32.mrb[0].mxu0
        %774 = vdwg.mxu0
        %775 = vmatprep.subr.mxu0 0.0
        %v776 = vand.u32 %v276, 4294901760
        %v777 = vsub.f32 %v276, %v776
        %778 = vmatpush1.msra.mxu0 %v777
        %779 = vmatprep.subr.mxu0 0.0
        %780 = vmatpush1.msra.mxu0 0.0
        %781 = vmatprep.subr.mxu0 0.0
        %782 = vmatpush1.msra.mxu0 0.0
        %783 = vmatprep.subr.mxu0 0.0
        %784 = vmatpush1.msra.mxu0 0.0
        %785 = vmatprep.subr.mxu0 0.0
        %786 = vmatpush1.msra.mxu0 0.0
        %787 = vmatprep.subr.mxu0 0.0
        %788 = vmatpush1.msra.mxu0 0.0
        %789 = vmatprep.subr.mxu0 0.0
        %790 = vmatpush1.msra.mxu0 0.0
        %791 = vmatprep.subr.mxu0 0.0
        %792 = vmatpush1.msra.mxu0 0.0
        %793 = vmatprep.subr.mxu0 0.0
        %794 = vmatpush1.msra.mxu0 0.0
        %795 = vmatprep.subr.mxu0 0.0
        %796 = vmatpush1.msra.mxu0 0.0
        %797 = vmatprep.subr.mxu0 0.0
        %798 = vmatpush1.msra.mxu0 0.0
        %799 = vmatprep.subr.mxu0 0.0
        %800 = vmatpush1.msra.mxu0 0.0
        %801 = vmatprep.subr.mxu0 0.0
        %802 = vmatpush1.msra.mxu0 0.0
        %803 = vmatprep.subr.mxu0 0.0
        %804 = vmatpush1.msra.mxu0 0.0
        %805 = vmatprep.subr.mxu0 0.0
        %806 = vmatpush1.msra.mxu0 0.0
        %807 = vmatprep.subr.mxu0 0.0
        %808 = vmatpush1.msra.mxu0 0.0
        %809 = vmatprep.subr.mxu0 0.0
        %810 = vmatpush1.msra.mxu0 0.0
        %811 = vmatprep.subr.mxu0 0.0
        %812 = vmatpush1.msra.mxu0 0.0
        %813 = vmatprep.subr.mxu0 0.0
        %814 = vmatpush1.msra.mxu0 0.0
        %815 = vmatprep.subr.mxu0 0.0
        %816 = vmatpush1.msra.mxu0 0.0
        %817 = vmatprep.subr.mxu0 0.0
        %818 = vmatpush1.msra.mxu0 0.0
        %819 = vmatprep.subr.mxu0 0.0
        %820 = vmatpush1.msra.mxu0 0.0
        %821 = vmatprep.subr.mxu0 0.0
        %822 = vmatpush1.msra.mxu0 0.0
        %823 = vmatprep.subr.mxu0 0.0
        %824 = vmatpush1.msra.mxu0 0.0
        %825 = vmatprep.subr.mxu0 0.0
        %826 = vmatpush1.msra.mxu0 0.0
        %827 = vmatprep.subr.mxu0 0.0
        %828 = vmatpush1.msra.mxu0 0.0
        %829 = vmatprep.subr.mxu0 0.0
        %830 = vmatpush1.msra.mxu0 0.0
        %831 = vmatprep.subr.mxu0 0.0
        %832 = vmatpush1.msra.mxu0 0.0
        %833 = vmatprep.subr.mxu0 0.0
        %834 = vmatpush1.msra.mxu0 0.0
        %835 = vmatprep.subr.mxu0 0.0
        %836 = vmatpush1.msra.mxu0 0.0
        %837 = vmatprep.subr.mxu0 0.0
        %838 = vmatpush1.msra.mxu0 0.0
        %839 = vmatprep.subr.mxu0 0.0
        %840 = vmatpush1.msra.mxu0 0.0
        %841 = vmatprep.mubr.f32.mxu0 0.0
        %v842 = vand.u32 %v279, 4294901760
        %v843 = vsub.f32 %v279, %v842
        %844 = vmatmul.mubr.f32.gmra.mrb[0].mxu0 %v843
        %v845 = vpop.f32.mrb[0].mxu0
        %v846 = vadd.f32 %v664, %v845
        %v847 = vpop.f32.mrb[0].mxu0
        %848 = vmatprep.mubr.f32.mxu0 0.0
        %v849 = vand.u32 %v282, 4294901760
        %v850 = vsub.f32 %v282, %v849
        %851 = vmatmul.mubr.f32.gmra.mrb[0].mxu0 %v850
        %v852 = vpop.f32.mrb[0].mxu0
        %v853 = vadd.f32 %v670, %v852
        %v854 = vpop.f32.mrb[0].mxu0
        %855 = vmatprep.mubr.f32.mxu0 0.0
        %v856 = vand.u32 %v285, 4294901760
        %v857 = vsub.f32 %v285, %v856
        %858 = vmatmul.mubr.f32.gmra.mrb[0].mxu0 %v857
        %v859 = vpop.f32.mrb[0].mxu0
        %v860 = vadd.f32 %v676, %v859
        %v861 = vpop.f32.mrb[0].mxu0
        %862 = vmatprep.mubr.f32.mxu0 0.0
        %v863 = vand.u32 %v288, 4294901760
        %v864 = vsub.f32 %v288, %v863
        %865 = vmatmul.mubr.f32.gmra.mrb[0].mxu0 %v864
        %v866 = vpop.f32.mrb[0].mxu0
        %v867 = vadd.f32 %v682, %v866
        %v868 = vpop.f32.mrb[0].mxu0
        %869 = vmatprep.mubr.f32.mxu0 0.0
        %v870 = vand.u32 %v291, 4294901760
        %v871 = vsub.f32 %v291, %v870
        %872 = vmatmul.mubr.f32.gmra.mrb[0].mxu0 %v871
        %v873 = vpop.f32.mrb[0].mxu0
        %v874 = vadd.f32 %v688, %v873
        %v875 = vpop.f32.mrb[0].mxu0
        %876 = vmatprep.mubr.f32.mxu0 0.0
        %v877 = vand.u32 %v294, 4294901760
        %v878 = vsub.f32 %v294, %v877
        %879 = vmatmul.mubr.f32.gmra.mrb[0].mxu0 %v878
        %v880 = vpop.f32.mrb[0].mxu0
        %v881 = vadd.f32 %v694, %v880
        %v882 = vpop.f32.mrb[0].mxu0
        %883 = vmatprep.mubr.f32.mxu0 0.0
        %v884 = vand.u32 %v297, 4294901760
        %v885 = vsub.f32 %v297, %v884
        %886 = vmatmul.mubr.f32.gmra.mrb[0].mxu0 %v885
        %v887 = vpop.f32.mrb[0].mxu0
        %v888 = vadd.f32 %v700, %v887
        %v889 = vpop.f32.mrb[0].mxu0
        %890 = vmatprep.mubr.f32.mxu0 0.0
        %v891 = vand.u32 %v300, 4294901760
        %v892 = vsub.f32 %v300, %v891
        %893 = vmatmul.mubr.f32.gmra.mrb[0].mxu0 %v892
        %v894 = vpop.f32.mrb[0].mxu0
        %v895 = vadd.f32 %v706, %v894
        %v896 = vpop.f32.mrb[0].mxu0
        %897 = vmatprep.mubr.f32.mxu0 0.0
        %v898 = vand.u32 %v303, 4294901760
        %v899 = vsub.f32 %v303, %v898
        %900 = vmatmul.mubr.f32.gmra.mrb[0].mxu0 %v899
        %v901 = vpop.f32.mrb[0].mxu0
        %v902 = vadd.f32 %v712, %v901
        %v903 = vpop.f32.mrb[0].mxu0
        %904 = vmatprep.mubr.f32.mxu0 0.0
        %v905 = vand.u32 %v306, 4294901760
        %v906 = vsub.f32 %v306, %v905
        %907 = vmatmul.mubr.f32.gmra.mrb[0].mxu0 %v906
        %v908 = vpop.f32.mrb[0].mxu0
        %v909 = vadd.f32 %v718, %v908
        %v910 = vpop.f32.mrb[0].mxu0
        %911 = vmatprep.mubr.f32.mxu0 0.0
        %v912 = vand.u32 %v309, 4294901760
        %v913 = vsub.f32 %v309, %v912
        %914 = vmatmul.mubr.f32.gmra.mrb[0].mxu0 %v913
        %v915 = vpop.f32.mrb[0].mxu0
        %v916 = vadd.f32 %v724, %v915
        %v917 = vpop.f32.mrb[0].mxu0
        %918 = vmatprep.mubr.f32.mxu0 0.0
        %v919 = vand.u32 %v312, 4294901760
        %v920 = vsub.f32 %v312, %v919
        %921 = vmatmul.mubr.f32.gmra.mrb[0].mxu0 %v920
        %v922 = vpop.f32.mrb[0].mxu0
        %v923 = vadd.f32 %v730, %v922
        %v924 = vpop.f32.mrb[0].mxu0
        %925 = vmatprep.mubr.f32.mxu0 0.0
        %v926 = vand.u32 %v315, 4294901760
        %v927 = vsub.f32 %v315, %v926
        %928 = vmatmul.mubr.f32.gmra.mrb[0].mxu0 %v927
        %v929 = vpop.f32.mrb[0].mxu0
        %v930 = vadd.f32 %v736, %v929
        %v931 = vpop.f32.mrb[0].mxu0
        %932 = vmatprep.mubr.f32.mxu0 0.0
        %v933 = vand.u32 %v318, 4294901760
        %v934 = vsub.f32 %v318, %v933
        %935 = vmatmul.mubr.f32.gmra.mrb[0].mxu0 %v934
        %v936 = vpop.f32.mrb[0].mxu0
        %v937 = vadd.f32 %v742, %v936
        %v938 = vpop.f32.mrb[0].mxu0
        %939 = vmatprep.mubr.f32.mxu0 0.0
        %v940 = vand.u32 %v321, 4294901760
        %v941 = vsub.f32 %v321, %v940
        %942 = vmatmul.mubr.f32.gmra.mrb[0].mxu0 %v941
        %v943 = vpop.f32.mrb[0].mxu0
        %v944 = vadd.f32 %v748, %v943
        %v945 = vpop.f32.mrb[0].mxu0
        %946 = vmatprep.mubr.f32.mxu0 0.0
        %v947 = vand.u32 %v324, 4294901760
        %v948 = vsub.f32 %v324, %v947
        %949 = vmatmul.mubr.f32.gmra.mrb[0].mxu0 %v948
        %v950 = vpop.f32.mrb[0].mxu0
        %v951 = vadd.f32 %v754, %v950
        %v952 = vpop.f32.mrb[0].mxu0
        %953 = vmatprep.mubr.f32.mxu0 0.0
        %v954 = vand.u32 %v327, 4294901760
        %v955 = vsub.f32 %v327, %v954
        %956 = vmatmul.mubr.f32.gmra.mrb[0].mxu0 %v955
        %v957 = vpop.f32.mrb[0].mxu0
        %v958 = vadd.f32 %v760, %v957
        %v959 = vpop.f32.mrb[0].mxu0
        %960 = vmatprep.mubr.f32.mxu0 0.0
        %v961 = vand.u32 %v330, 4294901760
        %v962 = vsub.f32 %v330, %v961
        %963 = vmatmul.mubr.f32.gmra.mrb[0].mxu0 %v962
        %v964 = vpop.f32.mrb[0].mxu0
        %v965 = vadd.f32 %v766, %v964
        %v966 = vpop.f32.mrb[0].mxu0
        %967 = vmatprep.mubr.f32.mxu0 0.0
        %v968 = vand.u32 %v333, 4294901760
        %v969 = vsub.f32 %v333, %v968
        %970 = vmatmul.mubr.f32.gmra.mrb[0].mxu0 %v969
        %v971 = vpop.f32.mrb[0].mxu0
        %v972 = vadd.f32 %v772, %v971
        %v973 = vpop.f32.mrb[0].mxu0
        %974 = vdwg.mxu0
        %975 = vmatprep.subr.mxu0 0.0
        %v976 = vand.u32 %v276, 4294901760
        %977 = vmatpush1.msra.mxu0 %v976
        %978 = vmatprep.subr.mxu0 0.0
        %979 = vmatpush1.msra.mxu0 0.0
        %980 = vmatprep.subr.mxu0 0.0
        %981 = vmatpush1.msra.mxu0 0.0
        %982 = vmatprep.subr.mxu0 0.0
        %983 = vmatpush1.msra.mxu0 0.0
        %984 = vmatprep.subr.mxu0 0.0
        %985 = vmatpush1.msra.mxu0 0.0
        %986 = vmatprep.subr.mxu0 0.0
        %987 = vmatpush1.msra.mxu0 0.0
        %988 = vmatprep.subr.mxu0 0.0
        %989 = vmatpush1.msra.mxu0 0.0
        %990 = vmatprep.subr.mxu0 0.0
        %991 = vmatpush1.msra.mxu0 0.0
        %992 = vmatprep.subr.mxu0 0.0
        %993 = vmatpush1.msra.mxu0 0.0
        %994 = vmatprep.subr.mxu0 0.0
        %995 = vmatpush1.msra.mxu0 0.0
        %996 = vmatprep.subr.mxu0 0.0
        %997 = vmatpush1.msra.mxu0 0.0
        %998 = vmatprep.subr.mxu0 0.0
        %999 = vmatpush1.msra.mxu0 0.0
        %1000 = vmatprep.subr.mxu0 0.0
        %1001 = vmatpush1.msra.mxu0 0.0
        %1002 = vmatprep.subr.mxu0 0.0
        %1003 = vmatpush1.msra.mxu0 0.0
        %1004 = vmatprep.subr.mxu0 0.0
        %1005 = vmatpush1.msra.mxu0 0.0
        %1006 = vmatprep.subr.mxu0 0.0
        %1007 = vmatpush1.msra.mxu0 0.0
        %1008 = vmatprep.subr.mxu0 0.0
        %1009 = vmatpush1.msra.mxu0 0.0
        %1010 = vmatprep.subr.mxu0 0.0
        %1011 = vmatpush1.msra.mxu0 0.0
        %1012 = vmatprep.subr.mxu0 0.0
        %1013 = vmatpush1.msra.mxu0 0.0
        %1014 = vmatprep.subr.mxu0 0.0
        %1015 = vmatpush1.msra.mxu0 0.0
        %1016 = vmatprep.subr.mxu0 0.0
        %1017 = vmatpush1.msra.mxu0 0.0
        %1018 = vmatprep.subr.mxu0 0.0
        %1019 = vmatpush1.msra.mxu0 0.0
        %1020 = vmatprep.subr.mxu0 0.0
        %1021 = vmatpush1.msra.mxu0 0.0
        %1022 = vmatprep.subr.mxu0 0.0
        %1023 = vmatpush1.msra.mxu0 0.0
        %1024 = vmatprep.subr.mxu0 0.0
        %1025 = vmatpush1.msra.mxu0 0.0
        %1026 = vmatprep.subr.mxu0 0.0
        %1027 = vmatpush1.msra.mxu0 0.0
        %1028 = vmatprep.subr.mxu0 0.0
        %1029 = vmatpush1.msra.mxu0 0.0
        %1030 = vmatprep.subr.mxu0 0.0
        %1031 = vmatpush1.msra.mxu0 0.0
        %1032 = vmatprep.subr.mxu0 0.0
        %1033 = vmatpush1.msra.mxu0 0.0
        %1034 = vmatprep.subr.mxu0 0.0
        %1035 = vmatpush1.msra.mxu0 0.0
        %1036 = vmatprep.subr.mxu0 0.0
        %1037 = vmatpush1.msra.mxu0 0.0
        %1038 = vmatprep.subr.mxu0 0.0
        %1039 = vmatpush1.msra.mxu0 0.0
        %1040 = vmatprep.mubr.f32.mxu0 0.0
        %v1041 = vand.u32 %v279, 4294901760
        %v1042 = vsub.f32 %v279, %v1041
        %v1043 = vand.u32 %v1042, 4294901760
        %1044 = vmatmul.mubr.f32.gmra.mrb[0].mxu0 %v1043
        %v1045 = vpop.f32.mrb[0].mxu0
        %v1046 = vadd.f32 %v846, %v1045
        %v1047 = vpop.f32.mrb[0].mxu0
        %1048 = vmatprep.mubr.f32.mxu0 0.0
        %v1049 = vand.u32 %v282, 4294901760
        %v1050 = vsub.f32 %v282, %v1049
        %v1051 = vand.u32 %v1050, 4294901760
        %1052 = vmatmul.mubr.f32.gmra.mrb[0].mxu0 %v1051
        %v1053 = vpop.f32.mrb[0].mxu0
        %v1054 = vadd.f32 %v853, %v1053
        %v1055 = vpop.f32.mrb[0].mxu0
        %1056 = vmatprep.mubr.f32.mxu0 0.0
        %v1057 = vand.u32 %v285, 4294901760
        %v1058 = vsub.f32 %v285, %v1057
        %v1059 = vand.u32 %v1058, 4294901760
        %1060 = vmatmul.mubr.f32.gmra.mrb[0].mxu0 %v1059
        %v1061 = vpop.f32.mrb[0].mxu0
        %v1062 = vadd.f32 %v860, %v1061
        %v1063 = vpop.f32.mrb[0].mxu0
        %1064 = vmatprep.mubr.f32.mxu0 0.0
        %v1065 = vand.u32 %v288, 4294901760
        %v1066 = vsub.f32 %v288, %v1065
        %v1067 = vand.u32 %v1066, 4294901760
        %1068 = vmatmul.mubr.f32.gmra.mrb[0].mxu0 %v1067
        %v1069 = vpop.f32.mrb[0].mxu0
        %v1070 = vadd.f32 %v867, %v1069
        %v1071 = vpop.f32.mrb[0].mxu0
        %1072 = vmatprep.mubr.f32.mxu0 0.0
        %v1073 = vand.u32 %v291, 4294901760
        %v1074 = vsub.f32 %v291, %v1073
        %v1075 = vand.u32 %v1074, 4294901760
        %1076 = vmatmul.mubr.f32.gmra.mrb[0].mxu0 %v1075
        %v1077 = vpop.f32.mrb[0].mxu0
        %v1078 = vadd.f32 %v874, %v1077
        %v1079 = vpop.f32.mrb[0].mxu0
        %1080 = vmatprep.mubr.f32.mxu0 0.0
        %v1081 = vand.u32 %v294, 4294901760
        %v1082 = vsub.f32 %v294, %v1081
        %v1083 = vand.u32 %v1082, 4294901760
        %1084 = vmatmul.mubr.f32.gmra.mrb[0].mxu0 %v1083
        %v1085 = vpop.f32.mrb[0].mxu0
        %v1086 = vadd.f32 %v881, %v1085
        %v1087 = vpop.f32.mrb[0].mxu0
        %1088 = vmatprep.mubr.f32.mxu0 0.0
        %v1089 = vand.u32 %v297, 4294901760
        %v1090 = vsub.f32 %v297, %v1089
        %v1091 = vand.u32 %v1090, 4294901760
        %1092 = vmatmul.mubr.f32.gmra.mrb[0].mxu0 %v1091
        %v1093 = vpop.f32.mrb[0].mxu0
        %v1094 = vadd.f32 %v888, %v1093
        %v1095 = vpop.f32.mrb[0].mxu0
        %1096 = vmatprep.mubr.f32.mxu0 0.0
        %v1097 = vand.u32 %v300, 4294901760
        %v1098 = vsub.f32 %v300, %v1097
        %v1099 = vand.u32 %v1098, 4294901760
        %1100 = vmatmul.mubr.f32.gmra.mrb[0].mxu0 %v1099
        %v1101 = vpop.f32.mrb[0].mxu0
        %v1102 = vadd.f32 %v895, %v1101
        %v1103 = vpop.f32.mrb[0].mxu0
        %1104 = vmatprep.mubr.f32.mxu0 0.0
        %v1105 = vand.u32 %v303, 4294901760
        %v1106 = vsub.f32 %v303, %v1105
        %v1107 = vand.u32 %v1106, 4294901760
        %1108 = vmatmul.mubr.f32.gmra.mrb[0].mxu0 %v1107
        %v1109 = vpop.f32.mrb[0].mxu0
        %v1110 = vadd.f32 %v902, %v1109
        %v1111 = vpop.f32.mrb[0].mxu0
        %1112 = vmatprep.mubr.f32.mxu0 0.0
        %v1113 = vand.u32 %v306, 4294901760
        %v1114 = vsub.f32 %v306, %v1113
        %v1115 = vand.u32 %v1114, 4294901760
        %1116 = vmatmul.mubr.f32.gmra.mrb[0].mxu0 %v1115
        %v1117 = vpop.f32.mrb[0].mxu0
        %v1118 = vadd.f32 %v909, %v1117
        %v1119 = vpop.f32.mrb[0].mxu0
        %1120 = vmatprep.mubr.f32.mxu0 0.0
        %v1121 = vand.u32 %v309, 4294901760
        %v1122 = vsub.f32 %v309, %v1121
        %v1123 = vand.u32 %v1122, 4294901760
        %1124 = vmatmul.mubr.f32.gmra.mrb[0].mxu0 %v1123
        %v1125 = vpop.f32.mrb[0].mxu0
        %v1126 = vadd.f32 %v916, %v1125
        %v1127 = vpop.f32.mrb[0].mxu0
        %1128 = vmatprep.mubr.f32.mxu0 0.0
        %v1129 = vand.u32 %v312, 4294901760
        %v1130 = vsub.f32 %v312, %v1129
        %v1131 = vand.u32 %v1130, 4294901760
        %1132 = vmatmul.mubr.f32.gmra.mrb[0].mxu0 %v1131
        %v1133 = vpop.f32.mrb[0].mxu0
        %v1134 = vadd.f32 %v923, %v1133
        %v1135 = vpop.f32.mrb[0].mxu0
        %1136 = vmatprep.mubr.f32.mxu0 0.0
        %v1137 = vand.u32 %v315, 4294901760
        %v1138 = vsub.f32 %v315, %v1137
        %v1139 = vand.u32 %v1138, 4294901760
        %1140 = vmatmul.mubr.f32.gmra.mrb[0].mxu0 %v1139
        %v1141 = vpop.f32.mrb[0].mxu0
        %v1142 = vadd.f32 %v930, %v1141
        %v1143 = vpop.f32.mrb[0].mxu0
        %1144 = vmatprep.mubr.f32.mxu0 0.0
        %v1145 = vand.u32 %v318, 4294901760
        %v1146 = vsub.f32 %v318, %v1145
        %v1147 = vand.u32 %v1146, 4294901760
        %1148 = vmatmul.mubr.f32.gmra.mrb[0].mxu0 %v1147
        %v1149 = vpop.f32.mrb[0].mxu0
        %v1150 = vadd.f32 %v937, %v1149
        %v1151 = vpop.f32.mrb[0].mxu0
        %1152 = vmatprep.mubr.f32.mxu0 0.0
        %v1153 = vand.u32 %v321, 4294901760
        %v1154 = vsub.f32 %v321, %v1153
        %v1155 = vand.u32 %v1154, 4294901760
        %1156 = vmatmul.mubr.f32.gmra.mrb[0].mxu0 %v1155
        %v1157 = vpop.f32.mrb[0].mxu0
        %v1158 = vadd.f32 %v944, %v1157
        %v1159 = vpop.f32.mrb[0].mxu0
        %1160 = vmatprep.mubr.f32.mxu0 0.0
        %v1161 = vand.u32 %v324, 4294901760
        %v1162 = vsub.f32 %v324, %v1161
        %v1163 = vand.u32 %v1162, 4294901760
        %1164 = vmatmul.mubr.f32.gmra.mrb[0].mxu0 %v1163
        %v1165 = vpop.f32.mrb[0].mxu0
        %v1166 = vadd.f32 %v951, %v1165
        %v1167 = vpop.f32.mrb[0].mxu0
        %1168 = vmatprep.mubr.f32.mxu0 0.0
        %v1169 = vand.u32 %v327, 4294901760
        %v1170 = vsub.f32 %v327, %v1169
        %v1171 = vand.u32 %v1170, 4294901760
        %1172 = vmatmul.mubr.f32.gmra.mrb[0].mxu0 %v1171
        %v1173 = vpop.f32.mrb[0].mxu0
        %v1174 = vadd.f32 %v958, %v1173
        %v1175 = vpop.f32.mrb[0].mxu0
        %1176 = vmatprep.mubr.f32.mxu0 0.0
        %v1177 = vand.u32 %v330, 4294901760
        %v1178 = vsub.f32 %v330, %v1177
        %v1179 = vand.u32 %v1178, 4294901760
        %1180 = vmatmul.mubr.f32.gmra.mrb[0].mxu0 %v1179
        %v1181 = vpop.f32.mrb[0].mxu0
        %v1182 = vadd.f32 %v965, %v1181
        %v1183 = vpop.f32.mrb[0].mxu0
        %1184 = vmatprep.mubr.f32.mxu0 0.0
        %v1185 = vand.u32 %v333, 4294901760
        %v1186 = vsub.f32 %v333, %v1185
        %v1187 = vand.u32 %v1186, 4294901760
        %1188 = vmatmul.mubr.f32.gmra.mrb[0].mxu0 %v1187
        %v1189 = vpop.f32.mrb[0].mxu0
        %v1190 = vadd.f32 %v972, %v1189
        %v1191 = vpop.f32.mrb[0].mxu0
        %1192 = vdwg.mxu0
        %1193 = vmatprep.subr.mxu0 0.0
        %v1194 = vand.u32 %v276, 4294901760
        %v1195 = vsub.f32 %v276, %v1194
        %v1196 = vand.u32 %v1195, 4294901760
        %1197 = vmatpush1.msra.mxu0 %v1196
        %1198 = vmatprep.subr.mxu0 0.0
        %1199 = vmatpush1.msra.mxu0 0.0
        %1200 = vmatprep.subr.mxu0 0.0
        %1201 = vmatpush1.msra.mxu0 0.0
        %1202 = vmatprep.subr.mxu0 0.0
        %1203 = vmatpush1.msra.mxu0 0.0
        %1204 = vmatprep.subr.mxu0 0.0
        %1205 = vmatpush1.msra.mxu0 0.0
        %1206 = vmatprep.subr.mxu0 0.0
        %1207 = vmatpush1.msra.mxu0 0.0
        %1208 = vmatprep.subr.mxu0 0.0
        %1209 = vmatpush1.msra.mxu0 0.0
        %1210 = vmatprep.subr.mxu0 0.0
        %1211 = vmatpush1.msra.mxu0 0.0
        %1212 = vmatprep.subr.mxu0 0.0
        %1213 = vmatpush1.msra.mxu0 0.0
        %1214 = vmatprep.subr.mxu0 0.0
        %1215 = vmatpush1.msra.mxu0 0.0
        %1216 = vmatprep.subr.mxu0 0.0
        %1217 = vmatpush1.msra.mxu0 0.0
        %1218 = vmatprep.subr.mxu0 0.0
        %1219 = vmatpush1.msra.mxu0 0.0
        %1220 = vmatprep.subr.mxu0 0.0
        %1221 = vmatpush1.msra.mxu0 0.0
        %1222 = vmatprep.subr.mxu0 0.0
        %1223 = vmatpush1.msra.mxu0 0.0
        %1224 = vmatprep.subr.mxu0 0.0
        %1225 = vmatpush1.msra.mxu0 0.0
        %1226 = vmatprep.subr.mxu0 0.0
        %1227 = vmatpush1.msra.mxu0 0.0
        %1228 = vmatprep.subr.mxu0 0.0
        %1229 = vmatpush1.msra.mxu0 0.0
        %1230 = vmatprep.subr.mxu0 0.0
        %1231 = vmatpush1.msra.mxu0 0.0
        %1232 = vmatprep.subr.mxu0 0.0
        %1233 = vmatpush1.msra.mxu0 0.0
        %1234 = vmatprep.subr.mxu0 0.0
        %1235 = vmatpush1.msra.mxu0 0.0
        %1236 = vmatprep.subr.mxu0 0.0
        %1237 = vmatpush1.msra.mxu0 0.0
        %1238 = vmatprep.subr.mxu0 0.0
        %1239 = vmatpush1.msra.mxu0 0.0
        %1240 = vmatprep.subr.mxu0 0.0
        %1241 = vmatpush1.msra.mxu0 0.0
        %1242 = vmatprep.subr.mxu0 0.0
        %1243 = vmatpush1.msra.mxu0 0.0
        %1244 = vmatprep.subr.mxu0 0.0
        %1245 = vmatpush1.msra.mxu0 0.0
        %1246 = vmatprep.subr.mxu0 0.0
        %1247 = vmatpush1.msra.mxu0 0.0
        %1248 = vmatprep.subr.mxu0 0.0
        %1249 = vmatpush1.msra.mxu0 0.0
        %1250 = vmatprep.subr.mxu0 0.0
        %1251 = vmatpush1.msra.mxu0 0.0
        %1252 = vmatprep.subr.mxu0 0.0
        %1253 = vmatpush1.msra.mxu0 0.0
        %1254 = vmatprep.subr.mxu0 0.0
        %1255 = vmatpush1.msra.mxu0 0.0
        %1256 = vmatprep.subr.mxu0 0.0
        %1257 = vmatpush1.msra.mxu0 0.0
        %1258 = vmatprep.subr.mxu0 0.0
        %1259 = vmatpush1.msra.mxu0 0.0
        %1260 = vmatprep.mubr.f32.mxu0 0.0
        %v1261 = vand.u32 %v279, 4294901760
        %1262 = vmatmul.mubr.f32.gmra.mrb[0].mxu0 %v1261
        %v1263 = vpop.f32.mrb[0].mxu0
        %v1264 = vadd.f32 %v1046, %v1263
        %v1265 = vpop.f32.mrb[0].mxu0
        %1266 = vmatprep.mubr.f32.mxu0 0.0
        %v1267 = vand.u32 %v282, 4294901760
        %1268 = vmatmul.mubr.f32.gmra.mrb[0].mxu0 %v1267
        %v1269 = vpop.f32.mrb[0].mxu0
        %v1270 = vadd.f32 %v1054, %v1269
        %v1271 = vpop.f32.mrb[0].mxu0
        %1272 = vmatprep.mubr.f32.mxu0 0.0
        %v1273 = vand.u32 %v285, 4294901760
        %1274 = vmatmul.mubr.f32.gmra.mrb[0].mxu0 %v1273
        %v1275 = vpop.f32.mrb[0].mxu0
        %v1276 = vadd.f32 %v1062, %v1275
        %v1277 = vpop.f32.mrb[0].mxu0
        %1278 = vmatprep.mubr.f32.mxu0 0.0
        %v1279 = vand.u32 %v288, 4294901760
        %1280 = vmatmul.mubr.f32.gmra.mrb[0].mxu0 %v1279
        %v1281 = vpop.f32.mrb[0].mxu0
        %v1282 = vadd.f32 %v1070, %v1281
        %v1283 = vpop.f32.mrb[0].mxu0
        %1284 = vmatprep.mubr.f32.mxu0 0.0
        %v1285 = vand.u32 %v291, 4294901760
        %1286 = vmatmul.mubr.f32.gmra.mrb[0].mxu0 %v1285
        %v1287 = vpop.f32.mrb[0].mxu0
        %v1288 = vadd.f32 %v1078, %v1287
        %v1289 = vpop.f32.mrb[0].mxu0
        %1290 = vmatprep.mubr.f32.mxu0 0.0
        %v1291 = vand.u32 %v294, 4294901760
        %1292 = vmatmul.mubr.f32.gmra.mrb[0].mxu0 %v1291
        %v1293 = vpop.f32.mrb[0].mxu0
        %v1294 = vadd.f32 %v1086, %v1293
        %v1295 = vpop.f32.mrb[0].mxu0
        %1296 = vmatprep.mubr.f32.mxu0 0.0
        %v1297 = vand.u32 %v297, 4294901760
        %1298 = vmatmul.mubr.f32.gmra.mrb[0].mxu0 %v1297
        %v1299 = vpop.f32.mrb[0].mxu0
        %v1300 = vadd.f32 %v1094, %v1299
        %v1301 = vpop.f32.mrb[0].mxu0
        %1302 = vmatprep.mubr.f32.mxu0 0.0
        %v1303 = vand.u32 %v300, 4294901760
        %1304 = vmatmul.mubr.f32.gmra.mrb[0].mxu0 %v1303
        %v1305 = vpop.f32.mrb[0].mxu0
        %v1306 = vadd.f32 %v1102, %v1305
        %v1307 = vpop.f32.mrb[0].mxu0
        %1308 = vmatprep.mubr.f32.mxu0 0.0
        %v1309 = vand.u32 %v303, 4294901760
        %1310 = vmatmul.mubr.f32.gmra.mrb[0].mxu0 %v1309
        %v1311 = vpop.f32.mrb[0].mxu0
        %v1312 = vadd.f32 %v1110, %v1311
        %v1313 = vpop.f32.mrb[0].mxu0
        %1314 = vmatprep.mubr.f32.mxu0 0.0
        %v1315 = vand.u32 %v306, 4294901760
        %1316 = vmatmul.mubr.f32.gmra.mrb[0].mxu0 %v1315
        %v1317 = vpop.f32.mrb[0].mxu0
        %v1318 = vadd.f32 %v1118, %v1317
        %v1319 = vpop.f32.mrb[0].mxu0
        %1320 = vmatprep.mubr.f32.mxu0 0.0
        %v1321 = vand.u32 %v309, 4294901760
        %1322 = vmatmul.mubr.f32.gmra.mrb[0].mxu0 %v1321
        %v1323 = vpop.f32.mrb[0].mxu0
        %v1324 = vadd.f32 %v1126, %v1323
        %v1325 = vpop.f32.mrb[0].mxu0
        %1326 = vmatprep.mubr.f32.mxu0 0.0
        %v1327 = vand.u32 %v312, 4294901760
        %1328 = vmatmul.mubr.f32.gmra.mrb[0].mxu0 %v1327
        %v1329 = vpop.f32.mrb[0].mxu0
        %v1330 = vadd.f32 %v1134, %v1329
        %v1331 = vpop.f32.mrb[0].mxu0
        %1332 = vmatprep.mubr.f32.mxu0 0.0
        %v1333 = vand.u32 %v315, 4294901760
        %1334 = vmatmul.mubr.f32.gmra.mrb[0].mxu0 %v1333
        %v1335 = vpop.f32.mrb[0].mxu0
        %v1336 = vadd.f32 %v1142, %v1335
        %v1337 = vpop.f32.mrb[0].mxu0
        %1338 = vmatprep.mubr.f32.mxu0 0.0
        %v1339 = vand.u32 %v318, 4294901760
        %1340 = vmatmul.mubr.f32.gmra.mrb[0].mxu0 %v1339
        %v1341 = vpop.f32.mrb[0].mxu0
        %v1342 = vadd.f32 %v1150, %v1341
        %v1343 = vpop.f32.mrb[0].mxu0
        %1344 = vmatprep.mubr.f32.mxu0 0.0
        %v1345 = vand.u32 %v321, 4294901760
        %1346 = vmatmul.mubr.f32.gmra.mrb[0].mxu0 %v1345
        %v1347 = vpop.f32.mrb[0].mxu0
        %v1348 = vadd.f32 %v1158, %v1347
        %v1349 = vpop.f32.mrb[0].mxu0
        %1350 = vmatprep.mubr.f32.mxu0 0.0
        %v1351 = vand.u32 %v324, 4294901760
        %1352 = vmatmul.mubr.f32.gmra.mrb[0].mxu0 %v1351
        %v1353 = vpop.f32.mrb[0].mxu0
        %v1354 = vadd.f32 %v1166, %v1353
        %v1355 = vpop.f32.mrb[0].mxu0
        %1356 = vmatprep.mubr.f32.mxu0 0.0
        %v1357 = vand.u32 %v327, 4294901760
        %1358 = vmatmul.mubr.f32.gmra.mrb[0].mxu0 %v1357
        %v1359 = vpop.f32.mrb[0].mxu0
        %v1360 = vadd.f32 %v1174, %v1359
        %v1361 = vpop.f32.mrb[0].mxu0
        %1362 = vmatprep.mubr.f32.mxu0 0.0
        %v1363 = vand.u32 %v330, 4294901760
        %1364 = vmatmul.mubr.f32.gmra.mrb[0].mxu0 %v1363
        %v1365 = vpop.f32.mrb[0].mxu0
        %v1366 = vadd.f32 %v1182, %v1365
        %v1367 = vpop.f32.mrb[0].mxu0
        %1368 = vmatprep.mubr.f32.mxu0 0.0
        %v1369 = vand.u32 %v333, 4294901760
        %1370 = vmatmul.mubr.f32.gmra.mrb[0].mxu0 %v1369
        %v1371 = vpop.f32.mrb[0].mxu0
        %v1372 = vadd.f32 %v1190, %v1371
        %v1373 = vpop.f32.mrb[0].mxu0
        %1374 = vdwg.mxu0
        %1375 = vmatprep.subr.mxu0 0.0
        %v1376 = vand.u32 %v276, 4294901760
        %1377 = vmatpush1.msra.mxu0 %v1376
        %1378 = vmatprep.subr.mxu0 0.0
        %1379 = vmatpush1.msra.mxu0 0.0
        %1380 = vmatprep.subr.mxu0 0.0
        %1381 = vmatpush1.msra.mxu0 0.0
        %1382 = vmatprep.subr.mxu0 0.0
        %1383 = vmatpush1.msra.mxu0 0.0
        %1384 = vmatprep.subr.mxu0 0.0
        %1385 = vmatpush1.msra.mxu0 0.0
        %1386 = vmatprep.subr.mxu0 0.0
        %1387 = vmatpush1.msra.mxu0 0.0
        %1388 = vmatprep.subr.mxu0 0.0
        %1389 = vmatpush1.msra.mxu0 0.0
        %1390 = vmatprep.subr.mxu0 0.0
        %1391 = vmatpush1.msra.mxu0 0.0
        %1392 = vmatprep.subr.mxu0 0.0
        %1393 = vmatpush1.msra.mxu0 0.0
        %1394 = vmatprep.subr.mxu0 0.0
        %1395 = vmatpush1.msra.mxu0 0.0
        %1396 = vmatprep.subr.mxu0 0.0
        %1397 = vmatpush1.msra.mxu0 0.0
        %1398 = vmatprep.subr.mxu0 0.0
        %1399 = vmatpush1.msra.mxu0 0.0
        %1400 = vmatprep.subr.mxu0 0.0
        %1401 = vmatpush1.msra.mxu0 0.0
        %1402 = vmatprep.subr.mxu0 0.0
        %1403 = vmatpush1.msra.mxu0 0.0
        %1404 = vmatprep.subr.mxu0 0.0
        %1405 = vmatpush1.msra.mxu0 0.0
        %1406 = vmatprep.subr.mxu0 0.0
        %1407 = vmatpush1.msra.mxu0 0.0
        %1408 = vmatprep.subr.mxu0 0.0
        %1409 = vmatpush1.msra.mxu0 0.0
        %1410 = vmatprep.subr.mxu0 0.0
        %1411 = vmatpush1.msra.mxu0 0.0
        %1412 = vmatprep.subr.mxu0 0.0
        %1413 = vmatpush1.msra.mxu0 0.0
        %1414 = vmatprep.subr.mxu0 0.0
        %1415 = vmatpush1.msra.mxu0 0.0
        %1416 = vmatprep.subr.mxu0 0.0
        %1417 = vmatpush1.msra.mxu0 0.0
        %1418 = vmatprep.subr.mxu0 0.0
        %1419 = vmatpush1.msra.mxu0 0.0
        %1420 = vmatprep.subr.mxu0 0.0
        %1421 = vmatpush1.msra.mxu0 0.0
        %1422 = vmatprep.subr.mxu0 0.0
        %1423 = vmatpush1.msra.mxu0 0.0
        %1424 = vmatprep.subr.mxu0 0.0
        %1425 = vmatpush1.msra.mxu0 0.0
        %1426 = vmatprep.subr.mxu0 0.0
        %1427 = vmatpush1.msra.mxu0 0.0
        %1428 = vmatprep.subr.mxu0 0.0
        %1429 = vmatpush1.msra.mxu0 0.0
        %1430 = vmatprep.subr.mxu0 0.0
        %1431 = vmatpush1.msra.mxu0 0.0
        %1432 = vmatprep.subr.mxu0 0.0
        %1433 = vmatpush1.msra.mxu0 0.0
        %1434 = vmatprep.subr.mxu0 0.0
        %1435 = vmatpush1.msra.mxu0 0.0
        %1436 = vmatprep.subr.mxu0 0.0
        %1437 = vmatpush1.msra.mxu0 0.0
        %1438 = vmatprep.subr.mxu0 0.0
        %1439 = vmatpush1.msra.mxu0 0.0
        %1440 = vmatprep.mubr.f32.mxu0 0.0
        %v1441 = vand.u32 %v279, 4294901760
        %1442 = vmatmul.mubr.f32.gmra.mrb[0].mxu0 %v1441
        %v1443 = vpop.f32.mrb[0].mxu0
        %v1444 = vadd.f32 %v1264, %v1443
        %v1445 = vpop.f32.mrb[0].mxu0
        %1446 = vmatprep.mubr.f32.mxu0 0.0
        %v1447 = vand.u32 %v282, 4294901760
        %1448 = vmatmul.mubr.f32.gmra.mrb[0].mxu0 %v1447
        %v1449 = vpop.f32.mrb[0].mxu0
        %v1450 = vadd.f32 %v1270, %v1449
        %v1451 = vpop.f32.mrb[0].mxu0
        %1452 = vmatprep.mubr.f32.mxu0 0.0
        %v1453 = vand.u32 %v285, 4294901760
        %1454 = vmatmul.mubr.f32.gmra.mrb[0].mxu0 %v1453
        %v1455 = vpop.f32.mrb[0].mxu0
        %v1456 = vadd.f32 %v1276, %v1455
        %v1457 = vpop.f32.mrb[0].mxu0
        %1458 = vmatprep.mubr.f32.mxu0 0.0
        %v1459 = vand.u32 %v288, 4294901760
        %1460 = vmatmul.mubr.f32.gmra.mrb[0].mxu0 %v1459
        %v1461 = vpop.f32.mrb[0].mxu0
        %v1462 = vadd.f32 %v1282, %v1461
        %v1463 = vpop.f32.mrb[0].mxu0
        %1464 = vmatprep.mubr.f32.mxu0 0.0
        %v1465 = vand.u32 %v291, 4294901760
        %1466 = vmatmul.mubr.f32.gmra.mrb[0].mxu0 %v1465
        %v1467 = vpop.f32.mrb[0].mxu0
        %v1468 = vadd.f32 %v1288, %v1467
        %v1469 = vpop.f32.mrb[0].mxu0
        %1470 = vmatprep.mubr.f32.mxu0 0.0
        %v1471 = vand.u32 %v294, 4294901760
        %1472 = vmatmul.mubr.f32.gmra.mrb[0].mxu0 %v1471
        %v1473 = vpop.f32.mrb[0].mxu0
        %v1474 = vadd.f32 %v1294, %v1473
        %v1475 = vpop.f32.mrb[0].mxu0
        %1476 = vmatprep.mubr.f32.mxu0 0.0
        %v1477 = vand.u32 %v297, 4294901760
        %1478 = vmatmul.mubr.f32.gmra.mrb[0].mxu0 %v1477
        %v1479 = vpop.f32.mrb[0].mxu0
        %v1480 = vadd.f32 %v1300, %v1479
        %v1481 = vpop.f32.mrb[0].mxu0
        %1482 = vmatprep.mubr.f32.mxu0 0.0
        %v1483 = vand.u32 %v300, 4294901760
        %1484 = vmatmul.mubr.f32.gmra.mrb[0].mxu0 %v1483
        %v1485 = vpop.f32.mrb[0].mxu0
        %v1486 = vadd.f32 %v1306, %v1485
        %v1487 = vpop.f32.mrb[0].mxu0
        %1488 = vmatprep.mubr.f32.mxu0 0.0
        %v1489 = vand.u32 %v303, 4294901760
        %1490 = vmatmul.mubr.f32.gmra.mrb[0].mxu0 %v1489
        %v1491 = vpop.f32.mrb[0].mxu0
        %v1492 = vadd.f32 %v1312, %v1491
        %v1493 = vpop.f32.mrb[0].mxu0
        %1494 = vmatprep.mubr.f32.mxu0 0.0
        %v1495 = vand.u32 %v306, 4294901760
        %1496 = vmatmul.mubr.f32.gmra.mrb[0].mxu0 %v1495
        %v1497 = vpop.f32.mrb[0].mxu0
        %v1498 = vadd.f32 %v1318, %v1497
        %v1499 = vpop.f32.mrb[0].mxu0
        %1500 = vmatprep.mubr.f32.mxu0 0.0
        %v1501 = vand.u32 %v309, 4294901760
        %1502 = vmatmul.mubr.f32.gmra.mrb[0].mxu0 %v1501
        %v1503 = vpop.f32.mrb[0].mxu0
        %v1504 = vadd.f32 %v1324, %v1503
        %v1505 = vpop.f32.mrb[0].mxu0
        %1506 = vmatprep.mubr.f32.mxu0 0.0
        %v1507 = vand.u32 %v312, 4294901760
        %1508 = vmatmul.mubr.f32.gmra.mrb[0].mxu0 %v1507
        %v1509 = vpop.f32.mrb[0].mxu0
        %v1510 = vadd.f32 %v1330, %v1509
        %v1511 = vpop.f32.mrb[0].mxu0
        %1512 = vmatprep.mubr.f32.mxu0 0.0
        %v1513 = vand.u32 %v315, 4294901760
        %1514 = vmatmul.mubr.f32.gmra.mrb[0].mxu0 %v1513
        %v1515 = vpop.f32.mrb[0].mxu0
        %v1516 = vadd.f32 %v1336, %v1515
        %v1517 = vpop.f32.mrb[0].mxu0
        %1518 = vmatprep.mubr.f32.mxu0 0.0
        %v1519 = vand.u32 %v318, 4294901760
        %1520 = vmatmul.mubr.f32.gmra.mrb[0].mxu0 %v1519
        %v1521 = vpop.f32.mrb[0].mxu0
        %v1522 = vadd.f32 %v1342, %v1521
        %v1523 = vpop.f32.mrb[0].mxu0
        %1524 = vmatprep.mubr.f32.mxu0 0.0
        %v1525 = vand.u32 %v321, 4294901760
        %1526 = vmatmul.mubr.f32.gmra.mrb[0].mxu0 %v1525
        %v1527 = vpop.f32.mrb[0].mxu0
        %v1528 = vadd.f32 %v1348, %v1527
        %v1529 = vpop.f32.mrb[0].mxu0
        %1530 = vmatprep.mubr.f32.mxu0 0.0
        %v1531 = vand.u32 %v324, 4294901760
        %1532 = vmatmul.mubr.f32.gmra.mrb[0].mxu0 %v1531
        %v1533 = vpop.f32.mrb[0].mxu0
        %v1534 = vadd.f32 %v1354, %v1533
        %v1535 = vpop.f32.mrb[0].mxu0
        %1536 = vmatprep.mubr.f32.mxu0 0.0
        %v1537 = vand.u32 %v327, 4294901760
        %1538 = vmatmul.mubr.f32.gmra.mrb[0].mxu0 %v1537
        %v1539 = vpop.f32.mrb[0].mxu0
        %v1540 = vadd.f32 %v1360, %v1539
        %v1541 = vpop.f32.mrb[0].mxu0
        %1542 = vmatprep.mubr.f32.mxu0 0.0
        %v1543 = vand.u32 %v330, 4294901760
        %1544 = vmatmul.mubr.f32.gmra.mrb[0].mxu0 %v1543
        %v1545 = vpop.f32.mrb[0].mxu0
        %v1546 = vadd.f32 %v1366, %v1545
        %v1547 = vpop.f32.mrb[0].mxu0
        %1548 = vmatprep.mubr.f32.mxu0 0.0
        %v1549 = vand.u32 %v333, 4294901760
        %1550 = vmatmul.mubr.f32.gmra.mrb[0].mxu0 %v1549
        %v1551 = vpop.f32.mrb[0].mxu0
        %v1552 = vadd.f32 %v1372, %v1551
        %v1553 = vpop.f32.mrb[0].mxu0
        %1554 = vdwg.mxu0
        %v1555 = vmin.f32 %v257, %v1444
        %v1556 = vmin.f32 %v258, %v1450
        %v1557 = vmin.f32 %v259, %v1456
        %v1558 = vmin.f32 %v260, %v1462
        %v1559 = vmin.f32 %v261, %v1468
        %v1560 = vmin.f32 %v262, %v1474
        %v1561 = vmin.f32 %v263, %v1480
        %v1562 = vmin.f32 %v264, %v1486
        %v1563 = vmin.f32 %v265, %v1492
        %v1564 = vmin.f32 %v266, %v1498
        %v1565 = vmin.f32 %v267, %v1504
        %v1566 = vmin.f32 %v268, %v1510
        %v1567 = vmin.f32 %v269, %v1516
        %v1568 = vmin.f32 %v270, %v1522
        %v1569 = vmin.f32 %v271, %v1528
        %v1570 = vmin.f32 %v272, %v1534
        %v1571 = vmin.f32 %v273, %v1540
        %v1572 = vmin.f32 %v274, %v1546
        %v1573 = vmin.f32 %v275, %v1552
        %v1574 = vld [vmem:[%s213 + $0x8] sm:$0xff]
        %1575 = vmatprep.subr.mxu0 0.0
        %v1576 = vand.u32 %v1574, 4294901760
        %1577 = vmatpush1.msra.mxu0 %v1576
        %1578 = vmatprep.subr.mxu0 0.0
        %1579 = vmatpush1.msra.mxu0 0.0
        %1580 = vmatprep.subr.mxu0 0.0
        %1581 = vmatpush1.msra.mxu0 0.0
        %1582 = vmatprep.subr.mxu0 0.0
        %1583 = vmatpush1.msra.mxu0 0.0
        %1584 = vmatprep.subr.mxu0 0.0
        %1585 = vmatpush1.msra.mxu0 0.0
        %1586 = vmatprep.subr.mxu0 0.0
        %1587 = vmatpush1.msra.mxu0 0.0
        %1588 = vmatprep.subr.mxu0 0.0
        %1589 = vmatpush1.msra.mxu0 0.0
        %1590 = vmatprep.subr.mxu0 0.0
        %1591 = vmatpush1.msra.mxu0 0.0
        %1592 = vmatprep.subr.mxu0 0.0
        %1593 = vmatpush1.msra.mxu0 0.0
        %1594 = vmatprep.subr.mxu0 0.0
        %1595 = vmatpush1.msra.mxu0 0.0
        %1596 = vmatprep.subr.mxu0 0.0
        %1597 = vmatpush1.msra.mxu0 0.0
        %1598 = vmatprep.subr.mxu0 0.0
        %1599 = vmatpush1.msra.mxu0 0.0
        %1600 = vmatprep.subr.mxu0 0.0
        %1601 = vmatpush1.msra.mxu0 0.0
        %1602 = vmatprep.subr.mxu0 0.0
        %1603 = vmatpush1.msra.mxu0 0.0
        %1604 = vmatprep.subr.mxu0 0.0
        %1605 = vmatpush1.msra.mxu0 0.0
        %1606 = vmatprep.subr.mxu0 0.0
        %1607 = vmatpush1.msra.mxu0 0.0
        %1608 = vmatprep.subr.mxu0 0.0
        %1609 = vmatpush1.msra.mxu0 0.0
        %1610 = vmatprep.subr.mxu0 0.0
        %1611 = vmatpush1.msra.mxu0 0.0
        %1612 = vmatprep.subr.mxu0 0.0
        %1613 = vmatpush1.msra.mxu0 0.0
        %1614 = vmatprep.subr.mxu0 0.0
        %1615 = vmatpush1.msra.mxu0 0.0
        %1616 = vmatprep.subr.mxu0 0.0
        %1617 = vmatpush1.msra.mxu0 0.0
        %1618 = vmatprep.subr.mxu0 0.0
        %1619 = vmatpush1.msra.mxu0 0.0
        %1620 = vmatprep.subr.mxu0 0.0
        %1621 = vmatpush1.msra.mxu0 0.0
        %1622 = vmatprep.subr.mxu0 0.0
        %1623 = vmatpush1.msra.mxu0 0.0
        %1624 = vmatprep.subr.mxu0 0.0
        %1625 = vmatpush1.msra.mxu0 0.0
        %1626 = vmatprep.subr.mxu0 0.0
        %1627 = vmatpush1.msra.mxu0 0.0
        %1628 = vmatprep.subr.mxu0 0.0
        %1629 = vmatpush1.msra.mxu0 0.0
        %1630 = vmatprep.subr.mxu0 0.0
        %1631 = vmatpush1.msra.mxu0 0.0
        %1632 = vmatprep.subr.mxu0 0.0
        %1633 = vmatpush1.msra.mxu0 0.0
        %1634 = vmatprep.subr.mxu0 0.0
        %1635 = vmatpush1.msra.mxu0 0.0
        %1636 = vmatprep.subr.mxu0 0.0
        %1637 = vmatpush1.msra.mxu0 0.0
        %1638 = vmatprep.subr.mxu0 0.0
        %1639 = vmatpush1.msra.mxu0 0.0
        %1640 = vmatprep.mubr.f32.mxu0 0.0
        %v1641 = vand.u32 %v279, 4294901760
        %v1642 = vsub.f32 %v279, %v1641
        %v1643 = vand.u32 %v1642, 4294901760
        %v1644 = vsub.f32 %v1642, %v1643
        %v1645 = vand.u32 %v1644, 4294901760
        %1646 = vmatmul.mubr.f32.gmra.mrb[0].mxu0 %v1645
        %v1647 = vpop.f32.mrb[0].mxu0
        %v1648 = vadd.f32 0.0, %v1647
        %v1649 = vpop.f32.mrb[0].mxu0
        %1650 = vmatprep.mubr.f32.mxu0 0.0
        %v1651 = vand.u32 %v282, 4294901760
        %v1652 = vsub.f32 %v282, %v1651
        %v1653 = vand.u32 %v1652, 4294901760
        %v1654 = vsub.f32 %v1652, %v1653
        %v1655 = vand.u32 %v1654, 4294901760
        %1656 = vmatmul.mubr.f32.gmra.mrb[0].mxu0 %v1655
        %v1657 = vpop.f32.mrb[0].mxu0
        %v1658 = vadd.f32 0.0, %v1657
        %v1659 = vpop.f32.mrb[0].mxu0
        %1660 = vmatprep.mubr.f32.mxu0 0.0
        %v1661 = vand.u32 %v285, 4294901760
        %v1662 = vsub.f32 %v285, %v1661
        %v1663 = vand.u32 %v1662, 4294901760
        %v1664 = vsub.f32 %v1662, %v1663
        %v1665 = vand.u32 %v1664, 4294901760
        %1666 = vmatmul.mubr.f32.gmra.mrb[0].mxu0 %v1665
        %v1667 = vpop.f32.mrb[0].mxu0
        %v1668 = vadd.f32 0.0, %v1667
        %v1669 = vpop.f32.mrb[0].mxu0
        %1670 = vmatprep.mubr.f32.mxu0 0.0
        %v1671 = vand.u32 %v288, 4294901760
        %v1672 = vsub.f32 %v288, %v1671
        %v1673 = vand.u32 %v1672, 4294901760
        %v1674 = vsub.f32 %v1672, %v1673
        %v1675 = vand.u32 %v1674, 4294901760
        %1676 = vmatmul.mubr.f32.gmra.mrb[0].mxu0 %v1675
        %v1677 = vpop.f32.mrb[0].mxu0
        %v1678 = vadd.f32 0.0, %v1677
        %v1679 = vpop.f32.mrb[0].mxu0
        %1680 = vmatprep.mubr.f32.mxu0 0.0
        %v1681 = vand.u32 %v291, 4294901760
        %v1682 = vsub.f32 %v291, %v1681
        %v1683 = vand.u32 %v1682, 4294901760
        %v1684 = vsub.f32 %v1682, %v1683
        %v1685 = vand.u32 %v1684, 4294901760
        %1686 = vmatmul.mubr.f32.gmra.mrb[0].mxu0 %v1685
        %v1687 = vpop.f32.mrb[0].mxu0
        %v1688 = vadd.f32 0.0, %v1687
        %v1689 = vpop.f32.mrb[0].mxu0
        %1690 = vmatprep.mubr.f32.mxu0 0.0
        %v1691 = vand.u32 %v294, 4294901760
        %v1692 = vsub.f32 %v294, %v1691
        %v1693 = vand.u32 %v1692, 4294901760
        %v1694 = vsub.f32 %v1692, %v1693
        %v1695 = vand.u32 %v1694, 4294901760
        %1696 = vmatmul.mubr.f32.gmra.mrb[0].mxu0 %v1695
        %v1697 = vpop.f32.mrb[0].mxu0
        %v1698 = vadd.f32 0.0, %v1697
        %v1699 = vpop.f32.mrb[0].mxu0
        %1700 = vmatprep.mubr.f32.mxu0 0.0
        %v1701 = vand.u32 %v297, 4294901760
        %v1702 = vsub.f32 %v297, %v1701
        %v1703 = vand.u32 %v1702, 4294901760
        %v1704 = vsub.f32 %v1702, %v1703
        %v1705 = vand.u32 %v1704, 4294901760
        %1706 = vmatmul.mubr.f32.gmra.mrb[0].mxu0 %v1705
        %v1707 = vpop.f32.mrb[0].mxu0
        %v1708 = vadd.f32 0.0, %v1707
        %v1709 = vpop.f32.mrb[0].mxu0
        %1710 = vmatprep.mubr.f32.mxu0 0.0
        %v1711 = vand.u32 %v300, 4294901760
        %v1712 = vsub.f32 %v300, %v1711
        %v1713 = vand.u32 %v1712, 4294901760
        %v1714 = vsub.f32 %v1712, %v1713
        %v1715 = vand.u32 %v1714, 4294901760
        %1716 = vmatmul.mubr.f32.gmra.mrb[0].mxu0 %v1715
        %v1717 = vpop.f32.mrb[0].mxu0
        %v1718 = vadd.f32 0.0, %v1717
        %v1719 = vpop.f32.mrb[0].mxu0
        %1720 = vmatprep.mubr.f32.mxu0 0.0
        %v1721 = vand.u32 %v303, 4294901760
        %v1722 = vsub.f32 %v303, %v1721
        %v1723 = vand.u32 %v1722, 4294901760
        %v1724 = vsub.f32 %v1722, %v1723
        %v1725 = vand.u32 %v1724, 4294901760
        %1726 = vmatmul.mubr.f32.gmra.mrb[0].mxu0 %v1725
        %v1727 = vpop.f32.mrb[0].mxu0
        %v1728 = vadd.f32 0.0, %v1727
        %v1729 = vpop.f32.mrb[0].mxu0
        %1730 = vmatprep.mubr.f32.mxu0 0.0
        %v1731 = vand.u32 %v306, 4294901760
        %v1732 = vsub.f32 %v306, %v1731
        %v1733 = vand.u32 %v1732, 4294901760
        %v1734 = vsub.f32 %v1732, %v1733
        %v1735 = vand.u32 %v1734, 4294901760
        %1736 = vmatmul.mubr.f32.gmra.mrb[0].mxu0 %v1735
        %v1737 = vpop.f32.mrb[0].mxu0
        %v1738 = vadd.f32 0.0, %v1737
        %v1739 = vpop.f32.mrb[0].mxu0
        %1740 = vmatprep.mubr.f32.mxu0 0.0
        %v1741 = vand.u32 %v309, 4294901760
        %v1742 = vsub.f32 %v309, %v1741
        %v1743 = vand.u32 %v1742, 4294901760
        %v1744 = vsub.f32 %v1742, %v1743
        %v1745 = vand.u32 %v1744, 4294901760
        %1746 = vmatmul.mubr.f32.gmra.mrb[0].mxu0 %v1745
        %v1747 = vpop.f32.mrb[0].mxu0
        %v1748 = vadd.f32 0.0, %v1747
        %v1749 = vpop.f32.mrb[0].mxu0
        %1750 = vmatprep.mubr.f32.mxu0 0.0
        %v1751 = vand.u32 %v312, 4294901760
        %v1752 = vsub.f32 %v312, %v1751
        %v1753 = vand.u32 %v1752, 4294901760
        %v1754 = vsub.f32 %v1752, %v1753
        %v1755 = vand.u32 %v1754, 4294901760
        %1756 = vmatmul.mubr.f32.gmra.mrb[0].mxu0 %v1755
        %v1757 = vpop.f32.mrb[0].mxu0
        %v1758 = vadd.f32 0.0, %v1757
        %v1759 = vpop.f32.mrb[0].mxu0
        %1760 = vmatprep.mubr.f32.mxu0 0.0
        %v1761 = vand.u32 %v315, 4294901760
        %v1762 = vsub.f32 %v315, %v1761
        %v1763 = vand.u32 %v1762, 4294901760
        %v1764 = vsub.f32 %v1762, %v1763
        %v1765 = vand.u32 %v1764, 4294901760
        %1766 = vmatmul.mubr.f32.gmra.mrb[0].mxu0 %v1765
        %v1767 = vpop.f32.mrb[0].mxu0
        %v1768 = vadd.f32 0.0, %v1767
        %v1769 = vpop.f32.mrb[0].mxu0
        %1770 = vmatprep.mubr.f32.mxu0 0.0
        %v1771 = vand.u32 %v318, 4294901760
        %v1772 = vsub.f32 %v318, %v1771
        %v1773 = vand.u32 %v1772, 4294901760
        %v1774 = vsub.f32 %v1772, %v1773
        %v1775 = vand.u32 %v1774, 4294901760
        %1776 = vmatmul.mubr.f32.gmra.mrb[0].mxu0 %v1775
        %v1777 = vpop.f32.mrb[0].mxu0
        %v1778 = vadd.f32 0.0, %v1777
        %v1779 = vpop.f32.mrb[0].mxu0
        %1780 = vmatprep.mubr.f32.mxu0 0.0
        %v1781 = vand.u32 %v321, 4294901760
        %v1782 = vsub.f32 %v321, %v1781
        %v1783 = vand.u32 %v1782, 4294901760
        %v1784 = vsub.f32 %v1782, %v1783
        %v1785 = vand.u32 %v1784, 4294901760
        %1786 = vmatmul.mubr.f32.gmra.mrb[0].mxu0 %v1785
        %v1787 = vpop.f32.mrb[0].mxu0
        %v1788 = vadd.f32 0.0, %v1787
        %v1789 = vpop.f32.mrb[0].mxu0
        %1790 = vmatprep.mubr.f32.mxu0 0.0
        %v1791 = vand.u32 %v324, 4294901760
        %v1792 = vsub.f32 %v324, %v1791
        %v1793 = vand.u32 %v1792, 4294901760
        %v1794 = vsub.f32 %v1792, %v1793
        %v1795 = vand.u32 %v1794, 4294901760
        %1796 = vmatmul.mubr.f32.gmra.mrb[0].mxu0 %v1795
        %v1797 = vpop.f32.mrb[0].mxu0
        %v1798 = vadd.f32 0.0, %v1797
        %v1799 = vpop.f32.mrb[0].mxu0
        %1800 = vmatprep.mubr.f32.mxu0 0.0
        %v1801 = vand.u32 %v327, 4294901760
        %v1802 = vsub.f32 %v327, %v1801
        %v1803 = vand.u32 %v1802, 4294901760
        %v1804 = vsub.f32 %v1802, %v1803
        %v1805 = vand.u32 %v1804, 4294901760
        %1806 = vmatmul.mubr.f32.gmra.mrb[0].mxu0 %v1805
        %v1807 = vpop.f32.mrb[0].mxu0
        %v1808 = vadd.f32 0.0, %v1807
        %v1809 = vpop.f32.mrb[0].mxu0
        %1810 = vmatprep.mubr.f32.mxu0 0.0
        %v1811 = vand.u32 %v330, 4294901760
        %v1812 = vsub.f32 %v330, %v1811
        %v1813 = vand.u32 %v1812, 4294901760
        %v1814 = vsub.f32 %v1812, %v1813
        %v1815 = vand.u32 %v1814, 4294901760
        %1816 = vmatmul.mubr.f32.gmra.mrb[0].mxu0 %v1815
        %v1817 = vpop.f32.mrb[0].mxu0
        %v1818 = vadd.f32 0.0, %v1817
        %v1819 = vpop.f32.mrb[0].mxu0
        %1820 = vmatprep.mubr.f32.mxu0 0.0
        %v1821 = vand.u32 %v333, 4294901760
        %v1822 = vsub.f32 %v333, %v1821
        %v1823 = vand.u32 %v1822, 4294901760
        %v1824 = vsub.f32 %v1822, %v1823
        %v1825 = vand.u32 %v1824, 4294901760
        %1826 = vmatmul.mubr.f32.gmra.mrb[0].mxu0 %v1825
        %v1827 = vpop.f32.mrb[0].mxu0
        %v1828 = vadd.f32 0.0, %v1827
        %v1829 = vpop.f32.mrb[0].mxu0
        %1830 = vdwg.mxu0
        %1831 = vmatprep.subr.mxu0 0.0
        %v1832 = vand.u32 %v1574, 4294901760
        %v1833 = vsub.f32 %v1574, %v1832
        %v1834 = vand.u32 %v1833, 4294901760
        %v1835 = vsub.f32 %v1833, %v1834
        %v1836 = vand.u32 %v1835, 4294901760
        %1837 = vmatpush1.msra.mxu0 %v1836
        %1838 = vmatprep.subr.mxu0 0.0
        %1839 = vmatpush1.msra.mxu0 0.0
        %1840 = vmatprep.subr.mxu0 0.0
        %1841 = vmatpush1.msra.mxu0 0.0
        %1842 = vmatprep.subr.mxu0 0.0
        %1843 = vmatpush1.msra.mxu0 0.0
        %1844 = vmatprep.subr.mxu0 0.0
        %1845 = vmatpush1.msra.mxu0 0.0
        %1846 = vmatprep.subr.mxu0 0.0
        %1847 = vmatpush1.msra.mxu0 0.0
        %1848 = vmatprep.subr.mxu0 0.0
        %1849 = vmatpush1.msra.mxu0 0.0
        %1850 = vmatprep.subr.mxu0 0.0
        %1851 = vmatpush1.msra.mxu0 0.0
        %1852 = vmatprep.subr.mxu0 0.0
        %1853 = vmatpush1.msra.mxu0 0.0
        %1854 = vmatprep.subr.mxu0 0.0
        %1855 = vmatpush1.msra.mxu0 0.0
        %1856 = vmatprep.subr.mxu0 0.0
        %1857 = vmatpush1.msra.mxu0 0.0
        %1858 = vmatprep.subr.mxu0 0.0
        %1859 = vmatpush1.msra.mxu0 0.0
        %1860 = vmatprep.subr.mxu0 0.0
        %1861 = vmatpush1.msra.mxu0 0.0
        %1862 = vmatprep.subr.mxu0 0.0
        %1863 = vmatpush1.msra.mxu0 0.0
        %1864 = vmatprep.subr.mxu0 0.0
        %1865 = vmatpush1.msra.mxu0 0.0
        %1866 = vmatprep.subr.mxu0 0.0
        %1867 = vmatpush1.msra.mxu0 0.0
        %1868 = vmatprep.subr.mxu0 0.0
        %1869 = vmatpush1.msra.mxu0 0.0
        %1870 = vmatprep.subr.mxu0 0.0
        %1871 = vmatpush1.msra.mxu0 0.0
        %1872 = vmatprep.subr.mxu0 0.0
        %1873 = vmatpush1.msra.mxu0 0.0
        %1874 = vmatprep.subr.mxu0 0.0
        %1875 = vmatpush1.msra.mxu0 0.0
        %1876 = vmatprep.subr.mxu0 0.0
        %1877 = vmatpush1.msra.mxu0 0.0
        %1878 = vmatprep.subr.mxu0 0.0
        %1879 = vmatpush1.msra.mxu0 0.0
        %1880 = vmatprep.subr.mxu0 0.0
        %1881 = vmatpush1.msra.mxu0 0.0
        %1882 = vmatprep.subr.mxu0 0.0
        %1883 = vmatpush1.msra.mxu0 0.0
        %1884 = vmatprep.subr.mxu0 0.0
        %1885 = vmatpush1.msra.mxu0 0.0
        %1886 = vmatprep.subr.mxu0 0.0
        %1887 = vmatpush1.msra.mxu0 0.0
        %1888 = vmatprep.subr.mxu0 0.0
        %1889 = vmatpush1.msra.mxu0 0.0
        %1890 = vmatprep.subr.mxu0 0.0
        %1891 = vmatpush1.msra.mxu0 0.0
        %1892 = vmatprep.subr.mxu0 0.0
        %1893 = vmatpush1.msra.mxu0 0.0
        %1894 = vmatprep.subr.mxu0 0.0
        %1895 = vmatpush1.msra.mxu0 0.0
        %1896 = vmatprep.subr.mxu0 0.0
        %1897 = vmatpush1.msra.mxu0 0.0
        %1898 = vmatprep.subr.mxu0 0.0
        %1899 = vmatpush1.msra.mxu0 0.0
        %1900 = vmatprep.mubr.f32.mxu0 0.0
        %v1901 = vand.u32 %v279, 4294901760
        %1902 = vmatmul.mubr.f32.gmra.mrb[0].mxu0 %v1901
        %v1903 = vpop.f32.mrb[0].mxu0
        %v1904 = vadd.f32 %v1648, %v1903
        %v1905 = vpop.f32.mrb[0].mxu0
        %1906 = vmatprep.mubr.f32.mxu0 0.0
        %v1907 = vand.u32 %v282, 4294901760
        %1908 = vmatmul.mubr.f32.gmra.mrb[0].mxu0 %v1907
        %v1909 = vpop.f32.mrb[0].mxu0
        %v1910 = vadd.f32 %v1658, %v1909
        %v1911 = vpop.f32.mrb[0].mxu0
        %1912 = vmatprep.mubr.f32.mxu0 0.0
        %v1913 = vand.u32 %v285, 4294901760
        %1914 = vmatmul.mubr.f32.gmra.mrb[0].mxu0 %v1913
        %v1915 = vpop.f32.mrb[0].mxu0
        %v1916 = vadd.f32 %v1668, %v1915
        %v1917 = vpop.f32.mrb[0].mxu0
        %1918 = vmatprep.mubr.f32.mxu0 0.0
        %v1919 = vand.u32 %v288, 4294901760
        %1920 = vmatmul.mubr.f32.gmra.mrb[0].mxu0 %v1919
        %v1921 = vpop.f32.mrb[0].mxu0
        %v1922 = vadd.f32 %v1678, %v1921
        %v1923 = vpop.f32.mrb[0].mxu0
        %1924 = vmatprep.mubr.f32.mxu0 0.0
        %v1925 = vand.u32 %v291, 4294901760
        %1926 = vmatmul.mubr.f32.gmra.mrb[0].mxu0 %v1925
        %v1927 = vpop.f32.mrb[0].mxu0
        %v1928 = vadd.f32 %v1688, %v1927
        %v1929 = vpop.f32.mrb[0].mxu0
        %1930 = vmatprep.mubr.f32.mxu0 0.0
        %v1931 = vand.u32 %v294, 4294901760
        %1932 = vmatmul.mubr.f32.gmra.mrb[0].mxu0 %v1931
        %v1933 = vpop.f32.mrb[0].mxu0
        %v1934 = vadd.f32 %v1698, %v1933
        %v1935 = vpop.f32.mrb[0].mxu0
        %1936 = vmatprep.mubr.f32.mxu0 0.0
        %v1937 = vand.u32 %v297, 4294901760
        %1938 = vmatmul.mubr.f32.gmra.mrb[0].mxu0 %v1937
        %v1939 = vpop.f32.mrb[0].mxu0
        %v1940 = vadd.f32 %v1708, %v1939
        %v1941 = vpop.f32.mrb[0].mxu0
        %1942 = vmatprep.mubr.f32.mxu0 0.0
        %v1943 = vand.u32 %v300, 4294901760
        %1944 = vmatmul.mubr.f32.gmra.mrb[0].mxu0 %v1943
        %v1945 = vpop.f32.mrb[0].mxu0
        %v1946 = vadd.f32 %v1718, %v1945
        %v1947 = vpop.f32.mrb[0].mxu0
        %1948 = vmatprep.mubr.f32.mxu0 0.0
        %v1949 = vand.u32 %v303, 4294901760
        %1950 = vmatmul.mubr.f32.gmra.mrb[0].mxu0 %v1949
        %v1951 = vpop.f32.mrb[0].mxu0
        %v1952 = vadd.f32 %v1728, %v1951
        %v1953 = vpop.f32.mrb[0].mxu0
        %1954 = vmatprep.mubr.f32.mxu0 0.0
        %v1955 = vand.u32 %v306, 4294901760
        %1956 = vmatmul.mubr.f32.gmra.mrb[0].mxu0 %v1955
        %v1957 = vpop.f32.mrb[0].mxu0
        %v1958 = vadd.f32 %v1738, %v1957
        %v1959 = vpop.f32.mrb[0].mxu0
        %1960 = vmatprep.mubr.f32.mxu0 0.0
        %v1961 = vand.u32 %v309, 4294901760
        %1962 = vmatmul.mubr.f32.gmra.mrb[0].mxu0 %v1961
        %v1963 = vpop.f32.mrb[0].mxu0
        %v1964 = vadd.f32 %v1748, %v1963
        %v1965 = vpop.f32.mrb[0].mxu0
        %1966 = vmatprep.mubr.f32.mxu0 0.0
        %v1967 = vand.u32 %v312, 4294901760
        %1968 = vmatmul.mubr.f32.gmra.mrb[0].mxu0 %v1967
        %v1969 = vpop.f32.mrb[0].mxu0
        %v1970 = vadd.f32 %v1758, %v1969
        %v1971 = vpop.f32.mrb[0].mxu0
        %1972 = vmatprep.mubr.f32.mxu0 0.0
        %v1973 = vand.u32 %v315, 4294901760
        %1974 = vmatmul.mubr.f32.gmra.mrb[0].mxu0 %v1973
        %v1975 = vpop.f32.mrb[0].mxu0
        %v1976 = vadd.f32 %v1768, %v1975
        %v1977 = vpop.f32.mrb[0].mxu0
        %1978 = vmatprep.mubr.f32.mxu0 0.0
        %v1979 = vand.u32 %v318, 4294901760
        %1980 = vmatmul.mubr.f32.gmra.mrb[0].mxu0 %v1979
        %v1981 = vpop.f32.mrb[0].mxu0
        %v1982 = vadd.f32 %v1778, %v1981
        %v1983 = vpop.f32.mrb[0].mxu0
        %1984 = vmatprep.mubr.f32.mxu0 0.0
        %v1985 = vand.u32 %v321, 4294901760
        %1986 = vmatmul.mubr.f32.gmra.mrb[0].mxu0 %v1985
        %v1987 = vpop.f32.mrb[0].mxu0
        %v1988 = vadd.f32 %v1788, %v1987
        %v1989 = vpop.f32.mrb[0].mxu0
        %1990 = vmatprep.mubr.f32.mxu0 0.0
        %v1991 = vand.u32 %v324, 4294901760
        %1992 = vmatmul.mubr.f32.gmra.mrb[0].mxu0 %v1991
        %v1993 = vpop.f32.mrb[0].mxu0
        %v1994 = vadd.f32 %v1798, %v1993
        %v1995 = vpop.f32.mrb[0].mxu0
        %1996 = vmatprep.mubr.f32.mxu0 0.0
        %v1997 = vand.u32 %v327, 4294901760
        %1998 = vmatmul.mubr.f32.gmra.mrb[0].mxu0 %v1997
        %v1999 = vpop.f32.mrb[0].mxu0
        %v2000 = vadd.f32 %v1808, %v1999
        %v2001 = vpop.f32.mrb[0].mxu0
        %2002 = vmatprep.mubr.f32.mxu0 0.0
        %v2003 = vand.u32 %v330, 4294901760
        %2004 = vmatmul.mubr.f32.gmra.mrb[0].mxu0 %v2003
        %v2005 = vpop.f32.mrb[0].mxu0
        %v2006 = vadd.f32 %v1818, %v2005
        %v2007 = vpop.f32.mrb[0].mxu0
        %2008 = vmatprep.mubr.f32.mxu0 0.0
        %v2009 = vand.u32 %v333, 4294901760
        %2010 = vmatmul.mubr.f32.gmra.mrb[0].mxu0 %v2009
        %v2011 = vpop.f32.mrb[0].mxu0
        %v2012 = vadd.f32 %v1828, %v2011
        %v2013 = vpop.f32.mrb[0].mxu0
        %2014 = vdwg.mxu0
        %2015 = vmatprep.subr.mxu0 0.0
        %v2016 = vand.u32 %v1574, 4294901760
        %v2017 = vsub.f32 %v1574, %v2016
        %2018 = vmatpush1.msra.mxu0 %v2017
        %2019 = vmatprep.subr.mxu0 0.0
        %2020 = vmatpush1.msra.mxu0 0.0
        %2021 = vmatprep.subr.mxu0 0.0
        %2022 = vmatpush1.msra.mxu0 0.0
        %2023 = vmatprep.subr.mxu0 0.0
        %2024 = vmatpush1.msra.mxu0 0.0
        %2025 = vmatprep.subr.mxu0 0.0
        %2026 = vmatpush1.msra.mxu0 0.0
        %2027 = vmatprep.subr.mxu0 0.0
        %2028 = vmatpush1.msra.mxu0 0.0
        %2029 = vmatprep.subr.mxu0 0.0
        %2030 = vmatpush1.msra.mxu0 0.0
        %2031 = vmatprep.subr.mxu0 0.0
        %2032 = vmatpush1.msra.mxu0 0.0
        %2033 = vmatprep.subr.mxu0 0.0
        %2034 = vmatpush1.msra.mxu0 0.0
        %2035 = vmatprep.subr.mxu0 0.0
        %2036 = vmatpush1.msra.mxu0 0.0
        %2037 = vmatprep.subr.mxu0 0.0
        %2038 = vmatpush1.msra.mxu0 0.0
        %2039 = vmatprep.subr.mxu0 0.0
        %2040 = vmatpush1.msra.mxu0 0.0
        %2041 = vmatprep.subr.mxu0 0.0
        %2042 = vmatpush1.msra.mxu0 0.0
        %2043 = vmatprep.subr.mxu0 0.0
        %2044 = vmatpush1.msra.mxu0 0.0
        %2045 = vmatprep.subr.mxu0 0.0
        %2046 = vmatpush1.msra.mxu0 0.0
        %2047 = vmatprep.subr.mxu0 0.0
        %2048 = vmatpush1.msra.mxu0 0.0
        %2049 = vmatprep.subr.mxu0 0.0
        %2050 = vmatpush1.msra.mxu0 0.0
        %2051 = vmatprep.subr.mxu0 0.0
        %2052 = vmatpush1.msra.mxu0 0.0
        %2053 = vmatprep.subr.mxu0 0.0
        %2054 = vmatpush1.msra.mxu0 0.0
        %2055 = vmatprep.subr.mxu0 0.0
        %2056 = vmatpush1.msra.mxu0 0.0
        %2057 = vmatprep.subr.mxu0 0.0
        %2058 = vmatpush1.msra.mxu0 0.0
        %2059 = vmatprep.subr.mxu0 0.0
        %2060 = vmatpush1.msra.mxu0 0.0
        %2061 = vmatprep.subr.mxu0 0.0
        %2062 = vmatpush1.msra.mxu0 0.0
        %2063 = vmatprep.subr.mxu0 0.0
        %2064 = vmatpush1.msra.mxu0 0.0
        %2065 = vmatprep.subr.mxu0 0.0
        %2066 = vmatpush1.msra.mxu0 0.0
        %2067 = vmatprep.subr.mxu0 0.0
        %2068 = vmatpush1.msra.mxu0 0.0
        %2069 = vmatprep.subr.mxu0 0.0
        %2070 = vmatpush1.msra.mxu0 0.0
        %2071 = vmatprep.subr.mxu0 0.0
        %2072 = vmatpush1.msra.mxu0 0.0
        %2073 = vmatprep.subr.mxu0 0.0
        %2074 = vmatpush1.msra.mxu0 0.0
        %2075 = vmatprep.subr.mxu0 0.0
        %2076 = vmatpush1.msra.mxu0 0.0
        %2077 = vmatprep.subr.mxu0 0.0
        %2078 = vmatpush1.msra.mxu0 0.0
        %2079 = vmatprep.subr.mxu0 0.0
        %2080 = vmatpush1.msra.mxu0 0.0
        %2081 = vmatprep.mubr.f32.mxu0 0.0
        %v2082 = vand.u32 %v279, 4294901760
        %v2083 = vsub.f32 %v279, %v2082
        %2084 = vmatmul.mubr.f32.gmra.mrb[0].mxu0 %v2083
        %v2085 = vpop.f32.mrb[0].mxu0
        %v2086 = vadd.f32 %v1904, %v2085
        %v2087 = vpop.f32.mrb[0].mxu0
        %2088 = vmatprep.mubr.f32.mxu0 0.0
        %v2089 = vand.u32 %v282, 4294901760
        %v2090 = vsub.f32 %v282, %v2089
        %2091 = vmatmul.mubr.f32.gmra.mrb[0].mxu0 %v2090
        %v2092 = vpop.f32.mrb[0].mxu0
        %v2093 = vadd.f32 %v1910, %v2092
        %v2094 = vpop.f32.mrb[0].mxu0
        %2095 = vmatprep.mubr.f32.mxu0 0.0
        %v2096 = vand.u32 %v285, 4294901760
        %v2097 = vsub.f32 %v285, %v2096
        %2098 = vmatmul.mubr.f32.gmra.mrb[0].mxu0 %v2097
        %v2099 = vpop.f32.mrb[0].mxu0
        %v2100 = vadd.f32 %v1916, %v2099
        %v2101 = vpop.f32.mrb[0].mxu0
        %2102 = vmatprep.mubr.f32.mxu0 0.0
        %v2103 = vand.u32 %v288, 4294901760
        %v2104 = vsub.f32 %v288, %v2103
        %2105 = vmatmul.mubr.f32.gmra.mrb[0].mxu0 %v2104
        %v2106 = vpop.f32.mrb[0].mxu0
        %v2107 = vadd.f32 %v1922, %v2106
        %v2108 = vpop.f32.mrb[0].mxu0
        %2109 = vmatprep.mubr.f32.mxu0 0.0
        %v2110 = vand.u32 %v291, 4294901760
        %v2111 = vsub.f32 %v291, %v2110
        %2112 = vmatmul.mubr.f32.gmra.mrb[0].mxu0 %v2111
        %v2113 = vpop.f32.mrb[0].mxu0
        %v2114 = vadd.f32 %v1928, %v2113
        %v2115 = vpop.f32.mrb[0].mxu0
        %2116 = vmatprep.mubr.f32.mxu0 0.0
        %v2117 = vand.u32 %v294, 4294901760
        %v2118 = vsub.f32 %v294, %v2117
        %2119 = vmatmul.mubr.f32.gmra.mrb[0].mxu0 %v2118
        %v2120 = vpop.f32.mrb[0].mxu0
        %v2121 = vadd.f32 %v1934, %v2120
        %v2122 = vpop.f32.mrb[0].mxu0
        %2123 = vmatprep.mubr.f32.mxu0 0.0
        %v2124 = vand.u32 %v297, 4294901760
        %v2125 = vsub.f32 %v297, %v2124
        %2126 = vmatmul.mubr.f32.gmra.mrb[0].mxu0 %v2125
        %v2127 = vpop.f32.mrb[0].mxu0
        %v2128 = vadd.f32 %v1940, %v2127
        %v2129 = vpop.f32.mrb[0].mxu0
        %2130 = vmatprep.mubr.f32.mxu0 0.0
        %v2131 = vand.u32 %v300, 4294901760
        %v2132 = vsub.f32 %v300, %v2131
        %2133 = vmatmul.mubr.f32.gmra.mrb[0].mxu0 %v2132
        %v2134 = vpop.f32.mrb[0].mxu0
        %v2135 = vadd.f32 %v1946, %v2134
        %v2136 = vpop.f32.mrb[0].mxu0
        %2137 = vmatprep.mubr.f32.mxu0 0.0
        %v2138 = vand.u32 %v303, 4294901760
        %v2139 = vsub.f32 %v303, %v2138
        %2140 = vmatmul.mubr.f32.gmra.mrb[0].mxu0 %v2139
        %v2141 = vpop.f32.mrb[0].mxu0
        %v2142 = vadd.f32 %v1952, %v2141
        %v2143 = vpop.f32.mrb[0].mxu0
        %2144 = vmatprep.mubr.f32.mxu0 0.0
        %v2145 = vand.u32 %v306, 4294901760
        %v2146 = vsub.f32 %v306, %v2145
        %2147 = vmatmul.mubr.f32.gmra.mrb[0].mxu0 %v2146
        %v2148 = vpop.f32.mrb[0].mxu0
        %v2149 = vadd.f32 %v1958, %v2148
        %v2150 = vpop.f32.mrb[0].mxu0
        %2151 = vmatprep.mubr.f32.mxu0 0.0
        %v2152 = vand.u32 %v309, 4294901760
        %v2153 = vsub.f32 %v309, %v2152
        %2154 = vmatmul.mubr.f32.gmra.mrb[0].mxu0 %v2153
        %v2155 = vpop.f32.mrb[0].mxu0
        %v2156 = vadd.f32 %v1964, %v2155
        %v2157 = vpop.f32.mrb[0].mxu0
        %2158 = vmatprep.mubr.f32.mxu0 0.0
        %v2159 = vand.u32 %v312, 4294901760
        %v2160 = vsub.f32 %v312, %v2159
        %2161 = vmatmul.mubr.f32.gmra.mrb[0].mxu0 %v2160
        %v2162 = vpop.f32.mrb[0].mxu0
        %v2163 = vadd.f32 %v1970, %v2162
        %v2164 = vpop.f32.mrb[0].mxu0
        %2165 = vmatprep.mubr.f32.mxu0 0.0
        %v2166 = vand.u32 %v315, 4294901760
        %v2167 = vsub.f32 %v315, %v2166
        %2168 = vmatmul.mubr.f32.gmra.mrb[0].mxu0 %v2167
        %v2169 = vpop.f32.mrb[0].mxu0
        %v2170 = vadd.f32 %v1976, %v2169
        %v2171 = vpop.f32.mrb[0].mxu0
        %2172 = vmatprep.mubr.f32.mxu0 0.0
        %v2173 = vand.u32 %v318, 4294901760
        %v2174 = vsub.f32 %v318, %v2173
        %2175 = vmatmul.mubr.f32.gmra.mrb[0].mxu0 %v2174
        %v2176 = vpop.f32.mrb[0].mxu0
        %v2177 = vadd.f32 %v1982, %v2176
        %v2178 = vpop.f32.mrb[0].mxu0
        %2179 = vmatprep.mubr.f32.mxu0 0.0
        %v2180 = vand.u32 %v321, 4294901760
        %v2181 = vsub.f32 %v321, %v2180
        %2182 = vmatmul.mubr.f32.gmra.mrb[0].mxu0 %v2181
        %v2183 = vpop.f32.mrb[0].mxu0
        %v2184 = vadd.f32 %v1988, %v2183
        %v2185 = vpop.f32.mrb[0].mxu0
        %2186 = vmatprep.mubr.f32.mxu0 0.0
        %v2187 = vand.u32 %v324, 4294901760
        %v2188 = vsub.f32 %v324, %v2187
        %2189 = vmatmul.mubr.f32.gmra.mrb[0].mxu0 %v2188
        %v2190 = vpop.f32.mrb[0].mxu0
        %v2191 = vadd.f32 %v1994, %v2190
        %v2192 = vpop.f32.mrb[0].mxu0
        %2193 = vmatprep.mubr.f32.mxu0 0.0
        %v2194 = vand.u32 %v327, 4294901760
        %v2195 = vsub.f32 %v327, %v2194
        %2196 = vmatmul.mubr.f32.gmra.mrb[0].mxu0 %v2195
        %v2197 = vpop.f32.mrb[0].mxu0
        %v2198 = vadd.f32 %v2000, %v2197
        %v2199 = vpop.f32.mrb[0].mxu0
        %2200 = vmatprep.mubr.f32.mxu0 0.0
        %v2201 = vand.u32 %v330, 4294901760
        %v2202 = vsub.f32 %v330, %v2201
        %2203 = vmatmul.mubr.f32.gmra.mrb[0].mxu0 %v2202
        %v2204 = vpop.f32.mrb[0].mxu0
        %v2205 = vadd.f32 %v2006, %v2204
        %v2206 = vpop.f32.mrb[0].mxu0
        %2207 = vmatprep.mubr.f32.mxu0 0.0
        %v2208 = vand.u32 %v333, 4294901760
        %v2209 = vsub.f32 %v333, %v2208
        %2210 = vmatmul.mubr.f32.gmra.mrb[0].mxu0 %v2209
        %v2211 = vpop.f32.mrb[0].mxu0
        %v2212 = vadd.f32 %v2012, %v2211
        %v2213 = vpop.f32.mrb[0].mxu0
        %2214 = vdwg.mxu0
        %2215 = vmatprep.subr.mxu0 0.0
        %v2216 = vand.u32 %v1574, 4294901760
        %2217 = vmatpush1.msra.mxu0 %v2216
        %2218 = vmatprep.subr.mxu0 0.0
        %2219 = vmatpush1.msra.mxu0 0.0
        %2220 = vmatprep.subr.mxu0 0.0
        %2221 = vmatpush1.msra.mxu0 0.0
        %2222 = vmatprep.subr.mxu0 0.0
        %2223 = vmatpush1.msra.mxu0 0.0
        %2224 = vmatprep.subr.mxu0 0.0
        %2225 = vmatpush1.msra.mxu0 0.0
        %2226 = vmatprep.subr.mxu0 0.0
        %2227 = vmatpush1.msra.mxu0 0.0
        %2228 = vmatprep.subr.mxu0 0.0
        %2229 = vmatpush1.msra.mxu0 0.0
        %2230 = vmatprep.subr.mxu0 0.0
        %2231 = vmatpush1.msra.mxu0 0.0
        %2232 = vmatprep.subr.mxu0 0.0
        %2233 = vmatpush1.msra.mxu0 0.0
        %2234 = vmatprep.subr.mxu0 0.0
        %2235 = vmatpush1.msra.mxu0 0.0
        %2236 = vmatprep.subr.mxu0 0.0
        %2237 = vmatpush1.msra.mxu0 0.0
        %2238 = vmatprep.subr.mxu0 0.0
        %2239 = vmatpush1.msra.mxu0 0.0
        %2240 = vmatprep.subr.mxu0 0.0
        %2241 = vmatpush1.msra.mxu0 0.0
        %2242 = vmatprep.subr.mxu0 0.0
        %2243 = vmatpush1.msra.mxu0 0.0
        %2244 = vmatprep.subr.mxu0 0.0
        %2245 = vmatpush1.msra.mxu0 0.0
        %2246 = vmatprep.subr.mxu0 0.0
        %2247 = vmatpush1.msra.mxu0 0.0
        %2248 = vmatprep.subr.mxu0 0.0
        %2249 = vmatpush1.msra.mxu0 0.0
        %2250 = vmatprep.subr.mxu0 0.0
        %2251 = vmatpush1.msra.mxu0 0.0
        %2252 = vmatprep.subr.mxu0 0.0
        %2253 = vmatpush1.msra.mxu0 0.0
        %2254 = vmatprep.subr.mxu0 0.0
        %2255 = vmatpush1.msra.mxu0 0.0
        %2256 = vmatprep.subr.mxu0 0.0
        %2257 = vmatpush1.msra.mxu0 0.0
        %2258 = vmatprep.subr.mxu0 0.0
        %2259 = vmatpush1.msra.mxu0 0.0
        %2260 = vmatprep.subr.mxu0 0.0
        %2261 = vmatpush1.msra.mxu0 0.0
        %2262 = vmatprep.subr.mxu0 0.0
        %2263 = vmatpush1.msra.mxu0 0.0
        %2264 = vmatprep.subr.mxu0 0.0
        %2265 = vmatpush1.msra.mxu0 0.0
        %2266 = vmatprep.subr.mxu0 0.0
        %2267 = vmatpush1.msra.mxu0 0.0
        %2268 = vmatprep.subr.mxu0 0.0
        %2269 = vmatpush1.msra.mxu0 0.0
        %2270 = vmatprep.subr.mxu0 0.0
        %2271 = vmatpush1.msra.mxu0 0.0
        %2272 = vmatprep.subr.mxu0 0.0
        %2273 = vmatpush1.msra.mxu0 0.0
        %2274 = vmatprep.subr.mxu0 0.0
        %2275 = vmatpush1.msra.mxu0 0.0
        %2276 = vmatprep.subr.mxu0 0.0
        %2277 = vmatpush1.msra.mxu0 0.0
        %2278 = vmatprep.subr.mxu0 0.0
        %2279 = vmatpush1.msra.mxu0 0.0
        %2280 = vmatprep.mubr.f32.mxu0 0.0
        %v2281 = vand.u32 %v279, 4294901760
        %v2282 = vsub.f32 %v279, %v2281
        %v2283 = vand.u32 %v2282, 4294901760
        %2284 = vmatmul.mubr.f32.gmra.mrb[0].mxu0 %v2283
        %v2285 = vpop.f32.mrb[0].mxu0
        %v2286 = vadd.f32 %v2086, %v2285
        %v2287 = vpop.f32.mrb[0].mxu0
        %2288 = vmatprep.mubr.f32.mxu0 0.0
        %v2289 = vand.u32 %v282, 4294901760
        %v2290 = vsub.f32 %v282, %v2289
        %v2291 = vand.u32 %v2290, 4294901760
        %2292 = vmatmul.mubr.f32.gmra.mrb[0].mxu0 %v2291
        %v2293 = vpop.f32.mrb[0].mxu0
        %v2294 = vadd.f32 %v2093, %v2293
        %v2295 = vpop.f32.mrb[0].mxu0
        %2296 = vmatprep.mubr.f32.mxu0 0.0
        %v2297 = vand.u32 %v285, 4294901760
        %v2298 = vsub.f32 %v285, %v2297
        %v2299 = vand.u32 %v2298, 4294901760
        %2300 = vmatmul.mubr.f32.gmra.mrb[0].mxu0 %v2299
        %v2301 = vpop.f32.mrb[0].mxu0
        %v2302 = vadd.f32 %v2100, %v2301
        %v2303 = vpop.f32.mrb[0].mxu0
        %2304 = vmatprep.mubr.f32.mxu0 0.0
        %v2305 = vand.u32 %v288, 4294901760
        %v2306 = vsub.f32 %v288, %v2305
        %v2307 = vand.u32 %v2306, 4294901760
        %2308 = vmatmul.mubr.f32.gmra.mrb[0].mxu0 %v2307
        %v2309 = vpop.f32.mrb[0].mxu0
        %v2310 = vadd.f32 %v2107, %v2309
        %v2311 = vpop.f32.mrb[0].mxu0
        %2312 = vmatprep.mubr.f32.mxu0 0.0
        %v2313 = vand.u32 %v291, 4294901760
        %v2314 = vsub.f32 %v291, %v2313
        %v2315 = vand.u32 %v2314, 4294901760
        %2316 = vmatmul.mubr.f32.gmra.mrb[0].mxu0 %v2315
        %v2317 = vpop.f32.mrb[0].mxu0
        %v2318 = vadd.f32 %v2114, %v2317
        %v2319 = vpop.f32.mrb[0].mxu0
        %2320 = vmatprep.mubr.f32.mxu0 0.0
        %v2321 = vand.u32 %v294, 4294901760
        %v2322 = vsub.f32 %v294, %v2321
        %v2323 = vand.u32 %v2322, 4294901760
        %2324 = vmatmul.mubr.f32.gmra.mrb[0].mxu0 %v2323
        %v2325 = vpop.f32.mrb[0].mxu0
        %v2326 = vadd.f32 %v2121, %v2325
        %v2327 = vpop.f32.mrb[0].mxu0
        %2328 = vmatprep.mubr.f32.mxu0 0.0
        %v2329 = vand.u32 %v297, 4294901760
        %v2330 = vsub.f32 %v297, %v2329
        %v2331 = vand.u32 %v2330, 4294901760
        %2332 = vmatmul.mubr.f32.gmra.mrb[0].mxu0 %v2331
        %v2333 = vpop.f32.mrb[0].mxu0
        %v2334 = vadd.f32 %v2128, %v2333
        %v2335 = vpop.f32.mrb[0].mxu0
        %2336 = vmatprep.mubr.f32.mxu0 0.0
        %v2337 = vand.u32 %v300, 4294901760
        %v2338 = vsub.f32 %v300, %v2337
        %v2339 = vand.u32 %v2338, 4294901760
        %2340 = vmatmul.mubr.f32.gmra.mrb[0].mxu0 %v2339
        %v2341 = vpop.f32.mrb[0].mxu0
        %v2342 = vadd.f32 %v2135, %v2341
        %v2343 = vpop.f32.mrb[0].mxu0
        %2344 = vmatprep.mubr.f32.mxu0 0.0
        %v2345 = vand.u32 %v303, 4294901760
        %v2346 = vsub.f32 %v303, %v2345
        %v2347 = vand.u32 %v2346, 4294901760
        %2348 = vmatmul.mubr.f32.gmra.mrb[0].mxu0 %v2347
        %v2349 = vpop.f32.mrb[0].mxu0
        %v2350 = vadd.f32 %v2142, %v2349
        %v2351 = vpop.f32.mrb[0].mxu0
        %2352 = vmatprep.mubr.f32.mxu0 0.0
        %v2353 = vand.u32 %v306, 4294901760
        %v2354 = vsub.f32 %v306, %v2353
        %v2355 = vand.u32 %v2354, 4294901760
        %2356 = vmatmul.mubr.f32.gmra.mrb[0].mxu0 %v2355
        %v2357 = vpop.f32.mrb[0].mxu0
        %v2358 = vadd.f32 %v2149, %v2357
        %v2359 = vpop.f32.mrb[0].mxu0
        %2360 = vmatprep.mubr.f32.mxu0 0.0
        %v2361 = vand.u32 %v309, 4294901760
        %v2362 = vsub.f32 %v309, %v2361
        %v2363 = vand.u32 %v2362, 4294901760
        %2364 = vmatmul.mubr.f32.gmra.mrb[0].mxu0 %v2363
        %v2365 = vpop.f32.mrb[0].mxu0
        %v2366 = vadd.f32 %v2156, %v2365
        %v2367 = vpop.f32.mrb[0].mxu0
        %2368 = vmatprep.mubr.f32.mxu0 0.0
        %v2369 = vand.u32 %v312, 4294901760
        %v2370 = vsub.f32 %v312, %v2369
        %v2371 = vand.u32 %v2370, 4294901760
        %2372 = vmatmul.mubr.f32.gmra.mrb[0].mxu0 %v2371
        %v2373 = vpop.f32.mrb[0].mxu0
        %v2374 = vadd.f32 %v2163, %v2373
        %v2375 = vpop.f32.mrb[0].mxu0
        %2376 = vmatprep.mubr.f32.mxu0 0.0
        %v2377 = vand.u32 %v315, 4294901760
        %v2378 = vsub.f32 %v315, %v2377
        %v2379 = vand.u32 %v2378, 4294901760
        %2380 = vmatmul.mubr.f32.gmra.mrb[0].mxu0 %v2379
        %v2381 = vpop.f32.mrb[0].mxu0
        %v2382 = vadd.f32 %v2170, %v2381
        %v2383 = vpop.f32.mrb[0].mxu0
        %2384 = vmatprep.mubr.f32.mxu0 0.0
        %v2385 = vand.u32 %v318, 4294901760
        %v2386 = vsub.f32 %v318, %v2385
        %v2387 = vand.u32 %v2386, 4294901760
        %2388 = vmatmul.mubr.f32.gmra.mrb[0].mxu0 %v2387
        %v2389 = vpop.f32.mrb[0].mxu0
        %v2390 = vadd.f32 %v2177, %v2389
        %v2391 = vpop.f32.mrb[0].mxu0
        %2392 = vmatprep.mubr.f32.mxu0 0.0
        %v2393 = vand.u32 %v321, 4294901760
        %v2394 = vsub.f32 %v321, %v2393
        %v2395 = vand.u32 %v2394, 4294901760
        %2396 = vmatmul.mubr.f32.gmra.mrb[0].mxu0 %v2395
        %v2397 = vpop.f32.mrb[0].mxu0
        %v2398 = vadd.f32 %v2184, %v2397
        %v2399 = vpop.f32.mrb[0].mxu0
        %2400 = vmatprep.mubr.f32.mxu0 0.0
        %v2401 = vand.u32 %v324, 4294901760
        %v2402 = vsub.f32 %v324, %v2401
        %v2403 = vand.u32 %v2402, 4294901760
        %2404 = vmatmul.mubr.f32.gmra.mrb[0].mxu0 %v2403
        %v2405 = vpop.f32.mrb[0].mxu0
        %v2406 = vadd.f32 %v2191, %v2405
        %v2407 = vpop.f32.mrb[0].mxu0
        %2408 = vmatprep.mubr.f32.mxu0 0.0
        %v2409 = vand.u32 %v327, 4294901760
        %v2410 = vsub.f32 %v327, %v2409
        %v2411 = vand.u32 %v2410, 4294901760
        %2412 = vmatmul.mubr.f32.gmra.mrb[0].mxu0 %v2411
        %v2413 = vpop.f32.mrb[0].mxu0
        %v2414 = vadd.f32 %v2198, %v2413
        %v2415 = vpop.f32.mrb[0].mxu0
        %2416 = vmatprep.mubr.f32.mxu0 0.0
        %v2417 = vand.u32 %v330, 4294901760
        %v2418 = vsub.f32 %v330, %v2417
        %v2419 = vand.u32 %v2418, 4294901760
        %2420 = vmatmul.mubr.f32.gmra.mrb[0].mxu0 %v2419
        %v2421 = vpop.f32.mrb[0].mxu0
        %v2422 = vadd.f32 %v2205, %v2421
        %v2423 = vpop.f32.mrb[0].mxu0
        %2424 = vmatprep.mubr.f32.mxu0 0.0
        %v2425 = vand.u32 %v333, 4294901760
        %v2426 = vsub.f32 %v333, %v2425
        %v2427 = vand.u32 %v2426, 4294901760
        %2428 = vmatmul.mubr.f32.gmra.mrb[0].mxu0 %v2427
        %v2429 = vpop.f32.mrb[0].mxu0
        %v2430 = vadd.f32 %v2212, %v2429
        %v2431 = vpop.f32.mrb[0].mxu0
        %2432 = vdwg.mxu0
        %2433 = vmatprep.subr.mxu0 0.0
        %v2434 = vand.u32 %v1574, 4294901760
        %v2435 = vsub.f32 %v1574, %v2434
        %v2436 = vand.u32 %v2435, 4294901760
        %2437 = vmatpush1.msra.mxu0 %v2436
        %2438 = vmatprep.subr.mxu0 0.0
        %2439 = vmatpush1.msra.mxu0 0.0
        %2440 = vmatprep.subr.mxu0 0.0
        %2441 = vmatpush1.msra.mxu0 0.0
        %2442 = vmatprep.subr.mxu0 0.0
        %2443 = vmatpush1.msra.mxu0 0.0
        %2444 = vmatprep.subr.mxu0 0.0
        %2445 = vmatpush1.msra.mxu0 0.0
        %2446 = vmatprep.subr.mxu0 0.0
        %2447 = vmatpush1.msra.mxu0 0.0
        %2448 = vmatprep.subr.mxu0 0.0
        %2449 = vmatpush1.msra.mxu0 0.0
        %2450 = vmatprep.subr.mxu0 0.0
        %2451 = vmatpush1.msra.mxu0 0.0
        %2452 = vmatprep.subr.mxu0 0.0
        %2453 = vmatpush1.msra.mxu0 0.0
        %2454 = vmatprep.subr.mxu0 0.0
        %2455 = vmatpush1.msra.mxu0 0.0
        %2456 = vmatprep.subr.mxu0 0.0
        %2457 = vmatpush1.msra.mxu0 0.0
        %2458 = vmatprep.subr.mxu0 0.0
        %2459 = vmatpush1.msra.mxu0 0.0
        %2460 = vmatprep.subr.mxu0 0.0
        %2461 = vmatpush1.msra.mxu0 0.0
        %2462 = vmatprep.subr.mxu0 0.0
        %2463 = vmatpush1.msra.mxu0 0.0
        %2464 = vmatprep.subr.mxu0 0.0
        %2465 = vmatpush1.msra.mxu0 0.0
        %2466 = vmatprep.subr.mxu0 0.0
        %2467 = vmatpush1.msra.mxu0 0.0
        %2468 = vmatprep.subr.mxu0 0.0
        %2469 = vmatpush1.msra.mxu0 0.0
        %2470 = vmatprep.subr.mxu0 0.0
        %2471 = vmatpush1.msra.mxu0 0.0
        %2472 = vmatprep.subr.mxu0 0.0
        %2473 = vmatpush1.msra.mxu0 0.0
        %2474 = vmatprep.subr.mxu0 0.0
        %2475 = vmatpush1.msra.mxu0 0.0
        %2476 = vmatprep.subr.mxu0 0.0
        %2477 = vmatpush1.msra.mxu0 0.0
        %2478 = vmatprep.subr.mxu0 0.0
        %2479 = vmatpush1.msra.mxu0 0.0
        %2480 = vmatprep.subr.mxu0 0.0
        %2481 = vmatpush1.msra.mxu0 0.0
        %2482 = vmatprep.subr.mxu0 0.0
        %2483 = vmatpush1.msra.mxu0 0.0
        %2484 = vmatprep.subr.mxu0 0.0
        %2485 = vmatpush1.msra.mxu0 0.0
        %2486 = vmatprep.subr.mxu0 0.0
        %2487 = vmatpush1.msra.mxu0 0.0
        %2488 = vmatprep.subr.mxu0 0.0
        %2489 = vmatpush1.msra.mxu0 0.0
        %2490 = vmatprep.subr.mxu0 0.0
        %2491 = vmatpush1.msra.mxu0 0.0
        %2492 = vmatprep.subr.mxu0 0.0
        %2493 = vmatpush1.msra.mxu0 0.0
        %2494 = vmatprep.subr.mxu0 0.0
        %2495 = vmatpush1.msra.mxu0 0.0
        %2496 = vmatprep.subr.mxu0 0.0
        %2497 = vmatpush1.msra.mxu0 0.0
        %2498 = vmatprep.subr.mxu0 0.0
        %2499 = vmatpush1.msra.mxu0 0.0
        %2500 = vmatprep.mubr.f32.mxu0 0.0
        %v2501 = vand.u32 %v279, 4294901760
        %2502 = vmatmul.mubr.f32.gmra.mrb[0].mxu0 %v2501
        %v2503 = vpop.f32.mrb[0].mxu0
        %v2504 = vadd.f32 %v2286, %v2503
        %v2505 = vpop.f32.mrb[0].mxu0
        %2506 = vmatprep.mubr.f32.mxu0 0.0
        %v2507 = vand.u32 %v282, 4294901760
        %2508 = vmatmul.mubr.f32.gmra.mrb[0].mxu0 %v2507
        %v2509 = vpop.f32.mrb[0].mxu0
        %v2510 = vadd.f32 %v2294, %v2509
        %v2511 = vpop.f32.mrb[0].mxu0
        %2512 = vmatprep.mubr.f32.mxu0 0.0
        %v2513 = vand.u32 %v285, 4294901760
        %2514 = vmatmul.mubr.f32.gmra.mrb[0].mxu0 %v2513
        %v2515 = vpop.f32.mrb[0].mxu0
        %v2516 = vadd.f32 %v2302, %v2515
        %v2517 = vpop.f32.mrb[0].mxu0
        %2518 = vmatprep.mubr.f32.mxu0 0.0
        %v2519 = vand.u32 %v288, 4294901760
        %2520 = vmatmul.mubr.f32.gmra.mrb[0].mxu0 %v2519
        %v2521 = vpop.f32.mrb[0].mxu0
        %v2522 = vadd.f32 %v2310, %v2521
        %v2523 = vpop.f32.mrb[0].mxu0
        %2524 = vmatprep.mubr.f32.mxu0 0.0
        %v2525 = vand.u32 %v291, 4294901760
        %2526 = vmatmul.mubr.f32.gmra.mrb[0].mxu0 %v2525
        %v2527 = vpop.f32.mrb[0].mxu0
        %v2528 = vadd.f32 %v2318, %v2527
        %v2529 = vpop.f32.mrb[0].mxu0
        %2530 = vmatprep.mubr.f32.mxu0 0.0
        %v2531 = vand.u32 %v294, 4294901760
        %2532 = vmatmul.mubr.f32.gmra.mrb[0].mxu0 %v2531
        %v2533 = vpop.f32.mrb[0].mxu0
        %v2534 = vadd.f32 %v2326, %v2533
        %v2535 = vpop.f32.mrb[0].mxu0
        %2536 = vmatprep.mubr.f32.mxu0 0.0
        %v2537 = vand.u32 %v297, 4294901760
        %2538 = vmatmul.mubr.f32.gmra.mrb[0].mxu0 %v2537
        %v2539 = vpop.f32.mrb[0].mxu0
        %v2540 = vadd.f32 %v2334, %v2539
        %v2541 = vpop.f32.mrb[0].mxu0
        %2542 = vmatprep.mubr.f32.mxu0 0.0
        %v2543 = vand.u32 %v300, 4294901760
        %2544 = vmatmul.mubr.f32.gmra.mrb[0].mxu0 %v2543
        %v2545 = vpop.f32.mrb[0].mxu0
        %v2546 = vadd.f32 %v2342, %v2545
        %v2547 = vpop.f32.mrb[0].mxu0
        %2548 = vmatprep.mubr.f32.mxu0 0.0
        %v2549 = vand.u32 %v303, 4294901760
        %2550 = vmatmul.mubr.f32.gmra.mrb[0].mxu0 %v2549
        %v2551 = vpop.f32.mrb[0].mxu0
        %v2552 = vadd.f32 %v2350, %v2551
        %v2553 = vpop.f32.mrb[0].mxu0
        %2554 = vmatprep.mubr.f32.mxu0 0.0
        %v2555 = vand.u32 %v306, 4294901760
        %2556 = vmatmul.mubr.f32.gmra.mrb[0].mxu0 %v2555
        %v2557 = vpop.f32.mrb[0].mxu0
        %v2558 = vadd.f32 %v2358, %v2557
        %v2559 = vpop.f32.mrb[0].mxu0
        %2560 = vmatprep.mubr.f32.mxu0 0.0
        %v2561 = vand.u32 %v309, 4294901760
        %2562 = vmatmul.mubr.f32.gmra.mrb[0].mxu0 %v2561
        %v2563 = vpop.f32.mrb[0].mxu0
        %v2564 = vadd.f32 %v2366, %v2563
        %v2565 = vpop.f32.mrb[0].mxu0
        %2566 = vmatprep.mubr.f32.mxu0 0.0
        %v2567 = vand.u32 %v312, 4294901760
        %2568 = vmatmul.mubr.f32.gmra.mrb[0].mxu0 %v2567
        %v2569 = vpop.f32.mrb[0].mxu0
        %v2570 = vadd.f32 %v2374, %v2569
        %v2571 = vpop.f32.mrb[0].mxu0
        %2572 = vmatprep.mubr.f32.mxu0 0.0
        %v2573 = vand.u32 %v315, 4294901760
        %2574 = vmatmul.mubr.f32.gmra.mrb[0].mxu0 %v2573
        %v2575 = vpop.f32.mrb[0].mxu0
        %v2576 = vadd.f32 %v2382, %v2575
        %v2577 = vpop.f32.mrb[0].mxu0
        %2578 = vmatprep.mubr.f32.mxu0 0.0
        %v2579 = vand.u32 %v318, 4294901760
        %2580 = vmatmul.mubr.f32.gmra.mrb[0].mxu0 %v2579
        %v2581 = vpop.f32.mrb[0].mxu0
        %v2582 = vadd.f32 %v2390, %v2581
        %v2583 = vpop.f32.mrb[0].mxu0
        %2584 = vmatprep.mubr.f32.mxu0 0.0
        %v2585 = vand.u32 %v321, 4294901760
        %2586 = vmatmul.mubr.f32.gmra.mrb[0].mxu0 %v2585
        %v2587 = vpop.f32.mrb[0].mxu0
        %v2588 = vadd.f32 %v2398, %v2587
        %v2589 = vpop.f32.mrb[0].mxu0
        %2590 = vmatprep.mubr.f32.mxu0 0.0
        %v2591 = vand.u32 %v324, 4294901760
        %2592 = vmatmul.mubr.f32.gmra.mrb[0].mxu0 %v2591
        %v2593 = vpop.f32.mrb[0].mxu0
        %v2594 = vadd.f32 %v2406, %v2593
        %v2595 = vpop.f32.mrb[0].mxu0
        %2596 = vmatprep.mubr.f32.mxu0 0.0
        %v2597 = vand.u32 %v327, 4294901760
        %2598 = vmatmul.mubr.f32.gmra.mrb[0].mxu0 %v2597
        %v2599 = vpop.f32.mrb[0].mxu0
        %v2600 = vadd.f32 %v2414, %v2599
        %v2601 = vpop.f32.mrb[0].mxu0
        %2602 = vmatprep.mubr.f32.mxu0 0.0
        %v2603 = vand.u32 %v330, 4294901760
        %2604 = vmatmul.mubr.f32.gmra.mrb[0].mxu0 %v2603
        %v2605 = vpop.f32.mrb[0].mxu0
        %v2606 = vadd.f32 %v2422, %v2605
        %v2607 = vpop.f32.mrb[0].mxu0
        %2608 = vmatprep.mubr.f32.mxu0 0.0
        %v2609 = vand.u32 %v333, 4294901760
        %2610 = vmatmul.mubr.f32.gmra.mrb[0].mxu0 %v2609
        %v2611 = vpop.f32.mrb[0].mxu0
        %v2612 = vadd.f32 %v2430, %v2611
        %v2613 = vpop.f32.mrb[0].mxu0
        %2614 = vdwg.mxu0
        %2615 = vmatprep.subr.mxu0 0.0
        %v2616 = vand.u32 %v1574, 4294901760
        %2617 = vmatpush1.msra.mxu0 %v2616
        %2618 = vmatprep.subr.mxu0 0.0
        %2619 = vmatpush1.msra.mxu0 0.0
        %2620 = vmatprep.subr.mxu0 0.0
        %2621 = vmatpush1.msra.mxu0 0.0
        %2622 = vmatprep.subr.mxu0 0.0
        %2623 = vmatpush1.msra.mxu0 0.0
        %2624 = vmatprep.subr.mxu0 0.0
        %2625 = vmatpush1.msra.mxu0 0.0
        %2626 = vmatprep.subr.mxu0 0.0
        %2627 = vmatpush1.msra.mxu0 0.0
        %2628 = vmatprep.subr.mxu0 0.0
        %2629 = vmatpush1.msra.mxu0 0.0
        %2630 = vmatprep.subr.mxu0 0.0
        %2631 = vmatpush1.msra.mxu0 0.0
        %2632 = vmatprep.subr.mxu0 0.0
        %2633 = vmatpush1.msra.mxu0 0.0
        %2634 = vmatprep.subr.mxu0 0.0
        %2635 = vmatpush1.msra.mxu0 0.0
        %2636 = vmatprep.subr.mxu0 0.0
        %2637 = vmatpush1.msra.mxu0 0.0
        %2638 = vmatprep.subr.mxu0 0.0
        %2639 = vmatpush1.msra.mxu0 0.0
        %2640 = vmatprep.subr.mxu0 0.0
        %2641 = vmatpush1.msra.mxu0 0.0
        %2642 = vmatprep.subr.mxu0 0.0
        %2643 = vmatpush1.msra.mxu0 0.0
        %2644 = vmatprep.subr.mxu0 0.0
        %2645 = vmatpush1.msra.mxu0 0.0
        %2646 = vmatprep.subr.mxu0 0.0
        %2647 = vmatpush1.msra.mxu0 0.0
        %2648 = vmatprep.subr.mxu0 0.0
        %2649 = vmatpush1.msra.mxu0 0.0
        %2650 = vmatprep.subr.mxu0 0.0
        %2651 = vmatpush1.msra.mxu0 0.0
        %2652 = vmatprep.subr.mxu0 0.0
        %2653 = vmatpush1.msra.mxu0 0.0
        %2654 = vmatprep.subr.mxu0 0.0
        %2655 = vmatpush1.msra.mxu0 0.0
        %2656 = vmatprep.subr.mxu0 0.0
        %2657 = vmatpush1.msra.mxu0 0.0
        %2658 = vmatprep.subr.mxu0 0.0
        %2659 = vmatpush1.msra.mxu0 0.0
        %2660 = vmatprep.subr.mxu0 0.0
        %2661 = vmatpush1.msra.mxu0 0.0
        %2662 = vmatprep.subr.mxu0 0.0
        %2663 = vmatpush1.msra.mxu0 0.0
        %2664 = vmatprep.subr.mxu0 0.0
        %2665 = vmatpush1.msra.mxu0 0.0
        %2666 = vmatprep.subr.mxu0 0.0
        %2667 = vmatpush1.msra.mxu0 0.0
        %2668 = vmatprep.subr.mxu0 0.0
        %2669 = vmatpush1.msra.mxu0 0.0
        %2670 = vmatprep.subr.mxu0 0.0
        %2671 = vmatpush1.msra.mxu0 0.0
        %2672 = vmatprep.subr.mxu0 0.0
        %2673 = vmatpush1.msra.mxu0 0.0
        %2674 = vmatprep.subr.mxu0 0.0
        %2675 = vmatpush1.msra.mxu0 0.0
        %2676 = vmatprep.subr.mxu0 0.0
        %2677 = vmatpush1.msra.mxu0 0.0
        %2678 = vmatprep.subr.mxu0 0.0
        %2679 = vmatpush1.msra.mxu0 0.0
        %2680 = vmatprep.mubr.f32.mxu0 0.0
        %v2681 = vand.u32 %v279, 4294901760
        %2682 = vmatmul.mubr.f32.gmra.mrb[0].mxu0 %v2681
        %v2683 = vpop.f32.mrb[0].mxu0
        %v2684 = vadd.f32 %v2504, %v2683
        %v2685 = vpop.f32.mrb[0].mxu0
        %2686 = vmatprep.mubr.f32.mxu0 0.0
        %v2687 = vand.u32 %v282, 4294901760
        %2688 = vmatmul.mubr.f32.gmra.mrb[0].mxu0 %v2687
        %v2689 = vpop.f32.mrb[0].mxu0
        %v2690 = vadd.f32 %v2510, %v2689
        %v2691 = vpop.f32.mrb[0].mxu0
        %2692 = vmatprep.mubr.f32.mxu0 0.0
        %v2693 = vand.u32 %v285, 4294901760
        %2694 = vmatmul.mubr.f32.gmra.mrb[0].mxu0 %v2693
        %v2695 = vpop.f32.mrb[0].mxu0
        %v2696 = vadd.f32 %v2516, %v2695
        %v2697 = vpop.f32.mrb[0].mxu0
        %2698 = vmatprep.mubr.f32.mxu0 0.0
        %v2699 = vand.u32 %v288, 4294901760
        %2700 = vmatmul.mubr.f32.gmra.mrb[0].mxu0 %v2699
        %v2701 = vpop.f32.mrb[0].mxu0
        %v2702 = vadd.f32 %v2522, %v2701
        %v2703 = vpop.f32.mrb[0].mxu0
        %2704 = vmatprep.mubr.f32.mxu0 0.0
        %v2705 = vand.u32 %v291, 4294901760
        %2706 = vmatmul.mubr.f32.gmra.mrb[0].mxu0 %v2705
        %v2707 = vpop.f32.mrb[0].mxu0
        %v2708 = vadd.f32 %v2528, %v2707
        %v2709 = vpop.f32.mrb[0].mxu0
        %2710 = vmatprep.mubr.f32.mxu0 0.0
        %v2711 = vand.u32 %v294, 4294901760
        %2712 = vmatmul.mubr.f32.gmra.mrb[0].mxu0 %v2711
        %v2713 = vpop.f32.mrb[0].mxu0
        %v2714 = vadd.f32 %v2534, %v2713
        %v2715 = vpop.f32.mrb[0].mxu0
        %2716 = vmatprep.mubr.f32.mxu0 0.0
        %v2717 = vand.u32 %v297, 4294901760
        %2718 = vmatmul.mubr.f32.gmra.mrb[0].mxu0 %v2717
        %v2719 = vpop.f32.mrb[0].mxu0
        %v2720 = vadd.f32 %v2540, %v2719
        %v2721 = vpop.f32.mrb[0].mxu0
        %2722 = vmatprep.mubr.f32.mxu0 0.0
        %v2723 = vand.u32 %v300, 4294901760
        %2724 = vmatmul.mubr.f32.gmra.mrb[0].mxu0 %v2723
        %v2725 = vpop.f32.mrb[0].mxu0
        %v2726 = vadd.f32 %v2546, %v2725
        %v2727 = vpop.f32.mrb[0].mxu0
        %2728 = vmatprep.mubr.f32.mxu0 0.0
        %v2729 = vand.u32 %v303, 4294901760
        %2730 = vmatmul.mubr.f32.gmra.mrb[0].mxu0 %v2729
        %v2731 = vpop.f32.mrb[0].mxu0
        %v2732 = vadd.f32 %v2552, %v2731
        %v2733 = vpop.f32.mrb[0].mxu0
        %2734 = vmatprep.mubr.f32.mxu0 0.0
        %v2735 = vand.u32 %v306, 4294901760
        %2736 = vmatmul.mubr.f32.gmra.mrb[0].mxu0 %v2735
        %v2737 = vpop.f32.mrb[0].mxu0
        %v2738 = vadd.f32 %v2558, %v2737
        %v2739 = vpop.f32.mrb[0].mxu0
        %2740 = vmatprep.mubr.f32.mxu0 0.0
        %v2741 = vand.u32 %v309, 4294901760
        %2742 = vmatmul.mubr.f32.gmra.mrb[0].mxu0 %v2741
        %v2743 = vpop.f32.mrb[0].mxu0
        %v2744 = vadd.f32 %v2564, %v2743
        %v2745 = vpop.f32.mrb[0].mxu0
        %2746 = vmatprep.mubr.f32.mxu0 0.0
        %v2747 = vand.u32 %v312, 4294901760
        %2748 = vmatmul.mubr.f32.gmra.mrb[0].mxu0 %v2747
        %v2749 = vpop.f32.mrb[0].mxu0
        %v2750 = vadd.f32 %v2570, %v2749
        %v2751 = vpop.f32.mrb[0].mxu0
        %2752 = vmatprep.mubr.f32.mxu0 0.0
        %v2753 = vand.u32 %v315, 4294901760
        %2754 = vmatmul.mubr.f32.gmra.mrb[0].mxu0 %v2753
        %v2755 = vpop.f32.mrb[0].mxu0
        %v2756 = vadd.f32 %v2576, %v2755
        %v2757 = vpop.f32.mrb[0].mxu0
        %2758 = vmatprep.mubr.f32.mxu0 0.0
        %v2759 = vand.u32 %v318, 4294901760
        %2760 = vmatmul.mubr.f32.gmra.mrb[0].mxu0 %v2759
        %v2761 = vpop.f32.mrb[0].mxu0
        %v2762 = vadd.f32 %v2582, %v2761
        %v2763 = vpop.f32.mrb[0].mxu0
        %2764 = vmatprep.mubr.f32.mxu0 0.0
        %v2765 = vand.u32 %v321, 4294901760
        %2766 = vmatmul.mubr.f32.gmra.mrb[0].mxu0 %v2765
        %v2767 = vpop.f32.mrb[0].mxu0
        %v2768 = vadd.f32 %v2588, %v2767
        %v2769 = vpop.f32.mrb[0].mxu0
        %2770 = vmatprep.mubr.f32.mxu0 0.0
        %v2771 = vand.u32 %v324, 4294901760
        %2772 = vmatmul.mubr.f32.gmra.mrb[0].mxu0 %v2771
        %v2773 = vpop.f32.mrb[0].mxu0
        %v2774 = vadd.f32 %v2594, %v2773
        %v2775 = vpop.f32.mrb[0].mxu0
        %2776 = vmatprep.mubr.f32.mxu0 0.0
        %v2777 = vand.u32 %v327, 4294901760
        %2778 = vmatmul.mubr.f32.gmra.mrb[0].mxu0 %v2777
        %v2779 = vpop.f32.mrb[0].mxu0
        %v2780 = vadd.f32 %v2600, %v2779
        %v2781 = vpop.f32.mrb[0].mxu0
        %2782 = vmatprep.mubr.f32.mxu0 0.0
        %v2783 = vand.u32 %v330, 4294901760
        %2784 = vmatmul.mubr.f32.gmra.mrb[0].mxu0 %v2783
        %v2785 = vpop.f32.mrb[0].mxu0
        %v2786 = vadd.f32 %v2606, %v2785
        %v2787 = vpop.f32.mrb[0].mxu0
        %2788 = vmatprep.mubr.f32.mxu0 0.0
        %v2789 = vand.u32 %v333, 4294901760
        %2790 = vmatmul.mubr.f32.gmra.mrb[0].mxu0 %v2789
        %v2791 = vpop.f32.mrb[0].mxu0
        %v2792 = vadd.f32 %v2612, %v2791
        %v2793 = vpop.f32.mrb[0].mxu0
        %2794 = vdwg.mxu0
        %v2795 = vmin.f32 %v1555, %v2684
        %v2796 = vmin.f32 %v1556, %v2690
        %v2797 = vmin.f32 %v1557, %v2696
        %v2798 = vmin.f32 %v1558, %v2702
        %v2799 = vmin.f32 %v1559, %v2708
        %v2800 = vmin.f32 %v1560, %v2714
        %v2801 = vmin.f32 %v1561, %v2720
        %v2802 = vmin.f32 %v1562, %v2726
        %v2803 = vmin.f32 %v1563, %v2732
        %v2804 = vmin.f32 %v1564, %v2738
        %v2805 = vmin.f32 %v1565, %v2744
        %v2806 = vmin.f32 %v1566, %v2750
        %v2807 = vmin.f32 %v1567, %v2756
        %v2808 = vmin.f32 %v1568, %v2762
        %v2809 = vmin.f32 %v1569, %v2768
        %v2810 = vmin.f32 %v1570, %v2774
        %v2811 = vmin.f32 %v1571, %v2780
        %v2812 = vmin.f32 %v1572, %v2786
        %v2813 = vmin.f32 %v1573, %v2792
        %2814 = vst [vmem:[#allocation2] sm:$0xff] %v2795
        %2815 = vst [vmem:[#allocation2 + $0x8] sm:$0xff] %v2796
        %2816 = vst [vmem:[#allocation2 + $0x10] sm:$0xff] %v2797
        %2817 = vst [vmem:[#allocation2 + $0x18] sm:$0xff] %v2798
        %2818 = vst [vmem:[#allocation2 + $0x20] sm:$0xff] %v2799
        %2819 = vst [vmem:[#allocation2 + $0x28] sm:$0xff] %v2800
        %2820 = vst [vmem:[#allocation2 + $0x30] sm:$0xff] %v2801
        %2821 = vst [vmem:[#allocation2 + $0x38] sm:$0xff] %v2802
        %2822 = vst [vmem:[#allocation2 + $0x40] sm:$0xff] %v2803
        %2823 = vst [vmem:[#allocation2 + $0x48] sm:$0xff] %v2804
        %2824 = vst [vmem:[#allocation2 + $0x50] sm:$0xff] %v2805
        %2825 = vst [vmem:[#allocation2 + $0x58] sm:$0xff] %v2806
        %2826 = vst [vmem:[#allocation2 + $0x60] sm:$0xff] %v2807
        %2827 = vst [vmem:[#allocation2 + $0x68] sm:$0xff] %v2808
        %2828 = vst [vmem:[#allocation2 + $0x70] sm:$0xff] %v2809
        %2829 = vst [vmem:[#allocation2 + $0x78] sm:$0xff] %v2810
        %2830 = vst [vmem:[#allocation2 + $0x80] sm:$0xff] %v2811
        %2831 = vst [vmem:[#allocation2 + $0x88] sm:$0xff] %v2812
        %2832 = vst [vmem:[#allocation2 + $0x90] sm:$0xff] %v2813
        // Predicated region
        $region33: #{tpu_custom_call.1} parent=27 // pred_check
          %p2833 = pneg %p234
        $region34: #{tpu_custom_call.1} parent=27 // pred_check_branch
          %2835 = sbr.rel (%p2833) target = $region36
        $region35: #{tpu_custom_call.1} parent=27 // pred_region
          %v2836 = vld [vmem:[#allocation2] sm:$0xff]
          %v2837 = vld [vmem:[#allocation2 + $0x8] sm:$0xff]
          %v2838 = vld [vmem:[#allocation2 + $0x10] sm:$0xff]
          %v2839 = vld [vmem:[#allocation2 + $0x18] sm:$0xff]
          %v2840 = vld [vmem:[#allocation2 + $0x20] sm:$0xff]
          %v2841 = vld [vmem:[#allocation2 + $0x28] sm:$0xff]
          %v2842 = vld [vmem:[#allocation2 + $0x30] sm:$0xff]
          %v2843 = vld [vmem:[#allocation2 + $0x38] sm:$0xff]
          %v2844 = vld [vmem:[#allocation2 + $0x40] sm:$0xff]
          %v2845 = vld [vmem:[#allocation2 + $0x48] sm:$0xff]
          %v2846 = vld [vmem:[#allocation2 + $0x50] sm:$0xff]
          %v2847 = vld [vmem:[#allocation2 + $0x58] sm:$0xff]
          %v2848 = vld [vmem:[#allocation2 + $0x60] sm:$0xff]
          %v2849 = vld [vmem:[#allocation2 + $0x68] sm:$0xff]
          %v2850 = vld [vmem:[#allocation2 + $0x70] sm:$0xff]
          %v2851 = vld [vmem:[#allocation2 + $0x78] sm:$0xff]
          %v2852 = vld [vmem:[#allocation2 + $0x80] sm:$0xff]
          %v2853 = vld [vmem:[#allocation2 + $0x88] sm:$0xff]
          %v2854 = vld [vmem:[#allocation2 + $0x90] sm:$0xff]
          %2855 = vmin.xlane.f32.xlu0 %v2836
          %v2856 = vpop.xlane.xlu0 %2855
          %2857 = vmin.xlane.f32.xlu0 %v2837
          %v2858 = vpop.xlane.xlu0 %2857
          %2859 = vmin.xlane.f32.xlu0 %v2838
          %v2860 = vpop.xlane.xlu0 %2859
          %2861 = vmin.xlane.f32.xlu0 %v2839
          %v2862 = vpop.xlane.xlu0 %2861
          %2863 = vmin.xlane.f32.xlu0 %v2840
          %v2864 = vpop.xlane.xlu0 %2863
          %2865 = vmin.xlane.f32.xlu0 %v2841
          %v2866 = vpop.xlane.xlu0 %2865
          %2867 = vmin.xlane.f32.xlu0 %v2842
          %v2868 = vpop.xlane.xlu0 %2867
          %2869 = vmin.xlane.f32.xlu0 %v2843
          %v2870 = vpop.xlane.xlu0 %2869
          %2871 = vmin.xlane.f32.xlu0 %v2844
          %v2872 = vpop.xlane.xlu0 %2871
          %2873 = vmin.xlane.f32.xlu0 %v2845
          %v2874 = vpop.xlane.xlu0 %2873
          %2875 = vmin.xlane.f32.xlu0 %v2846
          %v2876 = vpop.xlane.xlu0 %2875
          %2877 = vmin.xlane.f32.xlu0 %v2847
          %v2878 = vpop.xlane.xlu0 %2877
          %2879 = vmin.xlane.f32.xlu0 %v2848
          %v2880 = vpop.xlane.xlu0 %2879
          %2881 = vmin.xlane.f32.xlu0 %v2849
          %v2882 = vpop.xlane.xlu0 %2881
          %2883 = vmin.xlane.f32.xlu0 %v2850
          %v2884 = vpop.xlane.xlu0 %2883
          %2885 = vmin.xlane.f32.xlu0 %v2851
          %v2886 = vpop.xlane.xlu0 %2885
          %2887 = vmin.xlane.f32.xlu0 %v2852
          %v2888 = vpop.xlane.xlu0 %2887
          %2889 = vmin.xlane.f32.xlu0 %v2853
          %v2890 = vpop.xlane.xlu0 %2889
          %2891 = vmin.xlane.f32.xlu0 %v2854
          %v2892 = vpop.xlane.xlu0 %2891
          %v2893 = vmul.f32 %v215, %v215
          %v2894 = vmul.f32 %v216, %v216
          %v2895 = vmul.f32 %v217, %v217
          %v2896 = vmul.f32 %v218, %v218
          %v2897 = vmul.f32 %v219, %v219
          %v2898 = vmul.f32 %v220, %v220
          %v2899 = vmul.f32 %v221, %v221
          %v2900 = vmul.f32 %v222, %v222
          %v2901 = vmul.f32 %v223, %v223
          %v2902 = vmul.f32 %v224, %v224
          %v2903 = vmul.f32 %v225, %v225
          %v2904 = vmul.f32 %v226, %v226
          %v2905 = vmul.f32 %v227, %v227
          %v2906 = vmul.f32 %v228, %v228
          %v2907 = vmul.f32 %v229, %v229
          %v2908 = vmul.f32 %v230, %v230
          %v2909 = vmul.f32 %v231, %v231
          %v2910 = vmul.f32 %v232, %v232
          %v2911 = vmul.f32 %v233, %v233
          %v2912 = vsel %vm277, %v2893, 0.0
          %2913 = vadd.xlane.f32.xlu0 %v2912
          %v2914 = vpop.xlane.xlu0 %2913
          %v2915 = vsel %vm277, %v2894, 0.0
          %2916 = vadd.xlane.f32.xlu0 %v2915
          %v2917 = vpop.xlane.xlu0 %2916
          %v2918 = vsel %vm277, %v2895, 0.0
          %2919 = vadd.xlane.f32.xlu0 %v2918
          %v2920 = vpop.xlane.xlu0 %2919
          %v2921 = vsel %vm277, %v2896, 0.0
          %2922 = vadd.xlane.f32.xlu0 %v2921
          %v2923 = vpop.xlane.xlu0 %2922
          %v2924 = vsel %vm277, %v2897, 0.0
          %2925 = vadd.xlane.f32.xlu0 %v2924
          %v2926 = vpop.xlane.xlu0 %2925
          %v2927 = vsel %vm277, %v2898, 0.0
          %2928 = vadd.xlane.f32.xlu0 %v2927
          %v2929 = vpop.xlane.xlu0 %2928
          %v2930 = vsel %vm277, %v2899, 0.0
          %2931 = vadd.xlane.f32.xlu0 %v2930
          %v2932 = vpop.xlane.xlu0 %2931
          %v2933 = vsel %vm277, %v2900, 0.0
          %2934 = vadd.xlane.f32.xlu0 %v2933
          %v2935 = vpop.xlane.xlu0 %2934
          %v2936 = vsel %vm277, %v2901, 0.0
          %2937 = vadd.xlane.f32.xlu0 %v2936
          %v2938 = vpop.xlane.xlu0 %2937
          %v2939 = vsel %vm277, %v2902, 0.0
          %2940 = vadd.xlane.f32.xlu0 %v2939
          %v2941 = vpop.xlane.xlu0 %2940
          %v2942 = vsel %vm277, %v2903, 0.0
          %2943 = vadd.xlane.f32.xlu0 %v2942
          %v2944 = vpop.xlane.xlu0 %2943
          %v2945 = vsel %vm277, %v2904, 0.0
          %2946 = vadd.xlane.f32.xlu0 %v2945
          %v2947 = vpop.xlane.xlu0 %2946
          %v2948 = vsel %vm277, %v2905, 0.0
          %2949 = vadd.xlane.f32.xlu0 %v2948
          %v2950 = vpop.xlane.xlu0 %2949
          %v2951 = vsel %vm277, %v2906, 0.0
          %2952 = vadd.xlane.f32.xlu0 %v2951
          %v2953 = vpop.xlane.xlu0 %2952
          %v2954 = vsel %vm277, %v2907, 0.0
          %2955 = vadd.xlane.f32.xlu0 %v2954
          %v2956 = vpop.xlane.xlu0 %2955
          %v2957 = vsel %vm277, %v2908, 0.0
          %2958 = vadd.xlane.f32.xlu0 %v2957
          %v2959 = vpop.xlane.xlu0 %2958
          %v2960 = vsel %vm277, %v2909, 0.0
          %2961 = vadd.xlane.f32.xlu0 %v2960
          %v2962 = vpop.xlane.xlu0 %2961
          %v2963 = vsel %vm277, %v2910, 0.0
          %2964 = vadd.xlane.f32.xlu0 %v2963
          %v2965 = vpop.xlane.xlu0 %2964
          %v2966 = vsel %vm277, %v2911, 0.0
          %2967 = vadd.xlane.f32.xlu0 %v2966
          %v2968 = vpop.xlane.xlu0 %2967
          %v2969 = vsub.f32 %v2914, 1.0
          %v2970 = vsub.f32 %v2917, 1.0
          %v2971 = vsub.f32 %v2920, 1.0
          %v2972 = vsub.f32 %v2923, 1.0
          %v2973 = vsub.f32 %v2926, 1.0
          %v2974 = vsub.f32 %v2929, 1.0
          %v2975 = vsub.f32 %v2932, 1.0
          %v2976 = vsub.f32 %v2935, 1.0
          %v2977 = vsub.f32 %v2938, 1.0
          %v2978 = vsub.f32 %v2941, 1.0
          %v2979 = vsub.f32 %v2944, 1.0
          %v2980 = vsub.f32 %v2947, 1.0
          %v2981 = vsub.f32 %v2950, 1.0
          %v2982 = vsub.f32 %v2953, 1.0
          %v2983 = vsub.f32 %v2956, 1.0
          %v2984 = vsub.f32 %v2959, 1.0
          %v2985 = vsub.f32 %v2962, 1.0
          %v2986 = vsub.f32 %v2965, 1.0
          %v2987 = vsub.f32 %v2968, 1.0
          %v2988 = vmul.f32 %v2969, 0.5
          %v2989 = vmul.f32 %v2970, 0.5
          %v2990 = vmul.f32 %v2971, 0.5
          %v2991 = vmul.f32 %v2972, 0.5
          %v2992 = vmul.f32 %v2973, 0.5
          %v2993 = vmul.f32 %v2974, 0.5
          %v2994 = vmul.f32 %v2975, 0.5
          %v2995 = vmul.f32 %v2976, 0.5
          %v2996 = vmul.f32 %v2977, 0.5
          %v2997 = vmul.f32 %v2978, 0.5
          %v2998 = vmul.f32 %v2979, 0.5
          %v2999 = vmul.f32 %v2980, 0.5
          %v3000 = vmul.f32 %v2981, 0.5
          %v3001 = vmul.f32 %v2982, 0.5
          %v3002 = vmul.f32 %v2983, 0.5
          %v3003 = vmul.f32 %v2984, 0.5
          %v3004 = vmul.f32 %v2985, 0.5
          %v3005 = vmul.f32 %v2986, 0.5
          %v3006 = vmul.f32 %v2987, 0.5
          %v3007 = vadd.f32 %v2988, %v2856
          %v3008 = vadd.f32 %v2989, %v2858
          %v3009 = vadd.f32 %v2990, %v2860
          %v3010 = vadd.f32 %v2991, %v2862
          %v3011 = vadd.f32 %v2992, %v2864
          %v3012 = vadd.f32 %v2993, %v2866
          %v3013 = vadd.f32 %v2994, %v2868
          %v3014 = vadd.f32 %v2995, %v2870
          %v3015 = vadd.f32 %v2996, %v2872
          %v3016 = vadd.f32 %v2997, %v2874
          %v3017 = vadd.f32 %v2998, %v2876
          %v3018 = vadd.f32 %v2999, %v2878
          %v3019 = vadd.f32 %v3000, %v2880
          %v3020 = vadd.f32 %v3001, %v2882
          %v3021 = vadd.f32 %v3002, %v2884
          %v3022 = vadd.f32 %v3003, %v2886
          %v3023 = vadd.f32 %v3004, %v2888
          %v3024 = vadd.f32 %v3005, %v2890
          %v3025 = vadd.f32 %v3006, %v2892
          %v3026 = vmul.f32 %v3007, 2.0
          %v3027 = vmul.f32 %v3008, 2.0
          %v3028 = vmul.f32 %v3009, 2.0
          %v3029 = vmul.f32 %v3010, 2.0
          %v3030 = vmul.f32 %v3011, 2.0
          %v3031 = vmul.f32 %v3012, 2.0
          %v3032 = vmul.f32 %v3013, 2.0
          %v3033 = vmul.f32 %v3014, 2.0
          %v3034 = vmul.f32 %v3015, 2.0
          %v3035 = vmul.f32 %v3016, 2.0
          %v3036 = vmul.f32 %v3017, 2.0
          %v3037 = vmul.f32 %v3018, 2.0
          %v3038 = vmul.f32 %v3019, 2.0
          %v3039 = vmul.f32 %v3020, 2.0
          %v3040 = vmul.f32 %v3021, 2.0
          %v3041 = vmul.f32 %v3022, 2.0
          %v3042 = vmul.f32 %v3023, 2.0
          %v3043 = vmul.f32 %v3024, 2.0
          %v3044 = vmul.f32 %v3025, 2.0
          %v3045 = vmax.f32 %v3026, 0.0
          %v3046 = vmax.f32 %v3027, 0.0
          %v3047 = vmax.f32 %v3028, 0.0
          %v3048 = vmax.f32 %v3029, 0.0
          %v3049 = vmax.f32 %v3030, 0.0
          %v3050 = vmax.f32 %v3031, 0.0
          %v3051 = vmax.f32 %v3032, 0.0
          %v3052 = vmax.f32 %v3033, 0.0
          %v3053 = vmax.f32 %v3034, 0.0
          %v3054 = vmax.f32 %v3035, 0.0
          %v3055 = vmax.f32 %v3036, 0.0
          %v3056 = vmax.f32 %v3037, 0.0
          %v3057 = vmax.f32 %v3038, 0.0
          %v3058 = vmax.f32 %v3039, 0.0
          %v3059 = vmax.f32 %v3040, 0.0
          %v3060 = vmax.f32 %v3041, 0.0
          %v3061 = vmax.f32 %v3042, 0.0
          %v3062 = vmax.f32 %v3043, 0.0
          %v3063 = vmax.f32 %v3044, 0.0
          %v3064 = vlaneseq
          %v3065 = vshrl.u32 %v3064, 7
          %v3066 = vadd.s32 %v3065, 8
          %v3067 = vadd.s32 %v3065, 16
          %v3068 = vadd.s32 %v3065, 24
          %v3069 = vadd.s32 %v3065, 32
          %v3070 = vadd.s32 %v3065, 40
          %v3071 = vadd.s32 %v3065, 48
          %v3072 = vadd.s32 %v3065, 56
          %v3073 = vadd.s32 %v3065, 64
          %v3074 = vadd.s32 %v3065, 72
          %v3075 = vadd.s32 %v3065, 80
          %v3076 = vadd.s32 %v3065, 88
          %v3077 = vadd.s32 %v3065, 96
          %v3078 = vadd.s32 %v3065, 104
          %v3079 = vadd.s32 %v3065, 112
          %v3080 = vadd.s32 %v3065, 120
          %v3081 = vadd.s32 %v3065, 128
          %v3082 = vadd.s32 %v3065, 136
          %v3083 = vadd.s32 %v3065, 144
          %s3084 = smul.u32 %s22, 152
          %v3085 = vstv %s3084
          %v3086 = vadd.s32 %v3065, %v3085
          %v3087 = vadd.s32 %v3066, %v3085
          %v3088 = vadd.s32 %v3067, %v3085
          %v3089 = vadd.s32 %v3068, %v3085
          %v3090 = vadd.s32 %v3069, %v3085
          %v3091 = vadd.s32 %v3070, %v3085
          %v3092 = vadd.s32 %v3071, %v3085
          %v3093 = vadd.s32 %v3072, %v3085
          %v3094 = vadd.s32 %v3073, %v3085
          %v3095 = vadd.s32 %v3074, %v3085
          %v3096 = vadd.s32 %v3075, %v3085
          %v3097 = vadd.s32 %v3076, %v3085
          %v3098 = vadd.s32 %v3077, %v3085
          %v3099 = vadd.s32 %v3078, %v3085
          %v3100 = vadd.s32 %v3079, %v3085
          %v3101 = vadd.s32 %v3080, %v3085
          %v3102 = vadd.s32 %v3081, %v3085
          %v3103 = vadd.s32 %v3082, %v3085
          %v3104 = vadd.s32 %v3083, %v3085
          %vm3105 = vcmp.lt.s32.totalorder %v3086, 150
          %vm3106 = vcmp.lt.s32.totalorder %v3087, 150
          %vm3107 = vcmp.lt.s32.totalorder %v3088, 150
          %vm3108 = vcmp.lt.s32.totalorder %v3089, 150
          %vm3109 = vcmp.lt.s32.totalorder %v3090, 150
          %vm3110 = vcmp.lt.s32.totalorder %v3091, 150
          %vm3111 = vcmp.lt.s32.totalorder %v3092, 150
          %vm3112 = vcmp.lt.s32.totalorder %v3093, 150
          %vm3113 = vcmp.lt.s32.totalorder %v3094, 150
          %vm3114 = vcmp.lt.s32.totalorder %v3095, 150
          %vm3115 = vcmp.lt.s32.totalorder %v3096, 150
          %vm3116 = vcmp.lt.s32.totalorder %v3097, 150
          %vm3117 = vcmp.lt.s32.totalorder %v3098, 150
          %vm3118 = vcmp.lt.s32.totalorder %v3099, 150
          %vm3119 = vcmp.lt.s32.totalorder %v3100, 150
          %vm3120 = vcmp.lt.s32.totalorder %v3101, 150
          %vm3121 = vcmp.lt.s32.totalorder %v3102, 150
          %vm3122 = vcmp.lt.s32.totalorder %v3103, 150
          %vm3123 = vcmp.lt.s32.totalorder %v3104, 150
          %v3124 = vsel %vm3105, %v3045, 0.0
          %v3125 = vsel %vm3106, %v3046, 0.0
          %v3126 = vsel %vm3107, %v3047, 0.0
          %v3127 = vsel %vm3108, %v3048, 0.0
          %v3128 = vsel %vm3109, %v3049, 0.0
          %v3129 = vsel %vm3110, %v3050, 0.0
          %v3130 = vsel %vm3111, %v3051, 0.0
          %v3131 = vsel %vm3112, %v3052, 0.0
          %v3132 = vsel %vm3113, %v3053, 0.0
          %v3133 = vsel %vm3114, %v3054, 0.0
          %v3134 = vsel %vm3115, %v3055, 0.0
          %v3135 = vsel %vm3116, %v3056, 0.0
          %v3136 = vsel %vm3117, %v3057, 0.0
          %v3137 = vsel %vm3118, %v3058, 0.0
          %v3138 = vsel %vm3119, %v3059, 0.0
          %v3139 = vsel %vm3120, %v3060, 0.0
          %v3140 = vsel %vm3121, %v3061, 0.0
          %v3141 = vsel %vm3122, %v3062, 0.0
          %v3142 = vsel %vm3123, %v3063, 0.0
          %vm3143 = vcmask 7168
          %v3144 = vsel %vm3143, %v3124, 0.0
          %v3145 = vsel %vm3143, %v3125, 0.0
          %v3146 = vadd.f32 %v3144, %v3145
          %v3147 = vsel %vm3143, %v3126, 0.0
          %v3148 = vadd.f32 %v3146, %v3147
          %v3149 = vsel %vm3143, %v3127, 0.0
          %v3150 = vadd.f32 %v3148, %v3149
          %v3151 = vsel %vm3143, %v3128, 0.0
          %v3152 = vadd.f32 %v3150, %v3151
          %v3153 = vsel %vm3143, %v3129, 0.0
          %v3154 = vadd.f32 %v3152, %v3153
          %v3155 = vsel %vm3143, %v3130, 0.0
          %v3156 = vadd.f32 %v3154, %v3155
          %v3157 = vsel %vm3143, %v3131, 0.0
          %v3158 = vadd.f32 %v3156, %v3157
          %v3159 = vsel %vm3143, %v3132, 0.0
          %v3160 = vadd.f32 %v3158, %v3159
          %v3161 = vsel %vm3143, %v3133, 0.0
          %v3162 = vadd.f32 %v3160, %v3161
          %v3163 = vsel %vm3143, %v3134, 0.0
          %v3164 = vadd.f32 %v3162, %v3163
          %v3165 = vsel %vm3143, %v3135, 0.0
          %v3166 = vadd.f32 %v3164, %v3165
          %v3167 = vsel %vm3143, %v3136, 0.0
          %v3168 = vadd.f32 %v3166, %v3167
          %v3169 = vsel %vm3143, %v3137, 0.0
          %v3170 = vadd.f32 %v3168, %v3169
          %v3171 = vsel %vm3143, %v3138, 0.0
          %v3172 = vadd.f32 %v3170, %v3171
          %v3173 = vsel %vm3143, %v3139, 0.0
          %v3174 = vadd.f32 %v3172, %v3173
          %v3175 = vsel %vm3143, %v3140, 0.0
          %v3176 = vadd.f32 %v3174, %v3175
          %v3177 = vsel %vm3143, %v3141, 0.0
          %v3178 = vadd.f32 %v3176, %v3177
          %v3179 = vsel %vm3143, %v3142, 0.0
          %v3180 = vadd.f32 %v3178, %v3179
          %3181 = vadd.xlane.f32.xlu0 %v3180
          %v3182 = vpop.xlane.xlu0 %3181
          %v3183 = vrot.slane %v3182, 4
          %v3184 = vadd.f32 %v3182, %v3183
          %v3185 = vrot.slane %v3184, 2
          %v3186 = vadd.f32 %v3184, %v3185
          %v3187 = vrot.slane %v3186, 1
          %v3188 = vadd.f32 %v3186, %v3187
          %s3189 = vtos %v3188
          %v3190 = vstv %s3189
          %3191 = vst [vmem:[%s194] sm:$0xff] %v3190
        $region36: #{tpu_custom_call.1} parent=27 // pred_fallthru
          _
        %s3192 = sand.u32 %s101, 1
        %s3193 = scalar_lea.sflag [#allocation4], %s3192
        %s3194 = sand.u32 %s101, 1
        %s3195 = smul.addr %s3194, 8
        %s3196 = scalar_lea.vmem [#allocation3], %s3195
        // Predicated region
        $region37: #{tpu_custom_call.1} parent=27 // pred_check
          %p3197 = pneg %p111
        $region38: #{tpu_custom_call.1} parent=27 // pred_check_branch
          %3199 = sbr.rel (%p3197) target = $region40
        $region39: #{tpu_custom_call.1} parent=27 // pred_region
          %s3201 = ssub.s32 128, 128
          %3202 = vsyncadd %s3193, %s3201
          %s3203 = sadd.s32 %s22, %s21
          %s3204 = smul.addr %s3203, 128
          %s3205 = scalar_lea.hbm %s2, %s3204
          %s3207 = sshll.u32 %s3196, 4
          %s3208 = int_to_ptr.vmem [resolvable:$true] %s3207
          %3210 = dma.vmem_to_hbm [thread:$0]  %s3208, 128, %s3205, %s3193
        $region40: #{tpu_custom_call.1} parent=27 // pred_fallthru
          _
      $region28: #{tpu_custom_call.1} parent=5 // pred_fallthru
        _
      %p3211 = scmp.le.s32.totalorder 2, %s11
      // Predicated region
      $region41: #{tpu_custom_call.1} parent=5 // pred_check
        %p3212 = pneg %p3211
      $region42: #{tpu_custom_call.1} parent=5 // pred_check_branch
        %3214 = sbr.rel (%p3212) target = $region44
      $region43: #{tpu_custom_call.1} parent=5 // pred_region
        %s3215 = ssub.s32 %s11, 2
        // Predicated region
        $region45: #{tpu_custom_call.1} parent=43 // pred_check
          %p3216 = pneg %p117
        $region46: #{tpu_custom_call.1} parent=43 // pred_check_branch
          %3218 = sbr.rel (%p3216) target = $region48
        $region47: #{tpu_custom_call.1} parent=43 // pred_region
          %s3219 = sand.u32 %s102, 1
          %s3220 = scalar_lea.sflag [#allocation4], %s3219
          %s3221 = sand.u32 %s102, 1
          %s3222 = smul.addr %s3221, 8
          %s3223 = scalar_lea.vmem [#allocation3], %s3222
          %3224 = dma.done %s3220, 128
        $region48: #{tpu_custom_call.1} parent=43 // pred_fallthru
          _
      $region44: #{tpu_custom_call.1} parent=5 // pred_fallthru
        _
    $region6: #{tpu_custom_call.1} parent=1 // loop_footer
      %s15 = sadd.s32 1, %s11
    $region7: #{tpu_custom_call.1} parent=1 // loop_footer_branch
      %10 = sbr.rel target = $region3
    $region8: #{tpu_custom_call.1} parent=1 // loop_exit
      _
    %3225 = vsyncpa [#allocation4], 1
    %s3226 = scalar_lea.sflag [#allocation4], 1
    %3227 = vsyncpa %s3226, 1

</llo_original>
